<compile_context>
chip_gen: v6e
topology: v6e:2x2x1
jax: 0.10.0
libtpu: 0.0.40
codegen_flags: <defaults>
</compile_context>

<pallas_src>
import jax
import jax.numpy as jnp
from jax import lax
from jax.experimental import pallas as pl
from jax.experimental.pallas import tpu as pltpu


def _conavg_kernel(x_ref, w_ref, scale_ref, shift_ref, o_ref, xpad_ref):
    """One batch element per grid step.

    x_ref:     (1, H, W, Cin)         unpadded NHWC input tile
    w_ref:     (9*Cin, Cpad)          packed conv weight, k = (dy*3+dx)*Cin + ci
    scale_ref: (1, Cpad)              folded scale  (0.25 * gamma / sqrt(var + eps))
    shift_ref: (1, Cpad)              folded shift  (conv bias, mean, beta, 0.25 folded)
    o_ref:     (1, H//2, W//2, Cpad)  pooled output (last dim lane-dense)
    xpad_ref:  (H+2, W+2, Cin)        VMEM scratch: zero-halo buffer for the 'same' conv
    """
    H, W, Cin = x_ref.shape[1], x_ref.shape[2], x_ref.shape[3]
    Hq, Wq, Cpad = o_ref.shape[1], o_ref.shape[2], o_ref.shape[3]

    # Zero ONLY the 1-pixel halo border; the interior is fully overwritten below, so
    # together every byte of the scratch is written each step (no stale reads) without
    # a full-buffer memset pass.
    xpad_ref[0:1, :, :] = jnp.zeros((1, W + 2, Cin), jnp.float32)
    xpad_ref[H + 1:H + 2, :, :] = jnp.zeros((1, W + 2, Cin), jnp.float32)
    xpad_ref[1:H + 1, 0:1, :] = jnp.zeros((H, 1, Cin), jnp.float32)
    xpad_ref[1:H + 1, W + 1:W + 2, :] = jnp.zeros((H, 1, Cin), jnp.float32)
    # Interior copy (halo handled entirely in VMEM; no wrapper-side HBM pad pass).
    xpad_ref[1:H + 1, 1:W + 1, :] = x_ref[0]
    # TODO(synk): for production Cin (>=64) flatten the scratch minor dims to
    # (H+2, (W+2)*Cin) so the copy / tap reads are fully lane-dense; at Cin=4 the
    # Cin-minor layout is lane-sparse but the whole tile is tiny.

    # im2col built in registers: tap t = dy*3 + dx occupies columns [t*Cin, (t+1)*Cin),
    # matching the wrapper's (9*Cin, Cpad) weight packing.  No patch scratch, so no
    # masked width-Cin patch stores and no VMEM store+reload round trip.
    taps = []
    for dy in range(3):
        for dx in range(3):
            taps.append(xpad_ref[dy:dy + H, dx:dx + W, :].reshape(H * W, Cin))
    patch = jnp.concatenate(taps, axis=1)                       # (H*W, 9*Cin)

    # Single fused MXU matmul: (H*W, 9*Cin) x (9*Cin, Cpad).
    y = jnp.dot(patch, w_ref[...], preferred_element_type=jnp.float32)
    # TODO(synk): optional bf16 patch/weights (keep preferred_element_type=f32) would
    # roughly double MXU throughput on v6e/v7x but will not meet the 1e-4 tolerance.

    # Folded conv-bias + BatchNorm (inference) + AvgPool 1/4 affine, then ReLU.
    y = jnp.maximum(y * scale_ref[...] + shift_ref[...], 0.0)

    # AvgPool2d(2, 2) as two pair-adds; the 0.25 factor is already in scale/shift.
    # Rows of y are ordered h*W + w.
    y = y.reshape(H * Wq, 2, Cpad)
    y = y[:, 0, :] + y[:, 1, :]                                 # pool along W
    y = y.reshape(Hq, 2, Wq, Cpad)
    y = y[:, 0, :, :] + y[:, 1, :, :]                           # pool along H
    o_ref[0] = y.astype(o_ref.dtype)


@jax.jit
def conavg_pallas(x_nhwc, w_hwio, conv_bias, bn_gamma, bn_beta, bn_mean, bn_var):
    """x_nhwc: (N, H, W, Cin) float32, H and W even. Returns (N, H//2, W//2, Cout)."""
    N, H, W, Cin = x_nhwc.shape
    Cout = w_hwio.shape[-1]
    assert H % 2 == 0 and W % 2 == 0, "AvgPool2d(2,2) assumes even H and W"
    eps = 1e-5
    Hq, Wq = H // 2, W // 2
    LANES = 128
    Cpad = ((Cout + LANES - 1) // LANES) * LANES

    # Fold conv bias + BN (eval mode) into a per-channel affine, then fold the AvgPool
    # 1/4 factor into BOTH scale and shift (valid because ReLU commutes with c>0).
    scale = bn_gamma / jnp.sqrt(bn_var + eps)                   # (Cout,)
    shift = bn_beta + scale * (conv_bias - bn_mean)             # (Cout,)
    scale = scale * 0.25
    shift = shift * 0.25

    # Pack the 3x3 taps into one (9*Cin, Cpad) matrix (k = (dy*3+dx)*Cin + ci) and pad
    # Cout to a lane multiple so every in-kernel op and the output store is lane-dense.
    w_packed = jnp.pad(w_hwio.reshape(9 * Cin, Cout).astype(jnp.float32),
                       ((0, 0), (0, Cpad - Cout)))
    scale_p = jnp.pad(scale.astype(jnp.float32), (0, Cpad - Cout)).reshape(1, Cpad)
    shift_p = jnp.pad(shift.astype(jnp.float32), (0, Cpad - Cout)).reshape(1, Cpad)

    # TODO(synk): for production-sized images (e.g. 512x512x64) add an H-strip grid
    # axis with halo rows fetched via an Element-offset index_map or a small manual
    # make_async_copy: cap the strip at Th~16 on v7x (64 MiB VMEM, vmem_limit ~40-48
    # MiB) and Th~32-48 on v5e/v6e (raise vmem_limit_bytes to ~64-96 MiB; v5e's default
    # scoped VMEM is only 16 MiB so the explicit limit is mandatory).
    out_padded = pl.pallas_call(
        _conavg_kernel,
        out_shape=jax.ShapeDtypeStruct((N, Hq, Wq, Cpad), jnp.float32),
        grid_spec=pltpu.PrefetchScalarGridSpec(
            num_scalar_prefetch=0,
            grid=(N,),
            in_specs=[
                pl.BlockSpec((1, H, W, Cin), lambda n: (n, 0, 0, 0)),
                pl.BlockSpec((9 * Cin, Cpad), lambda n: (0, 0)),
                pl.BlockSpec((1, Cpad), lambda n: (0, 0)),
                pl.BlockSpec((1, Cpad), lambda n: (0, 0)),
            ],
            out_specs=pl.BlockSpec((1, Hq, Wq, Cpad), lambda n: (n, 0, 0, 0)),
            scratch_shapes=[
                pltpu.VMEM((H + 2, W + 2, Cin), jnp.float32),
            ],
        ),
        compiler_params=pltpu.CompilerParams(
            dimension_semantics=("parallel",),
            vmem_limit_bytes=32 * 1024 * 1024,
        ),
    )(x_nhwc, w_packed, scale_p, shift_p)

    # Drop the lane padding (cheap: the output is already spatially pooled 4x).
    return out_padded[..., :Cout]


def _reference(x_nhwc, w_hwio, conv_bias, bn_gamma, bn_beta, bn_mean, bn_var):
    eps = 1e-5
    y = lax.conv_general_dilated(
        x_nhwc, w_hwio, window_strides=(1, 1), padding="SAME",
        dimension_numbers=("NHWC", "HWIO", "NHWC"))
    y = y + conv_bias
    y = (y - bn_mean) / jnp.sqrt(bn_var + eps) * bn_gamma + bn_beta
    y = jnp.maximum(y, 0.0)
    N, H, W, C = y.shape
    y = y.reshape(N, H // 2, 2, W // 2, 2, C).mean(axis=(2, 4))
    return y


if __name__ == "__main__":
    # Small shapes consistent with the module's forward: NCHW input (N, Cin, H, W).
    N, Cin, Cout, H, W = 2, 4, 8, 16, 16

    key = jax.random.PRNGKey(0)
    kx, kw, kb, kg, kbe, km, kv = jax.random.split(key, 7)

    x_nchw = jax.random.normal(kx, (N, Cin, H, W), dtype=jnp.float32)

    # Deterministic synthetic parameters (not a checkpoint load).
    w_oihw = jax.random.normal(kw, (Cout, Cin, 3, 3), dtype=jnp.float32) * 0.1
    conv_bias = jax.random.normal(kb, (Cout,), dtype=jnp.float32) * 0.1
    bn_gamma = 1.0 + 0.1 * jax.random.normal(kg, (Cout,), dtype=jnp.float32)
    bn_beta = 0.1 * jax.random.normal(kbe, (Cout,), dtype=jnp.float32)
    bn_mean = 0.1 * jax.random.normal(km, (Cout,), dtype=jnp.float32)
    bn_var = jnp.abs(1.0 + 0.1 * jax.random.normal(kv, (Cout,), dtype=jnp.float32))
    # TODO(synk): BatchNorm is applied in eval mode (running stats); training-mode
    # batch statistics would need a cross-batch reduction pass.

    # Layout glue outside the kernel: NCHW -> NHWC, OIHW -> HWIO.
    x_nhwc = jnp.transpose(x_nchw, (0, 2, 3, 1))
    w_hwio = jnp.transpose(w_oihw, (2, 3, 1, 0))

    out = conavg_pallas(x_nhwc, w_hwio, conv_bias, bn_gamma, bn_beta, bn_mean, bn_var)
    out = jax.block_until_ready(out)

    ref = _reference(x_nhwc, w_hwio, conv_bias, bn_gamma, bn_beta, bn_mean, bn_var)
    assert out.shape == (N, H // 2, W // 2, Cout), out.shape
    assert jnp.allclose(out, ref, atol=1e-4, rtol=1e-4), \
        float(jnp.max(jnp.abs(out - ref)))

    print("KERNEL_OK")
</pallas_src>

<mosaic_0001>
module attributes {stable_mosaic.version = 11 : i64} {
  func.func @_conavg_kernel(%arg0: i32, %arg1: memref<1x16x16x4xf32, #tpu.memory_space<vmem>>, %arg2: memref<36x128xf32, #tpu.memory_space<vmem>>, %arg3: memref<1x128xf32, #tpu.memory_space<vmem>>, %arg4: memref<1x128xf32, #tpu.memory_space<vmem>>, %arg5: memref<1x8x8x128xf32, #tpu.memory_space<vmem>>, %arg6: memref<18x18x4xf32, #tpu.memory_space<vmem>>) attributes {dimension_semantics = [#tpu.dimension_semantics<parallel>], iteration_bounds = array<i64: 2>, scalar_prefetch = 0 : i64, scratch_operands = 1 : i64, tpu.core_type = #tpu.core_type<tc>, window_params = [{transform_indices = @transform_0, window_bounds = array<i64: 1, 16, 16, 4>}, {pipeline_mode = #tpu.pipeline_mode<synchronous>, transform_indices = @transform_1, window_bounds = array<i64: 36, 128>}, {pipeline_mode = #tpu.pipeline_mode<synchronous>, transform_indices = @transform_2, window_bounds = array<i64: 1, 128>}, {pipeline_mode = #tpu.pipeline_mode<synchronous>, transform_indices = @transform_3, window_bounds = array<i64: 1, 128>}, {transform_indices = @transform_4, window_bounds = array<i64: 1, 8, 8, 128>}]} {
    %cst = arith.constant 0.000000e+00 : f32
    %0 = vector.broadcast %cst : f32 to vector<1x18x4xf32>
    %c0 = arith.constant 0 : index
    %c0_0 = arith.constant 0 : index
    %c0_1 = arith.constant 0 : index
    %1 = vector.load %arg6[%c0, %c0_0, %c0_1] : memref<18x18x4xf32, #tpu.memory_space<vmem>>, vector<1x18x4xf32>
    tpu.vector_store %arg6[%c0, %c0_0, %c0_1], %0 {strides = array<i32>} : memref<18x18x4xf32, #tpu.memory_space<vmem>>, vector<1x18x4xf32>,
    %cst_2 = arith.constant 0.000000e+00 : f32
    %2 = vector.broadcast %cst_2 : f32 to vector<1x18x4xf32>
    %c17 = arith.constant 17 : index
    %c0_3 = arith.constant 0 : index
    %c0_4 = arith.constant 0 : index
    %3 = vector.load %arg6[%c17, %c0_3, %c0_4] : memref<18x18x4xf32, #tpu.memory_space<vmem>>, vector<1x18x4xf32>
    tpu.vector_store %arg6[%c17, %c0_3, %c0_4], %2 {strides = array<i32>} : memref<18x18x4xf32, #tpu.memory_space<vmem>>, vector<1x18x4xf32>,
    %cst_5 = arith.constant 0.000000e+00 : f32
    %4 = vector.broadcast %cst_5 : f32 to vector<16x1x4xf32>
    %c1 = arith.constant 1 : index
    %c0_6 = arith.constant 0 : index
    %c0_7 = arith.constant 0 : index
    %5 = vector.load %arg6[%c1, %c0_6, %c0_7] : memref<18x18x4xf32, #tpu.memory_space<vmem>>, vector<16x1x4xf32>
    tpu.vector_store %arg6[%c1, %c0_6, %c0_7], %4 {strides = array<i32>} : memref<18x18x4xf32, #tpu.memory_space<vmem>>, vector<16x1x4xf32>,
    %cst_8 = arith.constant 0.000000e+00 : f32
    %6 = vector.broadcast %cst_8 : f32 to vector<16x1x4xf32>
    %c1_9 = arith.constant 1 : index
    %c17_10 = arith.constant 17 : index
    %c0_11 = arith.constant 0 : index
    %7 = vector.load %arg6[%c1_9, %c17_10, %c0_11] : memref<18x18x4xf32, #tpu.memory_space<vmem>>, vector<16x1x4xf32>
    tpu.vector_store %arg6[%c1_9, %c17_10, %c0_11], %6 {strides = array<i32>} : memref<18x18x4xf32, #tpu.memory_space<vmem>>, vector<16x1x4xf32>,
    %c0_12 = arith.constant 0 : index
    %c0_13 = arith.constant 0 : index
    %c0_14 = arith.constant 0 : index
    %c0_15 = arith.constant 0 : index
    %8 = vector.load %arg1[%c0_12, %c0_13, %c0_14, %c0_15] : memref<1x16x16x4xf32, #tpu.memory_space<vmem>>, vector<1x16x16x4xf32>
    %9 = vector.shape_cast %8 : vector<1x16x16x4xf32> to vector<16x16x4xf32>
    %c1_16 = arith.constant 1 : index
    %c1_17 = arith.constant 1 : index
    %c0_18 = arith.constant 0 : index
    %10 = vector.load %arg6[%c1_16, %c1_17, %c0_18] : memref<18x18x4xf32, #tpu.memory_space<vmem>>, vector<16x16x4xf32>
    tpu.vector_store %arg6[%c1_16, %c1_17, %c0_18], %9 {strides = array<i32>} : memref<18x18x4xf32, #tpu.memory_space<vmem>>, vector<16x16x4xf32>,
    %c0_19 = arith.constant 0 : index
    %c0_20 = arith.constant 0 : index
    %c0_21 = arith.constant 0 : index
    %11 = vector.load %arg6[%c0_19, %c0_20, %c0_21] : memref<18x18x4xf32, #tpu.memory_space<vmem>>, vector<16x16x4xf32>
    %12 = vector.shape_cast %11 : vector<16x16x4xf32> to vector<256x4xf32>
    %c0_22 = arith.constant 0 : index
    %c1_23 = arith.constant 1 : index
    %c0_24 = arith.constant 0 : index
    %13 = vector.load %arg6[%c0_22, %c1_23, %c0_24] : memref<18x18x4xf32, #tpu.memory_space<vmem>>, vector<16x16x4xf32>
    %14 = vector.shape_cast %13 : vector<16x16x4xf32> to vector<256x4xf32>
    %c0_25 = arith.constant 0 : index
    %c2 = arith.constant 2 : index
    %c0_26 = arith.constant 0 : index
    %15 = vector.load %arg6[%c0_25, %c2, %c0_26] : memref<18x18x4xf32, #tpu.memory_space<vmem>>, vector<16x16x4xf32>
    %16 = vector.shape_cast %15 : vector<16x16x4xf32> to vector<256x4xf32>
    %c1_27 = arith.constant 1 : index
    %c0_28 = arith.constant 0 : index
    %c0_29 = arith.constant 0 : index
    %17 = vector.load %arg6[%c1_27, %c0_28, %c0_29] : memref<18x18x4xf32, #tpu.memory_space<vmem>>, vector<16x16x4xf32>
    %18 = vector.shape_cast %17 : vector<16x16x4xf32> to vector<256x4xf32>
    %c1_30 = arith.constant 1 : index
    %c1_31 = arith.constant 1 : index
    %c0_32 = arith.constant 0 : index
    %19 = vector.load %arg6[%c1_30, %c1_31, %c0_32] : memref<18x18x4xf32, #tpu.memory_space<vmem>>, vector<16x16x4xf32>
    %20 = vector.shape_cast %19 : vector<16x16x4xf32> to vector<256x4xf32>
    %c1_33 = arith.constant 1 : index
    %c2_34 = arith.constant 2 : index
    %c0_35 = arith.constant 0 : index
    %21 = vector.load %arg6[%c1_33, %c2_34, %c0_35] : memref<18x18x4xf32, #tpu.memory_space<vmem>>, vector<16x16x4xf32>
    %22 = vector.shape_cast %21 : vector<16x16x4xf32> to vector<256x4xf32>
    %c2_36 = arith.constant 2 : index
    %c0_37 = arith.constant 0 : index
    %c0_38 = arith.constant 0 : index
    %23 = vector.load %arg6[%c2_36, %c0_37, %c0_38] : memref<18x18x4xf32, #tpu.memory_space<vmem>>, vector<16x16x4xf32>
    %24 = vector.shape_cast %23 : vector<16x16x4xf32> to vector<256x4xf32>
    %c2_39 = arith.constant 2 : index
    %c1_40 = arith.constant 1 : index
    %c0_41 = arith.constant 0 : index
    %25 = vector.load %arg6[%c2_39, %c1_40, %c0_41] : memref<18x18x4xf32, #tpu.memory_space<vmem>>, vector<16x16x4xf32>
    %26 = vector.shape_cast %25 : vector<16x16x4xf32> to vector<256x4xf32>
    %c2_42 = arith.constant 2 : index
    %c2_43 = arith.constant 2 : index
    %c0_44 = arith.constant 0 : index
    %27 = vector.load %arg6[%c2_42, %c2_43, %c0_44] : memref<18x18x4xf32, #tpu.memory_space<vmem>>, vector<16x16x4xf32>
    %28 = vector.shape_cast %27 : vector<16x16x4xf32> to vector<256x4xf32>
    %29 = tpu.concatenate %12, %14, %16, %18, %20, %22, %24, %26, %28 in 1 : vector<256x4xf32>, vector<256x4xf32>, vector<256x4xf32>, vector<256x4xf32>, vector<256x4xf32>, vector<256x4xf32>, vector<256x4xf32>, vector<256x4xf32>, vector<256x4xf32> -> vector<256x36xf32>
    %c0_45 = arith.constant 0 : index
    %c0_46 = arith.constant 0 : index
    %30 = vector.load %arg2[%c0_45, %c0_46] : memref<36x128xf32, #tpu.memory_space<vmem>>, vector<36x128xf32>
    %cst_47 = arith.constant dense<0.000000e+00> : vector<256x128xf32>
    %31 = tpu.matmul %29, %30, %cst_47 {dimension_numbers = #tpu.dot_dimension_numbers<[1], [0], [0], [1], [0, 0, 1, 1], [], []>} : vector<256x36xf32>, vector<36x128xf32>, vector<256x128xf32> -> vector<256x128xf32>
    %c0_48 = arith.constant 0 : index
    %c0_49 = arith.constant 0 : index
    %32 = vector.load %arg3[%c0_48, %c0_49] : memref<1x128xf32, #tpu.memory_space<vmem>>, vector<1x128xf32>
    %33 = vector.broadcast %32 : vector<1x128xf32> to vector<256x128xf32>
    %34 = arith.mulf %31, %33 : vector<256x128xf32>
    %c0_50 = arith.constant 0 : index
    %c0_51 = arith.constant 0 : index
    %35 = vector.load %arg4[%c0_50, %c0_51] : memref<1x128xf32, #tpu.memory_space<vmem>>, vector<1x128xf32>
    %36 = vector.broadcast %35 : vector<1x128xf32> to vector<256x128xf32>
    %37 = arith.addf %34, %36 : vector<256x128xf32>
    %cst_52 = arith.constant 0.000000e+00 : f32
    %38 = vector.broadcast %cst_52 : f32 to vector<256x128xf32>
    %39 = arith.maximumf %37, %38 : vector<256x128xf32>
    %40 = vector.shape_cast %39 : vector<256x128xf32> to vector<128x2x128xf32>
    %41 = vector.extract_strided_slice %40 {offsets = [0, 0, 0], sizes = [128, 1, 128], strides = [1, 1, 1]} : vector<128x2x128xf32> to vector<128x1x128xf32>
    %42 = vector.shape_cast %41 : vector<128x1x128xf32> to vector<128x128xf32>
    %43 = vector.extract_strided_slice %40 {offsets = [0, 1, 0], sizes = [128, 1, 128], strides = [1, 1, 1]} : vector<128x2x128xf32> to vector<128x1x128xf32>
    %44 = vector.shape_cast %43 : vector<128x1x128xf32> to vector<128x128xf32>
    %45 = arith.addf %42, %44 : vector<128x128xf32>
    %46 = vector.shape_cast %45 : vector<128x128xf32> to vector<8x2x8x128xf32>
    %47 = vector.extract_strided_slice %46 {offsets = [0, 0, 0, 0], sizes = [8, 1, 8, 128], strides = [1, 1, 1, 1]} : vector<8x2x8x128xf32> to vector<8x1x8x128xf32>
    %48 = vector.shape_cast %47 : vector<8x1x8x128xf32> to vector<8x8x128xf32>
    %49 = vector.extract_strided_slice %46 {offsets = [0, 1, 0, 0], sizes = [8, 1, 8, 128], strides = [1, 1, 1, 1]} : vector<8x2x8x128xf32> to vector<8x1x8x128xf32>
    %50 = vector.shape_cast %49 : vector<8x1x8x128xf32> to vector<8x8x128xf32>
    %51 = arith.addf %48, %50 : vector<8x8x128xf32>
    %c0_53 = arith.constant 0 : index
    %c0_54 = arith.constant 0 : index
    %c0_55 = arith.constant 0 : index
    %c0_56 = arith.constant 0 : index
    %52 = vector.load %arg5[%c0_53, %c0_54, %c0_55, %c0_56] : memref<1x8x8x128xf32, #tpu.memory_space<vmem>>, vector<1x8x8x128xf32>
    %53 = vector.shape_cast %52 : vector<1x8x8x128xf32> to vector<8x8x128xf32>
    %54 = vector.shape_cast %51 : vector<8x8x128xf32> to vector<1x8x8x128xf32>
    tpu.vector_store %arg5[%c0_53, %c0_54, %c0_55, %c0_56], %54 {strides = array<i32>} : memref<1x8x8x128xf32, #tpu.memory_space<vmem>>, vector<1x8x8x128xf32>,
    return
  }
  func.func @transform_0(%arg0: i32) -> (i32, i32, i32, i32) {
    %c0_i32 = arith.constant 0 : i32
    %c0_i32_0 = arith.constant 0 : i32
    %c0_i32_1 = arith.constant 0 : i32
    %c0_i32_2 = arith.constant 0 : i32
    return %arg0, %c0_i32, %c0_i32_0, %c0_i32_1 : i32, i32, i32, i32
  }
  func.func @transform_1(%arg0: i32) -> (i32, i32) {
    %c0_i32 = arith.constant 0 : i32
    %c0_i32_0 = arith.constant 0 : i32
    %c0_i32_1 = arith.constant 0 : i32
    return %c0_i32, %c0_i32_0 : i32, i32
  }
  func.func @transform_2(%arg0: i32) -> (i32, i32) {
    %c0_i32 = arith.constant 0 : i32
    %c0_i32_0 = arith.constant 0 : i32
    %c0_i32_1 = arith.constant 0 : i32
    return %c0_i32, %c0_i32_0 : i32, i32
  }
  func.func @transform_3(%arg0: i32) -> (i32, i32) {
    %c0_i32 = arith.constant 0 : i32
    %c0_i32_0 = arith.constant 0 : i32
    %c0_i32_1 = arith.constant 0 : i32
    return %c0_i32, %c0_i32_0 : i32, i32
  }
  func.func @transform_4(%arg0: i32) -> (i32, i32, i32, i32) {
    %c0_i32 = arith.constant 0 : i32
    %c0_i32_0 = arith.constant 0 : i32
    %c0_i32_1 = arith.constant 0 : i32
    %c0_i32_2 = arith.constant 0 : i32
    return %arg0, %c0_i32, %c0_i32_0, %c0_i32_1 : i32, i32, i32, i32
  }
}

</mosaic_0001>

<llo_original>
// kernel: conavg_pallas.1
$region0: #{conavg_pallas.1}
  #allocation0 [shape = 'u32[]', space=smem, size = 0x4, offset = 0x4, fixed_abs, tag = 'smem constant byte address 0x4 - core index']
  #allocation1 [shape = 'u32[144,128]{1,0:T(1,128)}', space=vmem, size = 0x12000, scoped, tag = 'internal scratch']
  #allocation2 [shape = 'f32[18,18,4]{2,1,0:T(8,128)}', space=vmem, size = 0x36000, scoped, tag = 'scratch operand']
  %s0 = inlined_call_operand.vmem [shape: f32[2,16,16,4], index: 0, kind: input, shape index: {}]
  %s1 = inlined_call_operand.vmem [shape: f32[36,128], index: 1, kind: input, shape index: {}]
  %s2 = inlined_call_operand.vmem [shape: f32[1,128], index: 2, kind: input, shape index: {}]
  %s3 = inlined_call_operand.vmem [shape: f32[1,128], index: 3, kind: input, shape index: {}]
  %s4 = inlined_call_operand.hbm [shape: f32[2,8,8,128], index: 4, kind: output, shape index: {}]
  %s5 = sld [smem:[#allocation0]]
  $region49: #{conavg_pallas.1} parent=0
    _
  %s7 = ssub.s32 1, %s5
  %s8 = scalar_select 0, %s7, %s5
  $region1: #{conavg_pallas.1} parent=0
    #allocation3 [shape = 'u8[65536]{0}', space=vmem, size = 0x10000, scoped, tag = 'output window, operand 0']
    #allocation4 [shape = 's32[2]{0}', space=sflag, size = 0x8, scoped, tag = 'scoped memory for conavg_pallas.1']
    %9 = vsyncpa [#allocation4], 0
    %s10 = scalar_lea.sflag [#allocation4], 1
    %11 = vsyncpa %s10, 0
    loop: start=0, step=1, limit=4
    $region2: #{conavg_pallas.1} parent=1 // loop_pre_header
      _
    $region3: #{conavg_pallas.1} parent=1 // loop_header
      %s13 = sphi 0, %s17
      %p14 = scmp.ge.s32.totalorder %s13, 4
      %s23 = sphi 0, %s25
      %s26 = sphi 0, %s23
      %s27 = sphi 0, %s26
      %s43 = sphi 0, %s27
      %s47 = sphi 0, %s47
      %s49 = sphi 0, %s47
      %s50 = sphi 0, %s49
      %s64 = sphi 0, %s50
      %s68 = sphi 0, %s68
      %s70 = sphi 0, %s68
      %s71 = sphi 0, %s70
      %s85 = sphi 0, %s71
      %s89 = sphi 0, %s89
      %s91 = sphi 0, %s89
      %s92 = sphi 0, %s91
      %s106 = sphi 0, %s92
      %s112 = sphi 0, %s114
      %s115 = sphi 0, %s112
      %s116 = sphi 0, %s115
      %s132 = sphi 0, %s116
    $region4: #{conavg_pallas.1} parent=1 // loop_header_branch
      %16 = sbr.rel (%p14) target = $region8
    $region5: #{conavg_pallas.1} parent=1 // loop_body
      %s18 = ssub.s32 %s13, 1
      %s19 = ssub.s32 %s13, 2
      %s20 = sadd.s32 %s13, 1
      %s21 = ssub.s32 %s13, %s20
      %p22 = scmp.eq.s32.totalorder %s21, 0
      %s24 = sadd.s32 %s23, 1
      %s25 = scalar_select %p22, %s23, %s24
      %p28 = pneg %p22
      %p29 = scmp.eq.s32.totalorder %s13, 1
      %p30 = por %p28, %p29
      %p31 = scmp.ne.s32.totalorder %s23, %s26
      %p32 = scmp.eq.s32.totalorder %s13, 0
      %p33 = por %p31, %p32
      %p34 = scmp.ne.s32.totalorder %s23, %s26
      %p35 = scmp.eq.s32.totalorder %s18, 1
      %p36 = por %p34, %p35
      %p37 = scmp.ne.s32.totalorder %s26, %s27
      %p38 = scmp.eq.s32.totalorder %s18, 0
      %p39 = por %p37, %p38
      %p40 = scmp.ne.s32.totalorder %s26, %s27
      %p41 = scmp.eq.s32.totalorder %s19, 1
      %p42 = por %p40, %p41
      %p44 = scmp.ne.s32.totalorder %s27, %s43
      %p45 = scmp.eq.s32.totalorder %s19, 0
      %p46 = por %p44, %p45
      %s48 = sadd.s32 %s47, 1
      %p51 = scmp.eq.s32.totalorder %s13, 1
      %p52 = scmp.ne.s32.totalorder %s47, %s49
      %p53 = scmp.eq.s32.totalorder %s13, 0
      %p54 = por %p52, %p53
      %p55 = scmp.ne.s32.totalorder %s47, %s49
      %p56 = scmp.eq.s32.totalorder %s18, 1
      %p57 = por %p55, %p56
      %p58 = scmp.ne.s32.totalorder %s49, %s50
      %p59 = scmp.eq.s32.totalorder %s18, 0
      %p60 = por %p58, %p59
      %p61 = scmp.ne.s32.totalorder %s49, %s50
      %p62 = scmp.eq.s32.totalorder %s19, 1
      %p63 = por %p61, %p62
      %p65 = scmp.ne.s32.totalorder %s50, %s64
      %p66 = scmp.eq.s32.totalorder %s19, 0
      %p67 = por %p65, %p66
      %s69 = sadd.s32 %s68, 1
      %p72 = scmp.eq.s32.totalorder %s13, 1
      %p73 = scmp.ne.s32.totalorder %s68, %s70
      %p74 = scmp.eq.s32.totalorder %s13, 0
      %p75 = por %p73, %p74
      %p76 = scmp.ne.s32.totalorder %s68, %s70
      %p77 = scmp.eq.s32.totalorder %s18, 1
      %p78 = por %p76, %p77
      %p79 = scmp.ne.s32.totalorder %s70, %s71
      %p80 = scmp.eq.s32.totalorder %s18, 0
      %p81 = por %p79, %p80
      %p82 = scmp.ne.s32.totalorder %s70, %s71
      %p83 = scmp.eq.s32.totalorder %s19, 1
      %p84 = por %p82, %p83
      %p86 = scmp.ne.s32.totalorder %s71, %s85
      %p87 = scmp.eq.s32.totalorder %s19, 0
      %p88 = por %p86, %p87
      %s90 = sadd.s32 %s89, 1
      %p93 = scmp.eq.s32.totalorder %s13, 1
      %p94 = scmp.ne.s32.totalorder %s89, %s91
      %p95 = scmp.eq.s32.totalorder %s13, 0
      %p96 = por %p94, %p95
      %p97 = scmp.ne.s32.totalorder %s89, %s91
      %p98 = scmp.eq.s32.totalorder %s18, 1
      %p99 = por %p97, %p98
      %p100 = scmp.ne.s32.totalorder %s91, %s92
      %p101 = scmp.eq.s32.totalorder %s18, 0
      %p102 = por %p100, %p101
      %p103 = scmp.ne.s32.totalorder %s91, %s92
      %p104 = scmp.eq.s32.totalorder %s19, 1
      %p105 = por %p103, %p104
      %p107 = scmp.ne.s32.totalorder %s92, %s106
      %p108 = scmp.eq.s32.totalorder %s19, 0
      %p109 = por %p107, %p108
      %s110 = ssub.s32 %s13, %s20
      %p111 = scmp.eq.s32.totalorder %s110, 0
      %s113 = sadd.s32 %s112, 1
      %s114 = scalar_select %p111, %s112, %s113
      %p117 = pneg %p111
      %p118 = scmp.eq.s32.totalorder %s13, 1
      %p119 = por %p117, %p118
      %p120 = scmp.ne.s32.totalorder %s112, %s115
      %p121 = scmp.eq.s32.totalorder %s13, 0
      %p122 = por %p120, %p121
      %p123 = scmp.ne.s32.totalorder %s112, %s115
      %p124 = scmp.eq.s32.totalorder %s18, 1
      %p125 = por %p123, %p124
      %p126 = scmp.ne.s32.totalorder %s115, %s116
      %p127 = scmp.eq.s32.totalorder %s18, 0
      %p128 = por %p126, %p127
      %p129 = scmp.ne.s32.totalorder %s115, %s116
      %p130 = scmp.eq.s32.totalorder %s19, 1
      %p131 = por %p129, %p130
      %p133 = scmp.ne.s32.totalorder %s116, %s132
      %p134 = scmp.eq.s32.totalorder %s19, 0
      %p135 = por %p133, %p134
      %p136 = scmp.le.s32.totalorder 1, %s13
      %p137 = scmp.lt.s32.totalorder %s13, 3
      %p138 = pnand %p136, %p137
      %p139 = pneg %p138
      // Predicated region
      $region9: #{conavg_pallas.1} parent=5 // pred_check
        _
      $region10: #{conavg_pallas.1} parent=5 // pred_check_branch
        %141 = sbr.rel (%p138) target = $region12
      $region11: #{conavg_pallas.1} parent=5 // pred_region
        %s142 = ssub.s32 %s13, 1
        // Predicated region
        $region13: #{conavg_pallas.1} parent=11 // pred_check
          %p143 = pneg %p60
        $region14: #{conavg_pallas.1} parent=11 // pred_check_branch
          %145 = sbr.rel (%p143) target = $region16
        $region15: #{conavg_pallas.1} parent=11 // pred_region
          _
        $region16: #{conavg_pallas.1} parent=11 // pred_fallthru
          _
        // Predicated region
        $region17: #{conavg_pallas.1} parent=11 // pred_check
          %p146 = pneg %p81
        $region18: #{conavg_pallas.1} parent=11 // pred_check_branch
          %148 = sbr.rel (%p146) target = $region20
        $region19: #{conavg_pallas.1} parent=11 // pred_region
          _
        $region20: #{conavg_pallas.1} parent=11 // pred_fallthru
          _
        // Predicated region
        $region21: #{conavg_pallas.1} parent=11 // pred_check
          %p149 = pneg %p102
        $region22: #{conavg_pallas.1} parent=11 // pred_check_branch
          %151 = sbr.rel (%p149) target = $region24
        $region23: #{conavg_pallas.1} parent=11 // pred_region
          _
        $region24: #{conavg_pallas.1} parent=11 // pred_fallthru
          _
      $region12: #{conavg_pallas.1} parent=5 // pred_fallthru
        _
      %p152 = scmp.lt.s32.totalorder %s13, 2
      // Predicated region
      $region25: #{conavg_pallas.1} parent=5 // pred_check
        %p153 = pneg %p152
      $region26: #{conavg_pallas.1} parent=5 // pred_check_branch
        %155 = sbr.rel (%p153) target = $region28
      $region27: #{conavg_pallas.1} parent=5 // pred_region
        // Predicated region
        $region29: #{conavg_pallas.1} parent=27 // pred_check
          %p156 = pneg %p33
        $region30: #{conavg_pallas.1} parent=27 // pred_check_branch
          %158 = sbr.rel (%p156) target = $region32
        $region31: #{conavg_pallas.1} parent=27 // pred_region
          %p159 = scmp.lt.s32.totalorder %s13, 1
          %s160 = scalar_select %p159, %s13, 1
          %s161 = smul.addr %s160, 32
          %s162 = smul.addr %s161, 8
          %s163 = scalar_lea.vmem %s0, %s162
        $region32: #{conavg_pallas.1} parent=27 // pred_fallthru
          _
      $region28: #{conavg_pallas.1} parent=5 // pred_fallthru
        _
      %p164 = scmp.le.s32.totalorder 1, %s13
      %p165 = scmp.lt.s32.totalorder %s13, 3
      %p166 = pnand %p164, %p165
      %p167 = pneg %p166
      // Predicated region
      $region33: #{conavg_pallas.1} parent=5 // pred_check
        _
      $region34: #{conavg_pallas.1} parent=5 // pred_check_branch
        %169 = sbr.rel (%p166) target = $region36
      $region35: #{conavg_pallas.1} parent=5 // pred_region
        %s170 = ssub.s32 %s13, 1
        %p171 = scmp.lt.s32.totalorder %s18, 1
        %s172 = scalar_select %p171, %s18, 1
        %s173 = smul.addr %s172, 32
        %s174 = smul.addr %s173, 8
        %s175 = scalar_lea.vmem %s0, %s174
        %p176 = pneg %p39
        %p177 = pneg %p36
        %p178 = pneg %p60
        %p179 = pneg %p57
        %p180 = pneg %p81
        %p181 = pneg %p78
        %p182 = pneg %p102
        %p183 = pneg %p99
        %p184 = pneg %p128
        %p185 = pneg %p125
        %s186 = sand.u32 %s115, 1
        %s187 = scalar_lea.sflag [#allocation4], %s186
        %s188 = sand.u32 %s115, 1
        %s189 = smul.addr %s188, 64
        %s190 = scalar_lea.vmem [#allocation3], %s189
        %p191 = scmp.lt.s32.totalorder %s18, 1
        %s192 = scalar_select %p191, %s18, 1
        %s193 = smul.addr %s192, 32
        %s194 = smul.addr %s193, 8
        %s195 = scalar_lea.vmem %s0, %s194
        %vm196 = vcmask 31744
        %197 = vst.msk [vmem:[#allocation2] sm:$0xff] %vm196, 0.0
        %198 = vst.msk [vmem:[#allocation2 + $0x8] sm:$0xff] %vm196, 0.0
        %vm199 = vcmask 25600
        %200 = vst.msk [vmem:[#allocation2 + $0x10] sm:$0x3] %vm199, 0.0
        %s201 = scalar_lea.vmem [#allocation2], 408
        %202 = vst.msk [vmem:[%s201] sm:$0xff] %vm196, 0.0
        %203 = vst.msk [vmem:[%s201 + $0x8] sm:$0xff] %vm196, 0.0
        %204 = vst.msk [vmem:[%s201 + $0x10] sm:$0x3] %vm199, 0.0
        %s205 = scalar_lea.vmem [#allocation2], 24
        %vm206 = vcmask 24576
        %207 = vst.msk [vmem:[%s205] sm:$0x1] %vm206, 0.0
        %208 = vst.msk [vmem:[%s205 + $0x18] sm:$0x1] %vm206, 0.0
        %209 = vst.msk [vmem:[%s205 + $0x30] sm:$0x1] %vm206, 0.0
        %210 = vst.msk [vmem:[%s205 + $0x48] sm:$0x1] %vm206, 0.0
        %211 = vst.msk [vmem:[%s205 + $0x60] sm:$0x1] %vm206, 0.0
        %212 = vst.msk [vmem:[%s205 + $0x78] sm:$0x1] %vm206, 0.0
        %213 = vst.msk [vmem:[%s205 + $0x90] sm:$0x1] %vm206, 0.0
        %214 = vst.msk [vmem:[%s205 + $0xa8] sm:$0x1] %vm206, 0.0
        %215 = vst.msk [vmem:[%s205 + $0xc0] sm:$0x1] %vm206, 0.0
        %216 = vst.msk [vmem:[%s205 + $0xd8] sm:$0x1] %vm206, 0.0
        %217 = vst.msk [vmem:[%s205 + $0xf0] sm:$0x1] %vm206, 0.0
        %218 = vst.msk [vmem:[%s205 + $0x108] sm:$0x1] %vm206, 0.0
        %219 = vst.msk [vmem:[%s205 + $0x120] sm:$0x1] %vm206, 0.0
        %220 = vst.msk [vmem:[%s205 + $0x138] sm:$0x1] %vm206, 0.0
        %221 = vst.msk [vmem:[%s205 + $0x150] sm:$0x1] %vm206, 0.0
        %222 = vst.msk [vmem:[%s205 + $0x168] sm:$0x1] %vm206, 0.0
        %223 = vst.msk [vmem:[%s205 + $0x11] sm:$0x1] %vm206, 0.0
        %224 = vst.msk [vmem:[%s205 + $0x29] sm:$0x1] %vm206, 0.0
        %225 = vst.msk [vmem:[%s205 + $0x41] sm:$0x1] %vm206, 0.0
        %226 = vst.msk [vmem:[%s205 + $0x59] sm:$0x1] %vm206, 0.0
        %227 = vst.msk [vmem:[%s205 + $0x71] sm:$0x1] %vm206, 0.0
        %228 = vst.msk [vmem:[%s205 + $0x89] sm:$0x1] %vm206, 0.0
        %229 = vst.msk [vmem:[%s205 + $0xa1] sm:$0x1] %vm206, 0.0
        %230 = vst.msk [vmem:[%s205 + $0xb9] sm:$0x1] %vm206, 0.0
        %231 = vst.msk [vmem:[%s205 + $0xd1] sm:$0x1] %vm206, 0.0
        %232 = vst.msk [vmem:[%s205 + $0xe9] sm:$0x1] %vm206, 0.0
        %233 = vst.msk [vmem:[%s205 + $0x101] sm:$0x1] %vm206, 0.0
        %234 = vst.msk [vmem:[%s205 + $0x119] sm:$0x1] %vm206, 0.0
        %235 = vst.msk [vmem:[%s205 + $0x131] sm:$0x1] %vm206, 0.0
        %236 = vst.msk [vmem:[%s205 + $0x149] sm:$0x1] %vm206, 0.0
        %237 = vst.msk [vmem:[%s205 + $0x161] sm:$0x1] %vm206, 0.0
        %238 = vst.msk [vmem:[%s205 + $0x179] sm:$0x1] %vm206, 0.0
        %v239 = vld [vmem:[%s195] sm:$0xff]
        %v240 = vld [vmem:[%s195 + $0x8] sm:$0xff]
        %v241 = vld [vmem:[%s195 + $0x10] sm:$0xff]
        %v242 = vld [vmem:[%s195 + $0x18] sm:$0xff]
        %v243 = vld [vmem:[%s195 + $0x20] sm:$0xff]
        %v244 = vld [vmem:[%s195 + $0x28] sm:$0xff]
        %v245 = vld [vmem:[%s195 + $0x30] sm:$0xff]
        %v246 = vld [vmem:[%s195 + $0x38] sm:$0xff]
        %v247 = vld [vmem:[%s195 + $0x40] sm:$0xff]
        %v248 = vld [vmem:[%s195 + $0x48] sm:$0xff]
        %v249 = vld [vmem:[%s195 + $0x50] sm:$0xff]
        %v250 = vld [vmem:[%s195 + $0x58] sm:$0xff]
        %v251 = vld [vmem:[%s195 + $0x60] sm:$0xff]
        %v252 = vld [vmem:[%s195 + $0x68] sm:$0xff]
        %v253 = vld [vmem:[%s195 + $0x70] sm:$0xff]
        %v254 = vld [vmem:[%s195 + $0x78] sm:$0xff]
        %v255 = vld [vmem:[%s195 + $0x80] sm:$0xff]
        %v256 = vld [vmem:[%s195 + $0x88] sm:$0xff]
        %v257 = vld [vmem:[%s195 + $0x90] sm:$0xff]
        %v258 = vld [vmem:[%s195 + $0x98] sm:$0xff]
        %v259 = vld [vmem:[%s195 + $0xa0] sm:$0xff]
        %v260 = vld [vmem:[%s195 + $0xa8] sm:$0xff]
        %v261 = vld [vmem:[%s195 + $0xb0] sm:$0xff]
        %v262 = vld [vmem:[%s195 + $0xb8] sm:$0xff]
        %v263 = vld [vmem:[%s195 + $0xc0] sm:$0xff]
        %v264 = vld [vmem:[%s195 + $0xc8] sm:$0xff]
        %v265 = vld [vmem:[%s195 + $0xd0] sm:$0xff]
        %v266 = vld [vmem:[%s195 + $0xd8] sm:$0xff]
        %v267 = vld [vmem:[%s195 + $0xe0] sm:$0xff]
        %v268 = vld [vmem:[%s195 + $0xe8] sm:$0xff]
        %v269 = vld [vmem:[%s195 + $0xf0] sm:$0xff]
        %v270 = vld [vmem:[%s195 + $0xf8] sm:$0xff]
        %271 = vst.msk [vmem:[%s205 + $0x1] sm:$0xff] %vm196, %v239
        %272 = vst.msk [vmem:[%s205 + $0x9] sm:$0xff] %vm196, %v240
        %273 = vst.msk [vmem:[%s205 + $0x19] sm:$0xff] %vm196, %v241
        %274 = vst.msk [vmem:[%s205 + $0x21] sm:$0xff] %vm196, %v242
        %275 = vst.msk [vmem:[%s205 + $0x31] sm:$0xff] %vm196, %v243
        %276 = vst.msk [vmem:[%s205 + $0x39] sm:$0xff] %vm196, %v244
        %277 = vst.msk [vmem:[%s205 + $0x49] sm:$0xff] %vm196, %v245
        %278 = vst.msk [vmem:[%s205 + $0x51] sm:$0xff] %vm196, %v246
        %279 = vst.msk [vmem:[%s205 + $0x61] sm:$0xff] %vm196, %v247
        %280 = vst.msk [vmem:[%s205 + $0x69] sm:$0xff] %vm196, %v248
        %281 = vst.msk [vmem:[%s205 + $0x79] sm:$0xff] %vm196, %v249
        %282 = vst.msk [vmem:[%s205 + $0x81] sm:$0xff] %vm196, %v250
        %283 = vst.msk [vmem:[%s205 + $0x91] sm:$0xff] %vm196, %v251
        %284 = vst.msk [vmem:[%s205 + $0x99] sm:$0xff] %vm196, %v252
        %285 = vst.msk [vmem:[%s205 + $0xa9] sm:$0xff] %vm196, %v253
        %286 = vst.msk [vmem:[%s205 + $0xb1] sm:$0xff] %vm196, %v254
        %287 = vst.msk [vmem:[%s205 + $0xc1] sm:$0xff] %vm196, %v255
        %288 = vst.msk [vmem:[%s205 + $0xc9] sm:$0xff] %vm196, %v256
        %289 = vst.msk [vmem:[%s205 + $0xd9] sm:$0xff] %vm196, %v257
        %290 = vst.msk [vmem:[%s205 + $0xe1] sm:$0xff] %vm196, %v258
        %291 = vst.msk [vmem:[%s205 + $0xf1] sm:$0xff] %vm196, %v259
        %292 = vst.msk [vmem:[%s205 + $0xf9] sm:$0xff] %vm196, %v260
        %293 = vst.msk [vmem:[%s205 + $0x109] sm:$0xff] %vm196, %v261
        %294 = vst.msk [vmem:[%s205 + $0x111] sm:$0xff] %vm196, %v262
        %295 = vst.msk [vmem:[%s205 + $0x121] sm:$0xff] %vm196, %v263
        %296 = vst.msk [vmem:[%s205 + $0x129] sm:$0xff] %vm196, %v264
        %297 = vst.msk [vmem:[%s205 + $0x139] sm:$0xff] %vm196, %v265
        %298 = vst.msk [vmem:[%s205 + $0x141] sm:$0xff] %vm196, %v266
        %299 = vst.msk [vmem:[%s205 + $0x151] sm:$0xff] %vm196, %v267
        %300 = vst.msk [vmem:[%s205 + $0x159] sm:$0xff] %vm196, %v268
        %301 = vst.msk [vmem:[%s205 + $0x169] sm:$0xff] %vm196, %v269
        %302 = vst.msk [vmem:[%s205 + $0x171] sm:$0xff] %vm196, %v270
        %v303 = vld [vmem:[#allocation2] sm:$0xff]
        %v304 = vld [vmem:[#allocation2 + $0x8] sm:$0xff]
        %v305 = vld [vmem:[#allocation2 + $0x18] sm:$0xff]
        %v306 = vld [vmem:[#allocation2 + $0x20] sm:$0xff]
        %v307 = vld [vmem:[#allocation2 + $0x30] sm:$0xff]
        %v308 = vld [vmem:[#allocation2 + $0x38] sm:$0xff]
        %v309 = vld [vmem:[#allocation2 + $0x48] sm:$0xff]
        %v310 = vld [vmem:[#allocation2 + $0x50] sm:$0xff]
        %v311 = vld [vmem:[#allocation2 + $0x60] sm:$0xff]
        %v312 = vld [vmem:[#allocation2 + $0x68] sm:$0xff]
        %v313 = vld [vmem:[#allocation2 + $0x78] sm:$0xff]
        %v314 = vld [vmem:[#allocation2 + $0x80] sm:$0xff]
        %v315 = vld [vmem:[#allocation2 + $0x90] sm:$0xff]
        %v316 = vld [vmem:[#allocation2 + $0x98] sm:$0xff]
        %v317 = vld [vmem:[#allocation2 + $0xa8] sm:$0xff]
        %v318 = vld [vmem:[#allocation2 + $0xb0] sm:$0xff]
        %v319 = vld [vmem:[#allocation2 + $0xc0] sm:$0xff]
        %v320 = vld [vmem:[#allocation2 + $0xc8] sm:$0xff]
        %v321 = vld [vmem:[#allocation2 + $0xd8] sm:$0xff]
        %v322 = vld [vmem:[#allocation2 + $0xe0] sm:$0xff]
        %v323 = vld [vmem:[#allocation2 + $0xf0] sm:$0xff]
        %v324 = vld [vmem:[#allocation2 + $0xf8] sm:$0xff]
        %v325 = vld [vmem:[#allocation2 + $0x108] sm:$0xff]
        %v326 = vld [vmem:[#allocation2 + $0x110] sm:$0xff]
        %v327 = vld [vmem:[#allocation2 + $0x120] sm:$0xff]
        %v328 = vld [vmem:[#allocation2 + $0x128] sm:$0xff]
        %v329 = vld [vmem:[#allocation2 + $0x138] sm:$0xff]
        %v330 = vld [vmem:[#allocation2 + $0x140] sm:$0xff]
        %v331 = vld [vmem:[#allocation2 + $0x150] sm:$0xff]
        %v332 = vld [vmem:[#allocation2 + $0x158] sm:$0xff]
        %v333 = vld [vmem:[#allocation2 + $0x168] sm:$0xff]
        %v334 = vld [vmem:[#allocation2 + $0x170] sm:$0xff]
        %v335 = vld [vmem:[#allocation2 + $0x1] sm:$0xff]
        %v336 = vld [vmem:[#allocation2 + $0x9] sm:$0xff]
        %v337 = vld [vmem:[#allocation2 + $0x19] sm:$0xff]
        %v338 = vld [vmem:[#allocation2 + $0x21] sm:$0xff]
        %v339 = vld [vmem:[#allocation2 + $0x31] sm:$0xff]
        %v340 = vld [vmem:[#allocation2 + $0x39] sm:$0xff]
        %v341 = vld [vmem:[#allocation2 + $0x49] sm:$0xff]
        %v342 = vld [vmem:[#allocation2 + $0x51] sm:$0xff]
        %v343 = vld [vmem:[#allocation2 + $0x61] sm:$0xff]
        %v344 = vld [vmem:[#allocation2 + $0x69] sm:$0xff]
        %v345 = vld [vmem:[#allocation2 + $0x79] sm:$0xff]
        %v346 = vld [vmem:[#allocation2 + $0x81] sm:$0xff]
        %v347 = vld [vmem:[#allocation2 + $0x91] sm:$0xff]
        %v348 = vld [vmem:[#allocation2 + $0x99] sm:$0xff]
        %v349 = vld [vmem:[#allocation2 + $0xa9] sm:$0xff]
        %v350 = vld [vmem:[#allocation2 + $0xb1] sm:$0xff]
        %v351 = vld [vmem:[#allocation2 + $0xc1] sm:$0xff]
        %v352 = vld [vmem:[#allocation2 + $0xc9] sm:$0xff]
        %v353 = vld [vmem:[#allocation2 + $0xd9] sm:$0xff]
        %v354 = vld [vmem:[#allocation2 + $0xe1] sm:$0xff]
        %v355 = vld [vmem:[#allocation2 + $0xf1] sm:$0xff]
        %v356 = vld [vmem:[#allocation2 + $0xf9] sm:$0xff]
        %v357 = vld [vmem:[#allocation2 + $0x109] sm:$0xff]
        %v358 = vld [vmem:[#allocation2 + $0x111] sm:$0xff]
        %v359 = vld [vmem:[#allocation2 + $0x121] sm:$0xff]
        %v360 = vld [vmem:[#allocation2 + $0x129] sm:$0xff]
        %v361 = vld [vmem:[#allocation2 + $0x139] sm:$0xff]
        %v362 = vld [vmem:[#allocation2 + $0x141] sm:$0xff]
        %v363 = vld [vmem:[#allocation2 + $0x151] sm:$0xff]
        %v364 = vld [vmem:[#allocation2 + $0x159] sm:$0xff]
        %v365 = vld [vmem:[#allocation2 + $0x169] sm:$0xff]
        %v366 = vld [vmem:[#allocation2 + $0x171] sm:$0xff]
        %v367 = vld [vmem:[#allocation2 + $0x2] sm:$0xff]
        %v368 = vld [vmem:[#allocation2 + $0xa] sm:$0xff]
        %v369 = vld [vmem:[#allocation2 + $0x1a] sm:$0xff]
        %v370 = vld [vmem:[#allocation2 + $0x22] sm:$0xff]
        %v371 = vld [vmem:[#allocation2 + $0x32] sm:$0xff]
        %v372 = vld [vmem:[#allocation2 + $0x3a] sm:$0xff]
        %v373 = vld [vmem:[#allocation2 + $0x4a] sm:$0xff]
        %v374 = vld [vmem:[#allocation2 + $0x52] sm:$0xff]
        %v375 = vld [vmem:[#allocation2 + $0x62] sm:$0xff]
        %v376 = vld [vmem:[#allocation2 + $0x6a] sm:$0xff]
        %v377 = vld [vmem:[#allocation2 + $0x7a] sm:$0xff]
        %v378 = vld [vmem:[#allocation2 + $0x82] sm:$0xff]
        %v379 = vld [vmem:[#allocation2 + $0x92] sm:$0xff]
        %v380 = vld [vmem:[#allocation2 + $0x9a] sm:$0xff]
        %v381 = vld [vmem:[#allocation2 + $0xaa] sm:$0xff]
        %v382 = vld [vmem:[#allocation2 + $0xb2] sm:$0xff]
        %v383 = vld [vmem:[#allocation2 + $0xc2] sm:$0xff]
        %v384 = vld [vmem:[#allocation2 + $0xca] sm:$0xff]
        %v385 = vld [vmem:[#allocation2 + $0xda] sm:$0xff]
        %v386 = vld [vmem:[#allocation2 + $0xe2] sm:$0xff]
        %v387 = vld [vmem:[#allocation2 + $0xf2] sm:$0xff]
        %v388 = vld [vmem:[#allocation2 + $0xfa] sm:$0xff]
        %v389 = vld [vmem:[#allocation2 + $0x10a] sm:$0xff]
        %v390 = vld [vmem:[#allocation2 + $0x112] sm:$0xff]
        %v391 = vld [vmem:[#allocation2 + $0x122] sm:$0xff]
        %v392 = vld [vmem:[#allocation2 + $0x12a] sm:$0xff]
        %v393 = vld [vmem:[#allocation2 + $0x13a] sm:$0xff]
        %v394 = vld [vmem:[#allocation2 + $0x142] sm:$0xff]
        %v395 = vld [vmem:[#allocation2 + $0x152] sm:$0xff]
        %v396 = vld [vmem:[#allocation2 + $0x15a] sm:$0xff]
        %v397 = vld [vmem:[#allocation2 + $0x16a] sm:$0xff]
        %v398 = vld [vmem:[#allocation2 + $0x172] sm:$0xff]
        %v399 = vld [vmem:[%s205] sm:$0xff]
        %v400 = vld [vmem:[%s205 + $0x8] sm:$0xff]
        %v401 = vld [vmem:[%s205 + $0x18] sm:$0xff]
        %v402 = vld [vmem:[%s205 + $0x20] sm:$0xff]
        %v403 = vld [vmem:[%s205 + $0x30] sm:$0xff]
        %v404 = vld [vmem:[%s205 + $0x38] sm:$0xff]
        %v405 = vld [vmem:[%s205 + $0x48] sm:$0xff]
        %v406 = vld [vmem:[%s205 + $0x50] sm:$0xff]
        %v407 = vld [vmem:[%s205 + $0x60] sm:$0xff]
        %v408 = vld [vmem:[%s205 + $0x68] sm:$0xff]
        %v409 = vld [vmem:[%s205 + $0x78] sm:$0xff]
        %v410 = vld [vmem:[%s205 + $0x80] sm:$0xff]
        %v411 = vld [vmem:[%s205 + $0x90] sm:$0xff]
        %v412 = vld [vmem:[%s205 + $0x98] sm:$0xff]
        %v413 = vld [vmem:[%s205 + $0xa8] sm:$0xff]
        %v414 = vld [vmem:[%s205 + $0xb0] sm:$0xff]
        %v415 = vld [vmem:[%s205 + $0xc0] sm:$0xff]
        %v416 = vld [vmem:[%s205 + $0xc8] sm:$0xff]
        %v417 = vld [vmem:[%s205 + $0xd8] sm:$0xff]
        %v418 = vld [vmem:[%s205 + $0xe0] sm:$0xff]
        %v419 = vld [vmem:[%s205 + $0xf0] sm:$0xff]
        %v420 = vld [vmem:[%s205 + $0xf8] sm:$0xff]
        %v421 = vld [vmem:[%s205 + $0x108] sm:$0xff]
        %v422 = vld [vmem:[%s205 + $0x110] sm:$0xff]
        %v423 = vld [vmem:[%s205 + $0x120] sm:$0xff]
        %v424 = vld [vmem:[%s205 + $0x128] sm:$0xff]
        %v425 = vld [vmem:[%s205 + $0x138] sm:$0xff]
        %v426 = vld [vmem:[%s205 + $0x140] sm:$0xff]
        %v427 = vld [vmem:[%s205 + $0x150] sm:$0xff]
        %v428 = vld [vmem:[%s205 + $0x158] sm:$0xff]
        %v429 = vld [vmem:[%s205 + $0x168] sm:$0xff]
        %v430 = vld [vmem:[%s205 + $0x170] sm:$0xff]
        %v431 = vld [vmem:[%s205 + $0x1] sm:$0xff]
        %v432 = vld [vmem:[%s205 + $0x9] sm:$0xff]
        %v433 = vld [vmem:[%s205 + $0x19] sm:$0xff]
        %v434 = vld [vmem:[%s205 + $0x21] sm:$0xff]
        %v435 = vld [vmem:[%s205 + $0x31] sm:$0xff]
        %v436 = vld [vmem:[%s205 + $0x39] sm:$0xff]
        %v437 = vld [vmem:[%s205 + $0x49] sm:$0xff]
        %v438 = vld [vmem:[%s205 + $0x51] sm:$0xff]
        %v439 = vld [vmem:[%s205 + $0x61] sm:$0xff]
        %v440 = vld [vmem:[%s205 + $0x69] sm:$0xff]
        %v441 = vld [vmem:[%s205 + $0x79] sm:$0xff]
        %v442 = vld [vmem:[%s205 + $0x81] sm:$0xff]
        %v443 = vld [vmem:[%s205 + $0x91] sm:$0xff]
        %v444 = vld [vmem:[%s205 + $0x99] sm:$0xff]
        %v445 = vld [vmem:[%s205 + $0xa9] sm:$0xff]
        %v446 = vld [vmem:[%s205 + $0xb1] sm:$0xff]
        %v447 = vld [vmem:[%s205 + $0xc1] sm:$0xff]
        %v448 = vld [vmem:[%s205 + $0xc9] sm:$0xff]
        %v449 = vld [vmem:[%s205 + $0xd9] sm:$0xff]
        %v450 = vld [vmem:[%s205 + $0xe1] sm:$0xff]
        %v451 = vld [vmem:[%s205 + $0xf1] sm:$0xff]
        %v452 = vld [vmem:[%s205 + $0xf9] sm:$0xff]
        %v453 = vld [vmem:[%s205 + $0x109] sm:$0xff]
        %v454 = vld [vmem:[%s205 + $0x111] sm:$0xff]
        %v455 = vld [vmem:[%s205 + $0x121] sm:$0xff]
        %v456 = vld [vmem:[%s205 + $0x129] sm:$0xff]
        %v457 = vld [vmem:[%s205 + $0x139] sm:$0xff]
        %v458 = vld [vmem:[%s205 + $0x141] sm:$0xff]
        %v459 = vld [vmem:[%s205 + $0x151] sm:$0xff]
        %v460 = vld [vmem:[%s205 + $0x159] sm:$0xff]
        %v461 = vld [vmem:[%s205 + $0x169] sm:$0xff]
        %v462 = vld [vmem:[%s205 + $0x171] sm:$0xff]
        %v463 = vld [vmem:[%s205 + $0x2] sm:$0xff]
        %v464 = vld [vmem:[%s205 + $0xa] sm:$0xff]
        %v465 = vld [vmem:[%s205 + $0x1a] sm:$0xff]
        %v466 = vld [vmem:[%s205 + $0x22] sm:$0xff]
        %v467 = vld [vmem:[%s205 + $0x32] sm:$0xff]
        %v468 = vld [vmem:[%s205 + $0x3a] sm:$0xff]
        %v469 = vld [vmem:[%s205 + $0x4a] sm:$0xff]
        %v470 = vld [vmem:[%s205 + $0x52] sm:$0xff]
        %v471 = vld [vmem:[%s205 + $0x62] sm:$0xff]
        %v472 = vld [vmem:[%s205 + $0x6a] sm:$0xff]
        %v473 = vld [vmem:[%s205 + $0x7a] sm:$0xff]
        %v474 = vld [vmem:[%s205 + $0x82] sm:$0xff]
        %v475 = vld [vmem:[%s205 + $0x92] sm:$0xff]
        %v476 = vld [vmem:[%s205 + $0x9a] sm:$0xff]
        %v477 = vld [vmem:[%s205 + $0xaa] sm:$0xff]
        %v478 = vld [vmem:[%s205 + $0xb2] sm:$0xff]
        %v479 = vld [vmem:[%s205 + $0xc2] sm:$0xff]
        %v480 = vld [vmem:[%s205 + $0xca] sm:$0xff]
        %v481 = vld [vmem:[%s205 + $0xda] sm:$0xff]
        %v482 = vld [vmem:[%s205 + $0xe2] sm:$0xff]
        %v483 = vld [vmem:[%s205 + $0xf2] sm:$0xff]
        %v484 = vld [vmem:[%s205 + $0xfa] sm:$0xff]
        %v485 = vld [vmem:[%s205 + $0x10a] sm:$0xff]
        %v486 = vld [vmem:[%s205 + $0x112] sm:$0xff]
        %v487 = vld [vmem:[%s205 + $0x122] sm:$0xff]
        %v488 = vld [vmem:[%s205 + $0x12a] sm:$0xff]
        %v489 = vld [vmem:[%s205 + $0x13a] sm:$0xff]
        %v490 = vld [vmem:[%s205 + $0x142] sm:$0xff]
        %v491 = vld [vmem:[%s205 + $0x152] sm:$0xff]
        %v492 = vld [vmem:[%s205 + $0x15a] sm:$0xff]
        %v493 = vld [vmem:[%s205 + $0x16a] sm:$0xff]
        %v494 = vld [vmem:[%s205 + $0x172] sm:$0xff]
        %s495 = scalar_lea.vmem [#allocation2], 48
        %v496 = vld [vmem:[%s495] sm:$0xff]
        %v497 = vld [vmem:[%s495 + $0x8] sm:$0xff]
        %v498 = vld [vmem:[%s495 + $0x18] sm:$0xff]
        %v499 = vld [vmem:[%s495 + $0x20] sm:$0xff]
        %v500 = vld [vmem:[%s495 + $0x30] sm:$0xff]
        %v501 = vld [vmem:[%s495 + $0x38] sm:$0xff]
        %v502 = vld [vmem:[%s495 + $0x48] sm:$0xff]
        %v503 = vld [vmem:[%s495 + $0x50] sm:$0xff]
        %v504 = vld [vmem:[%s495 + $0x60] sm:$0xff]
        %v505 = vld [vmem:[%s495 + $0x68] sm:$0xff]
        %v506 = vld [vmem:[%s495 + $0x78] sm:$0xff]
        %v507 = vld [vmem:[%s495 + $0x80] sm:$0xff]
        %v508 = vld [vmem:[%s495 + $0x90] sm:$0xff]
        %v509 = vld [vmem:[%s495 + $0x98] sm:$0xff]
        %v510 = vld [vmem:[%s495 + $0xa8] sm:$0xff]
        %v511 = vld [vmem:[%s495 + $0xb0] sm:$0xff]
        %v512 = vld [vmem:[%s495 + $0xc0] sm:$0xff]
        %v513 = vld [vmem:[%s495 + $0xc8] sm:$0xff]
        %v514 = vld [vmem:[%s495 + $0xd8] sm:$0xff]
        %v515 = vld [vmem:[%s495 + $0xe0] sm:$0xff]
        %v516 = vld [vmem:[%s495 + $0xf0] sm:$0xff]
        %v517 = vld [vmem:[%s495 + $0xf8] sm:$0xff]
        %v518 = vld [vmem:[%s495 + $0x108] sm:$0xff]
        %v519 = vld [vmem:[%s495 + $0x110] sm:$0xff]
        %v520 = vld [vmem:[%s495 + $0x120] sm:$0xff]
        %v521 = vld [vmem:[%s495 + $0x128] sm:$0xff]
        %v522 = vld [vmem:[%s495 + $0x138] sm:$0xff]
        %v523 = vld [vmem:[%s495 + $0x140] sm:$0xff]
        %v524 = vld [vmem:[%s495 + $0x150] sm:$0xff]
        %v525 = vld [vmem:[%s495 + $0x158] sm:$0xff]
        %v526 = vld [vmem:[%s495 + $0x168] sm:$0xff]
        %v527 = vld [vmem:[%s495 + $0x170] sm:$0xff]
        %v528 = vld [vmem:[%s495 + $0x1] sm:$0xff]
        %v529 = vld [vmem:[%s495 + $0x9] sm:$0xff]
        %v530 = vld [vmem:[%s495 + $0x19] sm:$0xff]
        %v531 = vld [vmem:[%s495 + $0x21] sm:$0xff]
        %v532 = vld [vmem:[%s495 + $0x31] sm:$0xff]
        %v533 = vld [vmem:[%s495 + $0x39] sm:$0xff]
        %v534 = vld [vmem:[%s495 + $0x49] sm:$0xff]
        %v535 = vld [vmem:[%s495 + $0x51] sm:$0xff]
        %v536 = vld [vmem:[%s495 + $0x61] sm:$0xff]
        %v537 = vld [vmem:[%s495 + $0x69] sm:$0xff]
        %v538 = vld [vmem:[%s495 + $0x79] sm:$0xff]
        %v539 = vld [vmem:[%s495 + $0x81] sm:$0xff]
        %v540 = vld [vmem:[%s495 + $0x91] sm:$0xff]
        %v541 = vld [vmem:[%s495 + $0x99] sm:$0xff]
        %v542 = vld [vmem:[%s495 + $0xa9] sm:$0xff]
        %v543 = vld [vmem:[%s495 + $0xb1] sm:$0xff]
        %v544 = vld [vmem:[%s495 + $0xc1] sm:$0xff]
        %v545 = vld [vmem:[%s495 + $0xc9] sm:$0xff]
        %v546 = vld [vmem:[%s495 + $0xd9] sm:$0xff]
        %v547 = vld [vmem:[%s495 + $0xe1] sm:$0xff]
        %v548 = vld [vmem:[%s495 + $0xf1] sm:$0xff]
        %v549 = vld [vmem:[%s495 + $0xf9] sm:$0xff]
        %v550 = vld [vmem:[%s495 + $0x109] sm:$0xff]
        %v551 = vld [vmem:[%s495 + $0x111] sm:$0xff]
        %v552 = vld [vmem:[%s495 + $0x121] sm:$0xff]
        %v553 = vld [vmem:[%s495 + $0x129] sm:$0xff]
        %v554 = vld [vmem:[%s495 + $0x139] sm:$0xff]
        %v555 = vld [vmem:[%s495 + $0x141] sm:$0xff]
        %v556 = vld [vmem:[%s495 + $0x151] sm:$0xff]
        %v557 = vld [vmem:[%s495 + $0x159] sm:$0xff]
        %v558 = vld [vmem:[%s495 + $0x169] sm:$0xff]
        %v559 = vld [vmem:[%s495 + $0x171] sm:$0xff]
        %v560 = vld [vmem:[%s495 + $0x2] sm:$0xff]
        %v561 = vld [vmem:[%s495 + $0xa] sm:$0xff]
        %v562 = vld [vmem:[%s495 + $0x1a] sm:$0xff]
        %v563 = vld [vmem:[%s495 + $0x22] sm:$0xff]
        %v564 = vld [vmem:[%s495 + $0x32] sm:$0xff]
        %v565 = vld [vmem:[%s495 + $0x3a] sm:$0xff]
        %v566 = vld [vmem:[%s495 + $0x4a] sm:$0xff]
        %v567 = vld [vmem:[%s495 + $0x52] sm:$0xff]
        %v568 = vld [vmem:[%s495 + $0x62] sm:$0xff]
        %v569 = vld [vmem:[%s495 + $0x6a] sm:$0xff]
        %v570 = vld [vmem:[%s495 + $0x7a] sm:$0xff]
        %v571 = vld [vmem:[%s495 + $0x82] sm:$0xff]
        %v572 = vld [vmem:[%s495 + $0x92] sm:$0xff]
        %v573 = vld [vmem:[%s495 + $0x9a] sm:$0xff]
        %v574 = vld [vmem:[%s495 + $0xaa] sm:$0xff]
        %v575 = vld [vmem:[%s495 + $0xb2] sm:$0xff]
        %v576 = vld [vmem:[%s495 + $0xc2] sm:$0xff]
        %v577 = vld [vmem:[%s495 + $0xca] sm:$0xff]
        %v578 = vld [vmem:[%s495 + $0xda] sm:$0xff]
        %v579 = vld [vmem:[%s495 + $0xe2] sm:$0xff]
        %v580 = vld [vmem:[%s495 + $0xf2] sm:$0xff]
        %v581 = vld [vmem:[%s495 + $0xfa] sm:$0xff]
        %v582 = vld [vmem:[%s495 + $0x10a] sm:$0xff]
        %v583 = vld [vmem:[%s495 + $0x112] sm:$0xff]
        %v584 = vld [vmem:[%s495 + $0x122] sm:$0xff]
        %v585 = vld [vmem:[%s495 + $0x12a] sm:$0xff]
        %v586 = vld [vmem:[%s495 + $0x13a] sm:$0xff]
        %v587 = vld [vmem:[%s495 + $0x142] sm:$0xff]
        %v588 = vld [vmem:[%s495 + $0x152] sm:$0xff]
        %v589 = vld [vmem:[%s495 + $0x15a] sm:$0xff]
        %v590 = vld [vmem:[%s495 + $0x16a] sm:$0xff]
        %v591 = vld [vmem:[%s495 + $0x172] sm:$0xff]
        %624 = vrot.lane.b32.xlu0 %v335, 4
        %v625 = vpop.permute.xlu0 %624
        %626 = vrot.lane.b32.xlu0 %v336, 4
        %v627 = vpop.permute.xlu0 %626
        %628 = vrot.lane.b32.xlu0 %v337, 4
        %v629 = vpop.permute.xlu0 %628
        %630 = vrot.lane.b32.xlu0 %v338, 4
        %v631 = vpop.permute.xlu0 %630
        %632 = vrot.lane.b32.xlu0 %v339, 4
        %v633 = vpop.permute.xlu0 %632
        %634 = vrot.lane.b32.xlu0 %v340, 4
        %v635 = vpop.permute.xlu0 %634
        %636 = vrot.lane.b32.xlu0 %v341, 4
        %v637 = vpop.permute.xlu0 %636
        %638 = vrot.lane.b32.xlu0 %v342, 4
        %v639 = vpop.permute.xlu0 %638
        %640 = vrot.lane.b32.xlu0 %v343, 4
        %v641 = vpop.permute.xlu0 %640
        %642 = vrot.lane.b32.xlu0 %v344, 4
        %v643 = vpop.permute.xlu0 %642
        %644 = vrot.lane.b32.xlu0 %v345, 4
        %v645 = vpop.permute.xlu0 %644
        %646 = vrot.lane.b32.xlu0 %v346, 4
        %v647 = vpop.permute.xlu0 %646
        %648 = vrot.lane.b32.xlu0 %v347, 4
        %v649 = vpop.permute.xlu0 %648
        %650 = vrot.lane.b32.xlu0 %v348, 4
        %v651 = vpop.permute.xlu0 %650
        %652 = vrot.lane.b32.xlu0 %v349, 4
        %v653 = vpop.permute.xlu0 %652
        %654 = vrot.lane.b32.xlu0 %v350, 4
        %v655 = vpop.permute.xlu0 %654
        %656 = vrot.lane.b32.xlu0 %v351, 4
        %v657 = vpop.permute.xlu0 %656
        %658 = vrot.lane.b32.xlu0 %v352, 4
        %v659 = vpop.permute.xlu0 %658
        %660 = vrot.lane.b32.xlu0 %v353, 4
        %v661 = vpop.permute.xlu0 %660
        %662 = vrot.lane.b32.xlu0 %v354, 4
        %v663 = vpop.permute.xlu0 %662
        %664 = vrot.lane.b32.xlu0 %v355, 4
        %v665 = vpop.permute.xlu0 %664
        %666 = vrot.lane.b32.xlu0 %v356, 4
        %v667 = vpop.permute.xlu0 %666
        %668 = vrot.lane.b32.xlu0 %v357, 4
        %v669 = vpop.permute.xlu0 %668
        %670 = vrot.lane.b32.xlu0 %v358, 4
        %v671 = vpop.permute.xlu0 %670
        %672 = vrot.lane.b32.xlu0 %v359, 4
        %v673 = vpop.permute.xlu0 %672
        %674 = vrot.lane.b32.xlu0 %v360, 4
        %v675 = vpop.permute.xlu0 %674
        %676 = vrot.lane.b32.xlu0 %v361, 4
        %v677 = vpop.permute.xlu0 %676
        %678 = vrot.lane.b32.xlu0 %v362, 4
        %v679 = vpop.permute.xlu0 %678
        %680 = vrot.lane.b32.xlu0 %v363, 4
        %v681 = vpop.permute.xlu0 %680
        %682 = vrot.lane.b32.xlu0 %v364, 4
        %v683 = vpop.permute.xlu0 %682
        %684 = vrot.lane.b32.xlu0 %v365, 4
        %v685 = vpop.permute.xlu0 %684
        %686 = vrot.lane.b32.xlu0 %v366, 4
        %v687 = vpop.permute.xlu0 %686
        %752 = vrot.lane.b32.xlu0 %v367, 8
        %v753 = vpop.permute.xlu0 %752
        %754 = vrot.lane.b32.xlu0 %v368, 8
        %v755 = vpop.permute.xlu0 %754
        %756 = vrot.lane.b32.xlu0 %v369, 8
        %v757 = vpop.permute.xlu0 %756
        %758 = vrot.lane.b32.xlu0 %v370, 8
        %v759 = vpop.permute.xlu0 %758
        %760 = vrot.lane.b32.xlu0 %v371, 8
        %v761 = vpop.permute.xlu0 %760
        %762 = vrot.lane.b32.xlu0 %v372, 8
        %v763 = vpop.permute.xlu0 %762
        %764 = vrot.lane.b32.xlu0 %v373, 8
        %v765 = vpop.permute.xlu0 %764
        %766 = vrot.lane.b32.xlu0 %v374, 8
        %v767 = vpop.permute.xlu0 %766
        %768 = vrot.lane.b32.xlu0 %v375, 8
        %v769 = vpop.permute.xlu0 %768
        %770 = vrot.lane.b32.xlu0 %v376, 8
        %v771 = vpop.permute.xlu0 %770
        %772 = vrot.lane.b32.xlu0 %v377, 8
        %v773 = vpop.permute.xlu0 %772
        %774 = vrot.lane.b32.xlu0 %v378, 8
        %v775 = vpop.permute.xlu0 %774
        %776 = vrot.lane.b32.xlu0 %v379, 8
        %v777 = vpop.permute.xlu0 %776
        %778 = vrot.lane.b32.xlu0 %v380, 8
        %v779 = vpop.permute.xlu0 %778
        %780 = vrot.lane.b32.xlu0 %v381, 8
        %v781 = vpop.permute.xlu0 %780
        %782 = vrot.lane.b32.xlu0 %v382, 8
        %v783 = vpop.permute.xlu0 %782
        %784 = vrot.lane.b32.xlu0 %v383, 8
        %v785 = vpop.permute.xlu0 %784
        %786 = vrot.lane.b32.xlu0 %v384, 8
        %v787 = vpop.permute.xlu0 %786
        %788 = vrot.lane.b32.xlu0 %v385, 8
        %v789 = vpop.permute.xlu0 %788
        %790 = vrot.lane.b32.xlu0 %v386, 8
        %v791 = vpop.permute.xlu0 %790
        %792 = vrot.lane.b32.xlu0 %v387, 8
        %v793 = vpop.permute.xlu0 %792
        %794 = vrot.lane.b32.xlu0 %v388, 8
        %v795 = vpop.permute.xlu0 %794
        %796 = vrot.lane.b32.xlu0 %v389, 8
        %v797 = vpop.permute.xlu0 %796
        %798 = vrot.lane.b32.xlu0 %v390, 8
        %v799 = vpop.permute.xlu0 %798
        %800 = vrot.lane.b32.xlu0 %v391, 8
        %v801 = vpop.permute.xlu0 %800
        %802 = vrot.lane.b32.xlu0 %v392, 8
        %v803 = vpop.permute.xlu0 %802
        %804 = vrot.lane.b32.xlu0 %v393, 8
        %v805 = vpop.permute.xlu0 %804
        %806 = vrot.lane.b32.xlu0 %v394, 8
        %v807 = vpop.permute.xlu0 %806
        %808 = vrot.lane.b32.xlu0 %v395, 8
        %v809 = vpop.permute.xlu0 %808
        %810 = vrot.lane.b32.xlu0 %v396, 8
        %v811 = vpop.permute.xlu0 %810
        %812 = vrot.lane.b32.xlu0 %v397, 8
        %v813 = vpop.permute.xlu0 %812
        %814 = vrot.lane.b32.xlu0 %v398, 8
        %v815 = vpop.permute.xlu0 %814
        %880 = vrot.lane.b32.xlu0 %v399, 12
        %v881 = vpop.permute.xlu0 %880
        %882 = vrot.lane.b32.xlu0 %v400, 12
        %v883 = vpop.permute.xlu0 %882
        %884 = vrot.lane.b32.xlu0 %v401, 12
        %v885 = vpop.permute.xlu0 %884
        %886 = vrot.lane.b32.xlu0 %v402, 12
        %v887 = vpop.permute.xlu0 %886
        %888 = vrot.lane.b32.xlu0 %v403, 12
        %v889 = vpop.permute.xlu0 %888
        %890 = vrot.lane.b32.xlu0 %v404, 12
        %v891 = vpop.permute.xlu0 %890
        %892 = vrot.lane.b32.xlu0 %v405, 12
        %v893 = vpop.permute.xlu0 %892
        %894 = vrot.lane.b32.xlu0 %v406, 12
        %v895 = vpop.permute.xlu0 %894
        %896 = vrot.lane.b32.xlu0 %v407, 12
        %v897 = vpop.permute.xlu0 %896
        %898 = vrot.lane.b32.xlu0 %v408, 12
        %v899 = vpop.permute.xlu0 %898
        %900 = vrot.lane.b32.xlu0 %v409, 12
        %v901 = vpop.permute.xlu0 %900
        %902 = vrot.lane.b32.xlu0 %v410, 12
        %v903 = vpop.permute.xlu0 %902
        %904 = vrot.lane.b32.xlu0 %v411, 12
        %v905 = vpop.permute.xlu0 %904
        %906 = vrot.lane.b32.xlu0 %v412, 12
        %v907 = vpop.permute.xlu0 %906
        %908 = vrot.lane.b32.xlu0 %v413, 12
        %v909 = vpop.permute.xlu0 %908
        %910 = vrot.lane.b32.xlu0 %v414, 12
        %v911 = vpop.permute.xlu0 %910
        %912 = vrot.lane.b32.xlu0 %v415, 12
        %v913 = vpop.permute.xlu0 %912
        %914 = vrot.lane.b32.xlu0 %v416, 12
        %v915 = vpop.permute.xlu0 %914
        %916 = vrot.lane.b32.xlu0 %v417, 12
        %v917 = vpop.permute.xlu0 %916
        %918 = vrot.lane.b32.xlu0 %v418, 12
        %v919 = vpop.permute.xlu0 %918
        %920 = vrot.lane.b32.xlu0 %v419, 12
        %v921 = vpop.permute.xlu0 %920
        %922 = vrot.lane.b32.xlu0 %v420, 12
        %v923 = vpop.permute.xlu0 %922
        %924 = vrot.lane.b32.xlu0 %v421, 12
        %v925 = vpop.permute.xlu0 %924
        %926 = vrot.lane.b32.xlu0 %v422, 12
        %v927 = vpop.permute.xlu0 %926
        %928 = vrot.lane.b32.xlu0 %v423, 12
        %v929 = vpop.permute.xlu0 %928
        %930 = vrot.lane.b32.xlu0 %v424, 12
        %v931 = vpop.permute.xlu0 %930
        %932 = vrot.lane.b32.xlu0 %v425, 12
        %v933 = vpop.permute.xlu0 %932
        %934 = vrot.lane.b32.xlu0 %v426, 12
        %v935 = vpop.permute.xlu0 %934
        %936 = vrot.lane.b32.xlu0 %v427, 12
        %v937 = vpop.permute.xlu0 %936
        %938 = vrot.lane.b32.xlu0 %v428, 12
        %v939 = vpop.permute.xlu0 %938
        %940 = vrot.lane.b32.xlu0 %v429, 12
        %v941 = vpop.permute.xlu0 %940
        %942 = vrot.lane.b32.xlu0 %v430, 12
        %v943 = vpop.permute.xlu0 %942
        %1008 = vrot.lane.b32.xlu0 %v431, 16
        %v1009 = vpop.permute.xlu0 %1008
        %1010 = vrot.lane.b32.xlu0 %v432, 16
        %v1011 = vpop.permute.xlu0 %1010
        %1012 = vrot.lane.b32.xlu0 %v433, 16
        %v1013 = vpop.permute.xlu0 %1012
        %1014 = vrot.lane.b32.xlu0 %v434, 16
        %v1015 = vpop.permute.xlu0 %1014
        %1016 = vrot.lane.b32.xlu0 %v435, 16
        %v1017 = vpop.permute.xlu0 %1016
        %1018 = vrot.lane.b32.xlu0 %v436, 16
        %v1019 = vpop.permute.xlu0 %1018
        %1020 = vrot.lane.b32.xlu0 %v437, 16
        %v1021 = vpop.permute.xlu0 %1020
        %1022 = vrot.lane.b32.xlu0 %v438, 16
        %v1023 = vpop.permute.xlu0 %1022
        %1024 = vrot.lane.b32.xlu0 %v439, 16
        %v1025 = vpop.permute.xlu0 %1024
        %1026 = vrot.lane.b32.xlu0 %v440, 16
        %v1027 = vpop.permute.xlu0 %1026
        %1028 = vrot.lane.b32.xlu0 %v441, 16
        %v1029 = vpop.permute.xlu0 %1028
        %1030 = vrot.lane.b32.xlu0 %v442, 16
        %v1031 = vpop.permute.xlu0 %1030
        %1032 = vrot.lane.b32.xlu0 %v443, 16
        %v1033 = vpop.permute.xlu0 %1032
        %1034 = vrot.lane.b32.xlu0 %v444, 16
        %v1035 = vpop.permute.xlu0 %1034
        %1036 = vrot.lane.b32.xlu0 %v445, 16
        %v1037 = vpop.permute.xlu0 %1036
        %1038 = vrot.lane.b32.xlu0 %v446, 16
        %v1039 = vpop.permute.xlu0 %1038
        %1040 = vrot.lane.b32.xlu0 %v447, 16
        %v1041 = vpop.permute.xlu0 %1040
        %1042 = vrot.lane.b32.xlu0 %v448, 16
        %v1043 = vpop.permute.xlu0 %1042
        %1044 = vrot.lane.b32.xlu0 %v449, 16
        %v1045 = vpop.permute.xlu0 %1044
        %1046 = vrot.lane.b32.xlu0 %v450, 16
        %v1047 = vpop.permute.xlu0 %1046
        %1048 = vrot.lane.b32.xlu0 %v451, 16
        %v1049 = vpop.permute.xlu0 %1048
        %1050 = vrot.lane.b32.xlu0 %v452, 16
        %v1051 = vpop.permute.xlu0 %1050
        %1052 = vrot.lane.b32.xlu0 %v453, 16
        %v1053 = vpop.permute.xlu0 %1052
        %1054 = vrot.lane.b32.xlu0 %v454, 16
        %v1055 = vpop.permute.xlu0 %1054
        %1056 = vrot.lane.b32.xlu0 %v455, 16
        %v1057 = vpop.permute.xlu0 %1056
        %1058 = vrot.lane.b32.xlu0 %v456, 16
        %v1059 = vpop.permute.xlu0 %1058
        %1060 = vrot.lane.b32.xlu0 %v457, 16
        %v1061 = vpop.permute.xlu0 %1060
        %1062 = vrot.lane.b32.xlu0 %v458, 16
        %v1063 = vpop.permute.xlu0 %1062
        %1064 = vrot.lane.b32.xlu0 %v459, 16
        %v1065 = vpop.permute.xlu0 %1064
        %1066 = vrot.lane.b32.xlu0 %v460, 16
        %v1067 = vpop.permute.xlu0 %1066
        %1068 = vrot.lane.b32.xlu0 %v461, 16
        %v1069 = vpop.permute.xlu0 %1068
        %1070 = vrot.lane.b32.xlu0 %v462, 16
        %v1071 = vpop.permute.xlu0 %1070
        %1136 = vrot.lane.b32.xlu0 %v463, 20
        %v1137 = vpop.permute.xlu0 %1136
        %1138 = vrot.lane.b32.xlu0 %v464, 20
        %v1139 = vpop.permute.xlu0 %1138
        %1140 = vrot.lane.b32.xlu0 %v465, 20
        %v1141 = vpop.permute.xlu0 %1140
        %1142 = vrot.lane.b32.xlu0 %v466, 20
        %v1143 = vpop.permute.xlu0 %1142
        %1144 = vrot.lane.b32.xlu0 %v467, 20
        %v1145 = vpop.permute.xlu0 %1144
        %1146 = vrot.lane.b32.xlu0 %v468, 20
        %v1147 = vpop.permute.xlu0 %1146
        %1148 = vrot.lane.b32.xlu0 %v469, 20
        %v1149 = vpop.permute.xlu0 %1148
        %1150 = vrot.lane.b32.xlu0 %v470, 20
        %v1151 = vpop.permute.xlu0 %1150
        %1152 = vrot.lane.b32.xlu0 %v471, 20
        %v1153 = vpop.permute.xlu0 %1152
        %1154 = vrot.lane.b32.xlu0 %v472, 20
        %v1155 = vpop.permute.xlu0 %1154
        %1156 = vrot.lane.b32.xlu0 %v473, 20
        %v1157 = vpop.permute.xlu0 %1156
        %1158 = vrot.lane.b32.xlu0 %v474, 20
        %v1159 = vpop.permute.xlu0 %1158
        %1160 = vrot.lane.b32.xlu0 %v475, 20
        %v1161 = vpop.permute.xlu0 %1160
        %1162 = vrot.lane.b32.xlu0 %v476, 20
        %v1163 = vpop.permute.xlu0 %1162
        %1164 = vrot.lane.b32.xlu0 %v477, 20
        %v1165 = vpop.permute.xlu0 %1164
        %1166 = vrot.lane.b32.xlu0 %v478, 20
        %v1167 = vpop.permute.xlu0 %1166
        %1168 = vrot.lane.b32.xlu0 %v479, 20
        %v1169 = vpop.permute.xlu0 %1168
        %1170 = vrot.lane.b32.xlu0 %v480, 20
        %v1171 = vpop.permute.xlu0 %1170
        %1172 = vrot.lane.b32.xlu0 %v481, 20
        %v1173 = vpop.permute.xlu0 %1172
        %1174 = vrot.lane.b32.xlu0 %v482, 20
        %v1175 = vpop.permute.xlu0 %1174
        %1176 = vrot.lane.b32.xlu0 %v483, 20
        %v1177 = vpop.permute.xlu0 %1176
        %1178 = vrot.lane.b32.xlu0 %v484, 20
        %v1179 = vpop.permute.xlu0 %1178
        %1180 = vrot.lane.b32.xlu0 %v485, 20
        %v1181 = vpop.permute.xlu0 %1180
        %1182 = vrot.lane.b32.xlu0 %v486, 20
        %v1183 = vpop.permute.xlu0 %1182
        %1184 = vrot.lane.b32.xlu0 %v487, 20
        %v1185 = vpop.permute.xlu0 %1184
        %1186 = vrot.lane.b32.xlu0 %v488, 20
        %v1187 = vpop.permute.xlu0 %1186
        %1188 = vrot.lane.b32.xlu0 %v489, 20
        %v1189 = vpop.permute.xlu0 %1188
        %1190 = vrot.lane.b32.xlu0 %v490, 20
        %v1191 = vpop.permute.xlu0 %1190
        %1192 = vrot.lane.b32.xlu0 %v491, 20
        %v1193 = vpop.permute.xlu0 %1192
        %1194 = vrot.lane.b32.xlu0 %v492, 20
        %v1195 = vpop.permute.xlu0 %1194
        %1196 = vrot.lane.b32.xlu0 %v493, 20
        %v1197 = vpop.permute.xlu0 %1196
        %1198 = vrot.lane.b32.xlu0 %v494, 20
        %v1199 = vpop.permute.xlu0 %1198
        %1264 = vrot.lane.b32.xlu0 %v496, 24
        %v1265 = vpop.permute.xlu0 %1264
        %1266 = vrot.lane.b32.xlu0 %v497, 24
        %v1267 = vpop.permute.xlu0 %1266
        %1268 = vrot.lane.b32.xlu0 %v498, 24
        %v1269 = vpop.permute.xlu0 %1268
        %1270 = vrot.lane.b32.xlu0 %v499, 24
        %v1271 = vpop.permute.xlu0 %1270
        %1272 = vrot.lane.b32.xlu0 %v500, 24
        %v1273 = vpop.permute.xlu0 %1272
        %1274 = vrot.lane.b32.xlu0 %v501, 24
        %v1275 = vpop.permute.xlu0 %1274
        %1276 = vrot.lane.b32.xlu0 %v502, 24
        %v1277 = vpop.permute.xlu0 %1276
        %1278 = vrot.lane.b32.xlu0 %v503, 24
        %v1279 = vpop.permute.xlu0 %1278
        %1280 = vrot.lane.b32.xlu0 %v504, 24
        %v1281 = vpop.permute.xlu0 %1280
        %1282 = vrot.lane.b32.xlu0 %v505, 24
        %v1283 = vpop.permute.xlu0 %1282
        %1284 = vrot.lane.b32.xlu0 %v506, 24
        %v1285 = vpop.permute.xlu0 %1284
        %1286 = vrot.lane.b32.xlu0 %v507, 24
        %v1287 = vpop.permute.xlu0 %1286
        %1288 = vrot.lane.b32.xlu0 %v508, 24
        %v1289 = vpop.permute.xlu0 %1288
        %1290 = vrot.lane.b32.xlu0 %v509, 24
        %v1291 = vpop.permute.xlu0 %1290
        %1292 = vrot.lane.b32.xlu0 %v510, 24
        %v1293 = vpop.permute.xlu0 %1292
        %1294 = vrot.lane.b32.xlu0 %v511, 24
        %v1295 = vpop.permute.xlu0 %1294
        %1296 = vrot.lane.b32.xlu0 %v512, 24
        %v1297 = vpop.permute.xlu0 %1296
        %1298 = vrot.lane.b32.xlu0 %v513, 24
        %v1299 = vpop.permute.xlu0 %1298
        %1300 = vrot.lane.b32.xlu0 %v514, 24
        %v1301 = vpop.permute.xlu0 %1300
        %1302 = vrot.lane.b32.xlu0 %v515, 24
        %v1303 = vpop.permute.xlu0 %1302
        %1304 = vrot.lane.b32.xlu0 %v516, 24
        %v1305 = vpop.permute.xlu0 %1304
        %1306 = vrot.lane.b32.xlu0 %v517, 24
        %v1307 = vpop.permute.xlu0 %1306
        %1308 = vrot.lane.b32.xlu0 %v518, 24
        %v1309 = vpop.permute.xlu0 %1308
        %1310 = vrot.lane.b32.xlu0 %v519, 24
        %v1311 = vpop.permute.xlu0 %1310
        %1312 = vrot.lane.b32.xlu0 %v520, 24
        %v1313 = vpop.permute.xlu0 %1312
        %1314 = vrot.lane.b32.xlu0 %v521, 24
        %v1315 = vpop.permute.xlu0 %1314
        %1316 = vrot.lane.b32.xlu0 %v522, 24
        %v1317 = vpop.permute.xlu0 %1316
        %1318 = vrot.lane.b32.xlu0 %v523, 24
        %v1319 = vpop.permute.xlu0 %1318
        %1320 = vrot.lane.b32.xlu0 %v524, 24
        %v1321 = vpop.permute.xlu0 %1320
        %1322 = vrot.lane.b32.xlu0 %v525, 24
        %v1323 = vpop.permute.xlu0 %1322
        %1324 = vrot.lane.b32.xlu0 %v526, 24
        %v1325 = vpop.permute.xlu0 %1324
        %1326 = vrot.lane.b32.xlu0 %v527, 24
        %v1327 = vpop.permute.xlu0 %1326
        %1392 = vrot.lane.b32.xlu0 %v528, 28
        %v1393 = vpop.permute.xlu0 %1392
        %1394 = vrot.lane.b32.xlu0 %v529, 28
        %v1395 = vpop.permute.xlu0 %1394
        %1396 = vrot.lane.b32.xlu0 %v530, 28
        %v1397 = vpop.permute.xlu0 %1396
        %1398 = vrot.lane.b32.xlu0 %v531, 28
        %v1399 = vpop.permute.xlu0 %1398
        %1400 = vrot.lane.b32.xlu0 %v532, 28
        %v1401 = vpop.permute.xlu0 %1400
        %1402 = vrot.lane.b32.xlu0 %v533, 28
        %v1403 = vpop.permute.xlu0 %1402
        %1404 = vrot.lane.b32.xlu0 %v534, 28
        %v1405 = vpop.permute.xlu0 %1404
        %1406 = vrot.lane.b32.xlu0 %v535, 28
        %v1407 = vpop.permute.xlu0 %1406
        %1408 = vrot.lane.b32.xlu0 %v536, 28
        %v1409 = vpop.permute.xlu0 %1408
        %1410 = vrot.lane.b32.xlu0 %v537, 28
        %v1411 = vpop.permute.xlu0 %1410
        %1412 = vrot.lane.b32.xlu0 %v538, 28
        %v1413 = vpop.permute.xlu0 %1412
        %1414 = vrot.lane.b32.xlu0 %v539, 28
        %v1415 = vpop.permute.xlu0 %1414
        %1416 = vrot.lane.b32.xlu0 %v540, 28
        %v1417 = vpop.permute.xlu0 %1416
        %1418 = vrot.lane.b32.xlu0 %v541, 28
        %v1419 = vpop.permute.xlu0 %1418
        %1420 = vrot.lane.b32.xlu0 %v542, 28
        %v1421 = vpop.permute.xlu0 %1420
        %1422 = vrot.lane.b32.xlu0 %v543, 28
        %v1423 = vpop.permute.xlu0 %1422
        %1424 = vrot.lane.b32.xlu0 %v544, 28
        %v1425 = vpop.permute.xlu0 %1424
        %1426 = vrot.lane.b32.xlu0 %v545, 28
        %v1427 = vpop.permute.xlu0 %1426
        %1428 = vrot.lane.b32.xlu0 %v546, 28
        %v1429 = vpop.permute.xlu0 %1428
        %1430 = vrot.lane.b32.xlu0 %v547, 28
        %v1431 = vpop.permute.xlu0 %1430
        %1432 = vrot.lane.b32.xlu0 %v548, 28
        %v1433 = vpop.permute.xlu0 %1432
        %1434 = vrot.lane.b32.xlu0 %v549, 28
        %v1435 = vpop.permute.xlu0 %1434
        %1436 = vrot.lane.b32.xlu0 %v550, 28
        %v1437 = vpop.permute.xlu0 %1436
        %1438 = vrot.lane.b32.xlu0 %v551, 28
        %v1439 = vpop.permute.xlu0 %1438
        %1440 = vrot.lane.b32.xlu0 %v552, 28
        %v1441 = vpop.permute.xlu0 %1440
        %1442 = vrot.lane.b32.xlu0 %v553, 28
        %v1443 = vpop.permute.xlu0 %1442
        %1444 = vrot.lane.b32.xlu0 %v554, 28
        %v1445 = vpop.permute.xlu0 %1444
        %1446 = vrot.lane.b32.xlu0 %v555, 28
        %v1447 = vpop.permute.xlu0 %1446
        %1448 = vrot.lane.b32.xlu0 %v556, 28
        %v1449 = vpop.permute.xlu0 %1448
        %1450 = vrot.lane.b32.xlu0 %v557, 28
        %v1451 = vpop.permute.xlu0 %1450
        %1452 = vrot.lane.b32.xlu0 %v558, 28
        %v1453 = vpop.permute.xlu0 %1452
        %1454 = vrot.lane.b32.xlu0 %v559, 28
        %v1455 = vpop.permute.xlu0 %1454
        %1520 = vrot.lane.b32.xlu0 %v560, 32
        %v1521 = vpop.permute.xlu0 %1520
        %1522 = vrot.lane.b32.xlu0 %v561, 32
        %v1523 = vpop.permute.xlu0 %1522
        %1524 = vrot.lane.b32.xlu0 %v562, 32
        %v1525 = vpop.permute.xlu0 %1524
        %1526 = vrot.lane.b32.xlu0 %v563, 32
        %v1527 = vpop.permute.xlu0 %1526
        %1528 = vrot.lane.b32.xlu0 %v564, 32
        %v1529 = vpop.permute.xlu0 %1528
        %1530 = vrot.lane.b32.xlu0 %v565, 32
        %v1531 = vpop.permute.xlu0 %1530
        %1532 = vrot.lane.b32.xlu0 %v566, 32
        %v1533 = vpop.permute.xlu0 %1532
        %1534 = vrot.lane.b32.xlu0 %v567, 32
        %v1535 = vpop.permute.xlu0 %1534
        %1536 = vrot.lane.b32.xlu0 %v568, 32
        %v1537 = vpop.permute.xlu0 %1536
        %1538 = vrot.lane.b32.xlu0 %v569, 32
        %v1539 = vpop.permute.xlu0 %1538
        %1540 = vrot.lane.b32.xlu0 %v570, 32
        %v1541 = vpop.permute.xlu0 %1540
        %1542 = vrot.lane.b32.xlu0 %v571, 32
        %v1543 = vpop.permute.xlu0 %1542
        %1544 = vrot.lane.b32.xlu0 %v572, 32
        %v1545 = vpop.permute.xlu0 %1544
        %1546 = vrot.lane.b32.xlu0 %v573, 32
        %v1547 = vpop.permute.xlu0 %1546
        %1548 = vrot.lane.b32.xlu0 %v574, 32
        %v1549 = vpop.permute.xlu0 %1548
        %1550 = vrot.lane.b32.xlu0 %v575, 32
        %v1551 = vpop.permute.xlu0 %1550
        %1552 = vrot.lane.b32.xlu0 %v576, 32
        %v1553 = vpop.permute.xlu0 %1552
        %1554 = vrot.lane.b32.xlu0 %v577, 32
        %v1555 = vpop.permute.xlu0 %1554
        %1556 = vrot.lane.b32.xlu0 %v578, 32
        %v1557 = vpop.permute.xlu0 %1556
        %1558 = vrot.lane.b32.xlu0 %v579, 32
        %v1559 = vpop.permute.xlu0 %1558
        %1560 = vrot.lane.b32.xlu0 %v580, 32
        %v1561 = vpop.permute.xlu0 %1560
        %1562 = vrot.lane.b32.xlu0 %v581, 32
        %v1563 = vpop.permute.xlu0 %1562
        %1564 = vrot.lane.b32.xlu0 %v582, 32
        %v1565 = vpop.permute.xlu0 %1564
        %1566 = vrot.lane.b32.xlu0 %v583, 32
        %v1567 = vpop.permute.xlu0 %1566
        %1568 = vrot.lane.b32.xlu0 %v584, 32
        %v1569 = vpop.permute.xlu0 %1568
        %1570 = vrot.lane.b32.xlu0 %v585, 32
        %v1571 = vpop.permute.xlu0 %1570
        %1572 = vrot.lane.b32.xlu0 %v586, 32
        %v1573 = vpop.permute.xlu0 %1572
        %1574 = vrot.lane.b32.xlu0 %v587, 32
        %v1575 = vpop.permute.xlu0 %1574
        %1576 = vrot.lane.b32.xlu0 %v588, 32
        %v1577 = vpop.permute.xlu0 %1576
        %1578 = vrot.lane.b32.xlu0 %v589, 32
        %v1579 = vpop.permute.xlu0 %1578
        %1580 = vrot.lane.b32.xlu0 %v590, 32
        %v1581 = vpop.permute.xlu0 %1580
        %1582 = vrot.lane.b32.xlu0 %v591, 32
        %v1583 = vpop.permute.xlu0 %1582
        %v1616 = vsel %vm196, %v303, %v625
        %v1617 = vsel %vm196, %v304, %v627
        %v1618 = vsel %vm196, %v305, %v629
        %v1619 = vsel %vm196, %v306, %v631
        %v1620 = vsel %vm196, %v307, %v633
        %v1621 = vsel %vm196, %v308, %v635
        %v1622 = vsel %vm196, %v309, %v637
        %v1623 = vsel %vm196, %v310, %v639
        %v1624 = vsel %vm196, %v311, %v641
        %v1625 = vsel %vm196, %v312, %v643
        %v1626 = vsel %vm196, %v313, %v645
        %v1627 = vsel %vm196, %v314, %v647
        %v1628 = vsel %vm196, %v315, %v649
        %v1629 = vsel %vm196, %v316, %v651
        %v1630 = vsel %vm196, %v317, %v653
        %v1631 = vsel %vm196, %v318, %v655
        %v1632 = vsel %vm196, %v319, %v657
        %v1633 = vsel %vm196, %v320, %v659
        %v1634 = vsel %vm196, %v321, %v661
        %v1635 = vsel %vm196, %v322, %v663
        %v1636 = vsel %vm196, %v323, %v665
        %v1637 = vsel %vm196, %v324, %v667
        %v1638 = vsel %vm196, %v325, %v669
        %v1639 = vsel %vm196, %v326, %v671
        %v1640 = vsel %vm196, %v327, %v673
        %v1641 = vsel %vm196, %v328, %v675
        %v1642 = vsel %vm196, %v329, %v677
        %v1643 = vsel %vm196, %v330, %v679
        %v1644 = vsel %vm196, %v331, %v681
        %v1645 = vsel %vm196, %v332, %v683
        %v1646 = vsel %vm196, %v333, %v685
        %v1647 = vsel %vm196, %v334, %v687
        %vm1648 = vcmask 64512
        %v1649 = vsel %vm1648, %v1616, %v753
        %v1650 = vsel %vm1648, %v1617, %v755
        %v1651 = vsel %vm1648, %v1618, %v757
        %v1652 = vsel %vm1648, %v1619, %v759
        %v1653 = vsel %vm1648, %v1620, %v761
        %v1654 = vsel %vm1648, %v1621, %v763
        %v1655 = vsel %vm1648, %v1622, %v765
        %v1656 = vsel %vm1648, %v1623, %v767
        %v1657 = vsel %vm1648, %v1624, %v769
        %v1658 = vsel %vm1648, %v1625, %v771
        %v1659 = vsel %vm1648, %v1626, %v773
        %v1660 = vsel %vm1648, %v1627, %v775
        %v1661 = vsel %vm1648, %v1628, %v777
        %v1662 = vsel %vm1648, %v1629, %v779
        %v1663 = vsel %vm1648, %v1630, %v781
        %v1664 = vsel %vm1648, %v1631, %v783
        %v1665 = vsel %vm1648, %v1632, %v785
        %v1666 = vsel %vm1648, %v1633, %v787
        %v1667 = vsel %vm1648, %v1634, %v789
        %v1668 = vsel %vm1648, %v1635, %v791
        %v1669 = vsel %vm1648, %v1636, %v793
        %v1670 = vsel %vm1648, %v1637, %v795
        %v1671 = vsel %vm1648, %v1638, %v797
        %v1672 = vsel %vm1648, %v1639, %v799
        %v1673 = vsel %vm1648, %v1640, %v801
        %v1674 = vsel %vm1648, %v1641, %v803
        %v1675 = vsel %vm1648, %v1642, %v805
        %v1676 = vsel %vm1648, %v1643, %v807
        %v1677 = vsel %vm1648, %v1644, %v809
        %v1678 = vsel %vm1648, %v1645, %v811
        %v1679 = vsel %vm1648, %v1646, %v813
        %v1680 = vsel %vm1648, %v1647, %v815
        %vm1681 = vcmask 97280
        %v1682 = vsel %vm1681, %v1649, %v881
        %v1683 = vsel %vm1681, %v1650, %v883
        %v1684 = vsel %vm1681, %v1651, %v885
        %v1685 = vsel %vm1681, %v1652, %v887
        %v1686 = vsel %vm1681, %v1653, %v889
        %v1687 = vsel %vm1681, %v1654, %v891
        %v1688 = vsel %vm1681, %v1655, %v893
        %v1689 = vsel %vm1681, %v1656, %v895
        %v1690 = vsel %vm1681, %v1657, %v897
        %v1691 = vsel %vm1681, %v1658, %v899
        %v1692 = vsel %vm1681, %v1659, %v901
        %v1693 = vsel %vm1681, %v1660, %v903
        %v1694 = vsel %vm1681, %v1661, %v905
        %v1695 = vsel %vm1681, %v1662, %v907
        %v1696 = vsel %vm1681, %v1663, %v909
        %v1697 = vsel %vm1681, %v1664, %v911
        %v1698 = vsel %vm1681, %v1665, %v913
        %v1699 = vsel %vm1681, %v1666, %v915
        %v1700 = vsel %vm1681, %v1667, %v917
        %v1701 = vsel %vm1681, %v1668, %v919
        %v1702 = vsel %vm1681, %v1669, %v921
        %v1703 = vsel %vm1681, %v1670, %v923
        %v1704 = vsel %vm1681, %v1671, %v925
        %v1705 = vsel %vm1681, %v1672, %v927
        %v1706 = vsel %vm1681, %v1673, %v929
        %v1707 = vsel %vm1681, %v1674, %v931
        %v1708 = vsel %vm1681, %v1675, %v933
        %v1709 = vsel %vm1681, %v1676, %v935
        %v1710 = vsel %vm1681, %v1677, %v937
        %v1711 = vsel %vm1681, %v1678, %v939
        %v1712 = vsel %vm1681, %v1679, %v941
        %v1713 = vsel %vm1681, %v1680, %v943
        %vm1714 = vcmask 130048
        %v1715 = vsel %vm1714, %v1682, %v1009
        %v1716 = vsel %vm1714, %v1683, %v1011
        %v1717 = vsel %vm1714, %v1684, %v1013
        %v1718 = vsel %vm1714, %v1685, %v1015
        %v1719 = vsel %vm1714, %v1686, %v1017
        %v1720 = vsel %vm1714, %v1687, %v1019
        %v1721 = vsel %vm1714, %v1688, %v1021
        %v1722 = vsel %vm1714, %v1689, %v1023
        %v1723 = vsel %vm1714, %v1690, %v1025
        %v1724 = vsel %vm1714, %v1691, %v1027
        %v1725 = vsel %vm1714, %v1692, %v1029
        %v1726 = vsel %vm1714, %v1693, %v1031
        %v1727 = vsel %vm1714, %v1694, %v1033
        %v1728 = vsel %vm1714, %v1695, %v1035
        %v1729 = vsel %vm1714, %v1696, %v1037
        %v1730 = vsel %vm1714, %v1697, %v1039
        %v1731 = vsel %vm1714, %v1698, %v1041
        %v1732 = vsel %vm1714, %v1699, %v1043
        %v1733 = vsel %vm1714, %v1700, %v1045
        %v1734 = vsel %vm1714, %v1701, %v1047
        %v1735 = vsel %vm1714, %v1702, %v1049
        %v1736 = vsel %vm1714, %v1703, %v1051
        %v1737 = vsel %vm1714, %v1704, %v1053
        %v1738 = vsel %vm1714, %v1705, %v1055
        %v1739 = vsel %vm1714, %v1706, %v1057
        %v1740 = vsel %vm1714, %v1707, %v1059
        %v1741 = vsel %vm1714, %v1708, %v1061
        %v1742 = vsel %vm1714, %v1709, %v1063
        %v1743 = vsel %vm1714, %v1710, %v1065
        %v1744 = vsel %vm1714, %v1711, %v1067
        %v1745 = vsel %vm1714, %v1712, %v1069
        %v1746 = vsel %vm1714, %v1713, %v1071
        %vm1747 = vcmask 162816
        %v1748 = vsel %vm1747, %v1715, %v1137
        %v1749 = vsel %vm1747, %v1716, %v1139
        %v1750 = vsel %vm1747, %v1717, %v1141
        %v1751 = vsel %vm1747, %v1718, %v1143
        %v1752 = vsel %vm1747, %v1719, %v1145
        %v1753 = vsel %vm1747, %v1720, %v1147
        %v1754 = vsel %vm1747, %v1721, %v1149
        %v1755 = vsel %vm1747, %v1722, %v1151
        %v1756 = vsel %vm1747, %v1723, %v1153
        %v1757 = vsel %vm1747, %v1724, %v1155
        %v1758 = vsel %vm1747, %v1725, %v1157
        %v1759 = vsel %vm1747, %v1726, %v1159
        %v1760 = vsel %vm1747, %v1727, %v1161
        %v1761 = vsel %vm1747, %v1728, %v1163
        %v1762 = vsel %vm1747, %v1729, %v1165
        %v1763 = vsel %vm1747, %v1730, %v1167
        %v1764 = vsel %vm1747, %v1731, %v1169
        %v1765 = vsel %vm1747, %v1732, %v1171
        %v1766 = vsel %vm1747, %v1733, %v1173
        %v1767 = vsel %vm1747, %v1734, %v1175
        %v1768 = vsel %vm1747, %v1735, %v1177
        %v1769 = vsel %vm1747, %v1736, %v1179
        %v1770 = vsel %vm1747, %v1737, %v1181
        %v1771 = vsel %vm1747, %v1738, %v1183
        %v1772 = vsel %vm1747, %v1739, %v1185
        %v1773 = vsel %vm1747, %v1740, %v1187
        %v1774 = vsel %vm1747, %v1741, %v1189
        %v1775 = vsel %vm1747, %v1742, %v1191
        %v1776 = vsel %vm1747, %v1743, %v1193
        %v1777 = vsel %vm1747, %v1744, %v1195
        %v1778 = vsel %vm1747, %v1745, %v1197
        %v1779 = vsel %vm1747, %v1746, %v1199
        %vm1780 = vcmask 195584
        %v1781 = vsel %vm1780, %v1748, %v1265
        %v1782 = vsel %vm1780, %v1749, %v1267
        %v1783 = vsel %vm1780, %v1750, %v1269
        %v1784 = vsel %vm1780, %v1751, %v1271
        %v1785 = vsel %vm1780, %v1752, %v1273
        %v1786 = vsel %vm1780, %v1753, %v1275
        %v1787 = vsel %vm1780, %v1754, %v1277
        %v1788 = vsel %vm1780, %v1755, %v1279
        %v1789 = vsel %vm1780, %v1756, %v1281
        %v1790 = vsel %vm1780, %v1757, %v1283
        %v1791 = vsel %vm1780, %v1758, %v1285
        %v1792 = vsel %vm1780, %v1759, %v1287
        %v1793 = vsel %vm1780, %v1760, %v1289
        %v1794 = vsel %vm1780, %v1761, %v1291
        %v1795 = vsel %vm1780, %v1762, %v1293
        %v1796 = vsel %vm1780, %v1763, %v1295
        %v1797 = vsel %vm1780, %v1764, %v1297
        %v1798 = vsel %vm1780, %v1765, %v1299
        %v1799 = vsel %vm1780, %v1766, %v1301
        %v1800 = vsel %vm1780, %v1767, %v1303
        %v1801 = vsel %vm1780, %v1768, %v1305
        %v1802 = vsel %vm1780, %v1769, %v1307
        %v1803 = vsel %vm1780, %v1770, %v1309
        %v1804 = vsel %vm1780, %v1771, %v1311
        %v1805 = vsel %vm1780, %v1772, %v1313
        %v1806 = vsel %vm1780, %v1773, %v1315
        %v1807 = vsel %vm1780, %v1774, %v1317
        %v1808 = vsel %vm1780, %v1775, %v1319
        %v1809 = vsel %vm1780, %v1776, %v1321
        %v1810 = vsel %vm1780, %v1777, %v1323
        %v1811 = vsel %vm1780, %v1778, %v1325
        %v1812 = vsel %vm1780, %v1779, %v1327
        %vm1813 = vcmask 228352
        %v1814 = vsel %vm1813, %v1781, %v1393
        %v1815 = vsel %vm1813, %v1782, %v1395
        %v1816 = vsel %vm1813, %v1783, %v1397
        %v1817 = vsel %vm1813, %v1784, %v1399
        %v1818 = vsel %vm1813, %v1785, %v1401
        %v1819 = vsel %vm1813, %v1786, %v1403
        %v1820 = vsel %vm1813, %v1787, %v1405
        %v1821 = vsel %vm1813, %v1788, %v1407
        %v1822 = vsel %vm1813, %v1789, %v1409
        %v1823 = vsel %vm1813, %v1790, %v1411
        %v1824 = vsel %vm1813, %v1791, %v1413
        %v1825 = vsel %vm1813, %v1792, %v1415
        %v1826 = vsel %vm1813, %v1793, %v1417
        %v1827 = vsel %vm1813, %v1794, %v1419
        %v1828 = vsel %vm1813, %v1795, %v1421
        %v1829 = vsel %vm1813, %v1796, %v1423
        %v1830 = vsel %vm1813, %v1797, %v1425
        %v1831 = vsel %vm1813, %v1798, %v1427
        %v1832 = vsel %vm1813, %v1799, %v1429
        %v1833 = vsel %vm1813, %v1800, %v1431
        %v1834 = vsel %vm1813, %v1801, %v1433
        %v1835 = vsel %vm1813, %v1802, %v1435
        %v1836 = vsel %vm1813, %v1803, %v1437
        %v1837 = vsel %vm1813, %v1804, %v1439
        %v1838 = vsel %vm1813, %v1805, %v1441
        %v1839 = vsel %vm1813, %v1806, %v1443
        %v1840 = vsel %vm1813, %v1807, %v1445
        %v1841 = vsel %vm1813, %v1808, %v1447
        %v1842 = vsel %vm1813, %v1809, %v1449
        %v1843 = vsel %vm1813, %v1810, %v1451
        %v1844 = vsel %vm1813, %v1811, %v1453
        %v1845 = vsel %vm1813, %v1812, %v1455
        %vm1846 = vcmask 261120
        %v1847 = vsel %vm1846, %v1814, %v1521
        %v1848 = vsel %vm1846, %v1815, %v1523
        %v1849 = vsel %vm1846, %v1816, %v1525
        %v1850 = vsel %vm1846, %v1817, %v1527
        %v1851 = vsel %vm1846, %v1818, %v1529
        %v1852 = vsel %vm1846, %v1819, %v1531
        %v1853 = vsel %vm1846, %v1820, %v1533
        %v1854 = vsel %vm1846, %v1821, %v1535
        %v1855 = vsel %vm1846, %v1822, %v1537
        %v1856 = vsel %vm1846, %v1823, %v1539
        %v1857 = vsel %vm1846, %v1824, %v1541
        %v1858 = vsel %vm1846, %v1825, %v1543
        %v1859 = vsel %vm1846, %v1826, %v1545
        %v1860 = vsel %vm1846, %v1827, %v1547
        %v1861 = vsel %vm1846, %v1828, %v1549
        %v1862 = vsel %vm1846, %v1829, %v1551
        %v1863 = vsel %vm1846, %v1830, %v1553
        %v1864 = vsel %vm1846, %v1831, %v1555
        %v1865 = vsel %vm1846, %v1832, %v1557
        %v1866 = vsel %vm1846, %v1833, %v1559
        %v1867 = vsel %vm1846, %v1834, %v1561
        %v1868 = vsel %vm1846, %v1835, %v1563
        %v1869 = vsel %vm1846, %v1836, %v1565
        %v1870 = vsel %vm1846, %v1837, %v1567
        %v1871 = vsel %vm1846, %v1838, %v1569
        %v1872 = vsel %vm1846, %v1839, %v1571
        %v1873 = vsel %vm1846, %v1840, %v1573
        %v1874 = vsel %vm1846, %v1841, %v1575
        %v1875 = vsel %vm1846, %v1842, %v1577
        %v1876 = vsel %vm1846, %v1843, %v1579
        %v1877 = vsel %vm1846, %v1844, %v1581
        %v1878 = vsel %vm1846, %v1845, %v1583
        %v1879 = vld [vmem:[%s1] sm:$0xff]
        %v1880 = vld [vmem:[%s1 + $0x8] sm:$0xff]
        %v1881 = vld [vmem:[%s1 + $0x10] sm:$0xff]
        %v1882 = vld [vmem:[%s1 + $0x18] sm:$0xff]
        %v1883 = vld [vmem:[%s1 + $0x20] sm:$0xf]
        %vm1884 = vcmask 293888
        %v1886 = vsel %vm1884, %v1847, 0
        %v1889 = vsel %vm1884, %v1848, 0
        %v1892 = vsel %vm1884, %v1849, 0
        %v1895 = vsel %vm1884, %v1850, 0
        %v1898 = vsel %vm1884, %v1851, 0
        %v1901 = vsel %vm1884, %v1852, 0
        %v1904 = vsel %vm1884, %v1853, 0
        %v1907 = vsel %vm1884, %v1854, 0
        %v1910 = vsel %vm1884, %v1855, 0
        %v1913 = vsel %vm1884, %v1856, 0
        %v1916 = vsel %vm1884, %v1857, 0
        %v1919 = vsel %vm1884, %v1858, 0
        %v1922 = vsel %vm1884, %v1859, 0
        %v1925 = vsel %vm1884, %v1860, 0
        %v1928 = vsel %vm1884, %v1861, 0
        %v1931 = vsel %vm1884, %v1862, 0
        %v1934 = vsel %vm1884, %v1863, 0
        %v1937 = vsel %vm1884, %v1864, 0
        %v1940 = vsel %vm1884, %v1865, 0
        %v1943 = vsel %vm1884, %v1866, 0
        %v1946 = vsel %vm1884, %v1867, 0
        %v1949 = vsel %vm1884, %v1868, 0
        %v1952 = vsel %vm1884, %v1869, 0
        %v1955 = vsel %vm1884, %v1870, 0
        %v1958 = vsel %vm1884, %v1871, 0
        %v1961 = vsel %vm1884, %v1872, 0
        %v1964 = vsel %vm1884, %v1873, 0
        %v1967 = vsel %vm1884, %v1874, 0
        %v1970 = vsel %vm1884, %v1875, 0
        %v1973 = vsel %vm1884, %v1876, 0
        %v1976 = vsel %vm1884, %v1877, 0
        %v1979 = vsel %vm1884, %v1878, 0
        %vm1981 = vcmask 1043456
        %v1983 = vsel %vm1981, %v1883, 0
        %1985 = vmatprep.subr.mxu0 0.0
        %1986 = vmatpush1.msra.mxu0 0.0
        %1987 = vmatprep.subr.mxu0 0.0
        %1988 = vmatpush1.msra.mxu0 0.0
        %1989 = vmatprep.subr.mxu0 0.0
        %1990 = vmatpush1.msra.mxu0 0.0
        %1991 = vmatprep.subr.mxu0 0.0
        %1992 = vmatpush1.msra.mxu0 0.0
        %1993 = vmatprep.subr.mxu0 0.0
        %1994 = vmatpush1.msra.mxu0 0.0
        %1995 = vmatprep.subr.mxu0 0.0
        %1996 = vmatpush1.msra.mxu0 0.0
        %1997 = vmatprep.subr.mxu0 0.0
        %1998 = vmatpush1.msra.mxu0 0.0
        %1999 = vmatprep.subr.mxu0 0.0
        %2000 = vmatpush1.msra.mxu0 0.0
        %2001 = vmatprep.subr.mxu0 0.0
        %2002 = vmatpush1.msra.mxu0 0.0
        %2003 = vmatprep.subr.mxu0 0.0
        %2004 = vmatpush1.msra.mxu0 0.0
        %2005 = vmatprep.subr.mxu0 0.0
        %2006 = vmatpush1.msra.mxu0 0.0
        %2007 = vmatprep.subr.mxu0 0.0
        %2008 = vmatpush1.msra.mxu0 %v1983
        %2009 = vmatprep.subr.mxu0 0.0
        %2010 = vmatpush1.msra.mxu0 %v1882
        %2011 = vmatprep.subr.mxu0 0.0
        %2012 = vmatpush1.msra.mxu0 %v1881
        %2013 = vmatprep.subr.mxu0 0.0
        %2014 = vmatpush1.msra.mxu0 %v1880
        %2015 = vmatprep.subr.mxu0 0.0
        %2016 = vmatpush1.msra.mxu0 %v1879
        %2017 = vmatprep.subr.mxu0 0.0
        %2018 = vmatpush2.msra.mxu0 0.0
        %2019 = vmatprep.subr.mxu0 0.0
        %2020 = vmatpush2.msra.mxu0 0.0
        %2021 = vmatprep.subr.mxu0 0.0
        %2022 = vmatpush2.msra.mxu0 0.0
        %2023 = vmatprep.subr.mxu0 0.0
        %2024 = vmatpush2.msra.mxu0 0.0
        %2025 = vmatprep.subr.mxu0 0.0
        %2026 = vmatpush2.msra.mxu0 0.0
        %2027 = vmatprep.subr.mxu0 0.0
        %2028 = vmatpush2.msra.mxu0 0.0
        %2029 = vmatprep.subr.mxu0 0.0
        %2030 = vmatpush2.msra.mxu0 0.0
        %2031 = vmatprep.subr.mxu0 0.0
        %2032 = vmatpush2.msra.mxu0 0.0
        %2033 = vmatprep.subr.mxu0 0.0
        %2034 = vmatpush2.msra.mxu0 0.0
        %2035 = vmatprep.subr.mxu0 0.0
        %2036 = vmatpush2.msra.mxu0 0.0
        %2037 = vmatprep.subr.mxu0 0.0
        %2038 = vmatpush2.msra.mxu0 0.0
        %2039 = vmatprep.subr.mxu0 0.0
        %2040 = vmatpush2.msra.mxu0 0.0
        %2041 = vmatprep.subr.mxu0 0.0
        %2042 = vmatpush2.msra.mxu0 0.0
        %2043 = vmatprep.subr.mxu0 0.0
        %2044 = vmatpush2.msra.mxu0 0.0
        %2045 = vmatprep.subr.mxu0 0.0
        %2046 = vmatpush2.msra.mxu0 0.0
        %2047 = vmatprep.subr.mxu0 0.0
        %2048 = vmatpush2.msra.mxu0 0.0
        %2049 = vmatprep.mubr.f32.mxu0 0.0
        %2050 = vmatmul.mubr.f32.gmra.mxu0 %v1886
        %v2051 = vpop.f32.mrf.mxu0
        %v2052 = vadd.f32 0.0, %v2051
        %v2053 = vpop.f32.mrf.mxu0
        %2054 = vmatprep.mubr.f32.mxu0 0.0
        %2055 = vmatmul.mubr.f32.gmra.mxu0 %v1889
        %v2056 = vpop.f32.mrf.mxu0
        %v2057 = vadd.f32 0.0, %v2056
        %v2058 = vpop.f32.mrf.mxu0
        %2059 = vmatprep.mubr.f32.mxu0 0.0
        %2060 = vmatmul.mubr.f32.gmra.mxu0 %v1892
        %v2061 = vpop.f32.mrf.mxu0
        %v2062 = vadd.f32 0.0, %v2061
        %v2063 = vpop.f32.mrf.mxu0
        %2064 = vmatprep.mubr.f32.mxu0 0.0
        %2065 = vmatmul.mubr.f32.gmra.mxu0 %v1895
        %v2066 = vpop.f32.mrf.mxu0
        %v2067 = vadd.f32 0.0, %v2066
        %v2068 = vpop.f32.mrf.mxu0
        %2069 = vmatprep.mubr.f32.mxu0 0.0
        %2070 = vmatmul.mubr.f32.gmra.mxu0 %v1898
        %v2071 = vpop.f32.mrf.mxu0
        %v2072 = vadd.f32 0.0, %v2071
        %v2073 = vpop.f32.mrf.mxu0
        %2074 = vmatprep.mubr.f32.mxu0 0.0
        %2075 = vmatmul.mubr.f32.gmra.mxu0 %v1901
        %v2076 = vpop.f32.mrf.mxu0
        %v2077 = vadd.f32 0.0, %v2076
        %v2078 = vpop.f32.mrf.mxu0
        %2079 = vmatprep.mubr.f32.mxu0 0.0
        %2080 = vmatmul.mubr.f32.gmra.mxu0 %v1904
        %v2081 = vpop.f32.mrf.mxu0
        %v2082 = vadd.f32 0.0, %v2081
        %v2083 = vpop.f32.mrf.mxu0
        %2084 = vmatprep.mubr.f32.mxu0 0.0
        %2085 = vmatmul.mubr.f32.gmra.mxu0 %v1907
        %v2086 = vpop.f32.mrf.mxu0
        %v2087 = vadd.f32 0.0, %v2086
        %v2088 = vpop.f32.mrf.mxu0
        %2089 = vmatprep.mubr.f32.mxu0 0.0
        %2090 = vmatmul.mubr.f32.gmra.mxu0 %v1910
        %v2091 = vpop.f32.mrf.mxu0
        %v2092 = vadd.f32 0.0, %v2091
        %v2093 = vpop.f32.mrf.mxu0
        %2094 = vmatprep.mubr.f32.mxu0 0.0
        %2095 = vmatmul.mubr.f32.gmra.mxu0 %v1913
        %v2096 = vpop.f32.mrf.mxu0
        %v2097 = vadd.f32 0.0, %v2096
        %v2098 = vpop.f32.mrf.mxu0
        %2099 = vmatprep.mubr.f32.mxu0 0.0
        %2100 = vmatmul.mubr.f32.gmra.mxu0 %v1916
        %v2101 = vpop.f32.mrf.mxu0
        %v2102 = vadd.f32 0.0, %v2101
        %v2103 = vpop.f32.mrf.mxu0
        %2104 = vmatprep.mubr.f32.mxu0 0.0
        %2105 = vmatmul.mubr.f32.gmra.mxu0 %v1919
        %v2106 = vpop.f32.mrf.mxu0
        %v2107 = vadd.f32 0.0, %v2106
        %v2108 = vpop.f32.mrf.mxu0
        %2109 = vmatprep.mubr.f32.mxu0 0.0
        %2110 = vmatmul.mubr.f32.gmra.mxu0 %v1922
        %v2111 = vpop.f32.mrf.mxu0
        %v2112 = vadd.f32 0.0, %v2111
        %v2113 = vpop.f32.mrf.mxu0
        %2114 = vmatprep.mubr.f32.mxu0 0.0
        %2115 = vmatmul.mubr.f32.gmra.mxu0 %v1925
        %v2116 = vpop.f32.mrf.mxu0
        %v2117 = vadd.f32 0.0, %v2116
        %v2118 = vpop.f32.mrf.mxu0
        %2119 = vmatprep.mubr.f32.mxu0 0.0
        %2120 = vmatmul.mubr.f32.gmra.mxu0 %v1928
        %v2121 = vpop.f32.mrf.mxu0
        %v2122 = vadd.f32 0.0, %v2121
        %v2123 = vpop.f32.mrf.mxu0
        %2124 = vmatprep.mubr.f32.mxu0 0.0
        %2125 = vmatmul.mubr.f32.gmra.mxu0 %v1931
        %v2126 = vpop.f32.mrf.mxu0
        %v2127 = vadd.f32 0.0, %v2126
        %v2128 = vpop.f32.mrf.mxu0
        %2129 = vmatprep.mubr.f32.mxu0 0.0
        %2130 = vmatmul.mubr.f32.gmra.mxu0 %v1934
        %v2131 = vpop.f32.mrf.mxu0
        %v2132 = vadd.f32 0.0, %v2131
        %v2133 = vpop.f32.mrf.mxu0
        %2134 = vmatprep.mubr.f32.mxu0 0.0
        %2135 = vmatmul.mubr.f32.gmra.mxu0 %v1937
        %v2136 = vpop.f32.mrf.mxu0
        %v2137 = vadd.f32 0.0, %v2136
        %v2138 = vpop.f32.mrf.mxu0
        %2139 = vmatprep.mubr.f32.mxu0 0.0
        %2140 = vmatmul.mubr.f32.gmra.mxu0 %v1940
        %v2141 = vpop.f32.mrf.mxu0
        %v2142 = vadd.f32 0.0, %v2141
        %v2143 = vpop.f32.mrf.mxu0
        %2144 = vmatprep.mubr.f32.mxu0 0.0
        %2145 = vmatmul.mubr.f32.gmra.mxu0 %v1943
        %v2146 = vpop.f32.mrf.mxu0
        %v2147 = vadd.f32 0.0, %v2146
        %v2148 = vpop.f32.mrf.mxu0
        %2149 = vmatprep.mubr.f32.mxu0 0.0
        %2150 = vmatmul.mubr.f32.gmra.mxu0 %v1946
        %v2151 = vpop.f32.mrf.mxu0
        %v2152 = vadd.f32 0.0, %v2151
        %v2153 = vpop.f32.mrf.mxu0
        %2154 = vmatprep.mubr.f32.mxu0 0.0
        %2155 = vmatmul.mubr.f32.gmra.mxu0 %v1949
        %v2156 = vpop.f32.mrf.mxu0
        %v2157 = vadd.f32 0.0, %v2156
        %v2158 = vpop.f32.mrf.mxu0
        %2159 = vmatprep.mubr.f32.mxu0 0.0
        %2160 = vmatmul.mubr.f32.gmra.mxu0 %v1952
        %v2161 = vpop.f32.mrf.mxu0
        %v2162 = vadd.f32 0.0, %v2161
        %v2163 = vpop.f32.mrf.mxu0
        %2164 = vmatprep.mubr.f32.mxu0 0.0
        %2165 = vmatmul.mubr.f32.gmra.mxu0 %v1955
        %v2166 = vpop.f32.mrf.mxu0
        %v2167 = vadd.f32 0.0, %v2166
        %v2168 = vpop.f32.mrf.mxu0
        %2169 = vmatprep.mubr.f32.mxu0 0.0
        %2170 = vmatmul.mubr.f32.gmra.mxu0 %v1958
        %v2171 = vpop.f32.mrf.mxu0
        %v2172 = vadd.f32 0.0, %v2171
        %v2173 = vpop.f32.mrf.mxu0
        %2174 = vmatprep.mubr.f32.mxu0 0.0
        %2175 = vmatmul.mubr.f32.gmra.mxu0 %v1961
        %v2176 = vpop.f32.mrf.mxu0
        %v2177 = vadd.f32 0.0, %v2176
        %v2178 = vpop.f32.mrf.mxu0
        %2179 = vmatprep.mubr.f32.mxu0 0.0
        %2180 = vmatmul.mubr.f32.gmra.mxu0 %v1964
        %v2181 = vpop.f32.mrf.mxu0
        %v2182 = vadd.f32 0.0, %v2181
        %v2183 = vpop.f32.mrf.mxu0
        %2184 = vmatprep.mubr.f32.mxu0 0.0
        %2185 = vmatmul.mubr.f32.gmra.mxu0 %v1967
        %v2186 = vpop.f32.mrf.mxu0
        %v2187 = vadd.f32 0.0, %v2186
        %v2188 = vpop.f32.mrf.mxu0
        %2189 = vmatprep.mubr.f32.mxu0 0.0
        %2190 = vmatmul.mubr.f32.gmra.mxu0 %v1970
        %v2191 = vpop.f32.mrf.mxu0
        %v2192 = vadd.f32 0.0, %v2191
        %v2193 = vpop.f32.mrf.mxu0
        %2194 = vmatprep.mubr.f32.mxu0 0.0
        %2195 = vmatmul.mubr.f32.gmra.mxu0 %v1973
        %v2196 = vpop.f32.mrf.mxu0
        %v2197 = vadd.f32 0.0, %v2196
        %v2198 = vpop.f32.mrf.mxu0
        %2199 = vmatprep.mubr.f32.mxu0 0.0
        %2200 = vmatmul.mubr.f32.gmra.mxu0 %v1976
        %v2201 = vpop.f32.mrf.mxu0
        %v2202 = vadd.f32 0.0, %v2201
        %v2203 = vpop.f32.mrf.mxu0
        %2204 = vmatprep.mubr.f32.mxu0 0.0
        %2205 = vmatmul.mubr.f32.gmra.mxu0 %v1979
        %v2206 = vpop.f32.mrf.mxu0
        %v2207 = vadd.f32 0.0, %v2206
        %v2208 = vpop.f32.mrf.mxu0
        %2209 = vdwg.mxu0
        %v2210 = vld [vmem:[%s2] sm:$0x1]
        %v2212 = vlaneseq
        %v2213 = vshrl.u32 %v2212, 7
        %v2214 = vsub.s32 0, %v2213
        %v2215 = vrot.slane %v2210, %v2214
        %v2217 = vmul.f32 %v2052, %v2215
        %v2218 = vmul.f32 %v2057, %v2215
        %v2219 = vmul.f32 %v2062, %v2215
        %v2220 = vmul.f32 %v2067, %v2215
        %v2221 = vmul.f32 %v2072, %v2215
        %v2222 = vmul.f32 %v2077, %v2215
        %v2223 = vmul.f32 %v2082, %v2215
        %v2224 = vmul.f32 %v2087, %v2215
        %v2225 = vmul.f32 %v2092, %v2215
        %v2226 = vmul.f32 %v2097, %v2215
        %v2227 = vmul.f32 %v2102, %v2215
        %v2228 = vmul.f32 %v2107, %v2215
        %v2229 = vmul.f32 %v2112, %v2215
        %v2230 = vmul.f32 %v2117, %v2215
        %v2231 = vmul.f32 %v2122, %v2215
        %v2232 = vmul.f32 %v2127, %v2215
        %v2233 = vmul.f32 %v2132, %v2215
        %v2234 = vmul.f32 %v2137, %v2215
        %v2235 = vmul.f32 %v2142, %v2215
        %v2236 = vmul.f32 %v2147, %v2215
        %v2237 = vmul.f32 %v2152, %v2215
        %v2238 = vmul.f32 %v2157, %v2215
        %v2239 = vmul.f32 %v2162, %v2215
        %v2240 = vmul.f32 %v2167, %v2215
        %v2241 = vmul.f32 %v2172, %v2215
        %v2242 = vmul.f32 %v2177, %v2215
        %v2243 = vmul.f32 %v2182, %v2215
        %v2244 = vmul.f32 %v2187, %v2215
        %v2245 = vmul.f32 %v2192, %v2215
        %v2246 = vmul.f32 %v2197, %v2215
        %v2247 = vmul.f32 %v2202, %v2215
        %v2248 = vmul.f32 %v2207, %v2215
        %v2249 = vld [vmem:[%s3] sm:$0x1]
        %v2251 = vlaneseq
        %v2252 = vshrl.u32 %v2251, 7
        %v2253 = vsub.s32 0, %v2252
        %v2254 = vrot.slane %v2249, %v2253
        %v2256 = vadd.f32 %v2217, %v2254
        %v2257 = vadd.f32 %v2218, %v2254
        %v2258 = vadd.f32 %v2219, %v2254
        %v2259 = vadd.f32 %v2220, %v2254
        %v2260 = vadd.f32 %v2221, %v2254
        %v2261 = vadd.f32 %v2222, %v2254
        %v2262 = vadd.f32 %v2223, %v2254
        %v2263 = vadd.f32 %v2224, %v2254
        %v2264 = vadd.f32 %v2225, %v2254
        %v2265 = vadd.f32 %v2226, %v2254
        %v2266 = vadd.f32 %v2227, %v2254
        %v2267 = vadd.f32 %v2228, %v2254
        %v2268 = vadd.f32 %v2229, %v2254
        %v2269 = vadd.f32 %v2230, %v2254
        %v2270 = vadd.f32 %v2231, %v2254
        %v2271 = vadd.f32 %v2232, %v2254
        %v2272 = vadd.f32 %v2233, %v2254
        %v2273 = vadd.f32 %v2234, %v2254
        %v2274 = vadd.f32 %v2235, %v2254
        %v2275 = vadd.f32 %v2236, %v2254
        %v2276 = vadd.f32 %v2237, %v2254
        %v2277 = vadd.f32 %v2238, %v2254
        %v2278 = vadd.f32 %v2239, %v2254
        %v2279 = vadd.f32 %v2240, %v2254
        %v2280 = vadd.f32 %v2241, %v2254
        %v2281 = vadd.f32 %v2242, %v2254
        %v2282 = vadd.f32 %v2243, %v2254
        %v2283 = vadd.f32 %v2244, %v2254
        %v2284 = vadd.f32 %v2245, %v2254
        %v2285 = vadd.f32 %v2246, %v2254
        %v2286 = vadd.f32 %v2247, %v2254
        %v2287 = vadd.f32 %v2248, %v2254
        %v2288 = vmax.f32 %v2256, 0.0
        %v2289 = vmax.f32 %v2257, 0.0
        %v2290 = vmax.f32 %v2258, 0.0
        %v2291 = vmax.f32 %v2259, 0.0
        %v2292 = vmax.f32 %v2260, 0.0
        %v2293 = vmax.f32 %v2261, 0.0
        %v2294 = vmax.f32 %v2262, 0.0
        %v2295 = vmax.f32 %v2263, 0.0
        %v2296 = vmax.f32 %v2264, 0.0
        %v2297 = vmax.f32 %v2265, 0.0
        %v2298 = vmax.f32 %v2266, 0.0
        %v2299 = vmax.f32 %v2267, 0.0
        %v2300 = vmax.f32 %v2268, 0.0
        %v2301 = vmax.f32 %v2269, 0.0
        %v2302 = vmax.f32 %v2270, 0.0
        %v2303 = vmax.f32 %v2271, 0.0
        %v2304 = vmax.f32 %v2272, 0.0
        %v2305 = vmax.f32 %v2273, 0.0
        %v2306 = vmax.f32 %v2274, 0.0
        %v2307 = vmax.f32 %v2275, 0.0
        %v2308 = vmax.f32 %v2276, 0.0
        %v2309 = vmax.f32 %v2277, 0.0
        %v2310 = vmax.f32 %v2278, 0.0
        %v2311 = vmax.f32 %v2279, 0.0
        %v2312 = vmax.f32 %v2280, 0.0
        %v2313 = vmax.f32 %v2281, 0.0
        %v2314 = vmax.f32 %v2282, 0.0
        %v2315 = vmax.f32 %v2283, 0.0
        %v2316 = vmax.f32 %v2284, 0.0
        %v2317 = vmax.f32 %v2285, 0.0
        %v2318 = vmax.f32 %v2286, 0.0
        %v2319 = vmax.f32 %v2287, 0.0
        %v2352 = vcombine.high %v2288, %v2288
        %v2354 = vunpack.c.l.s4 1983009808
        %v2355 = vunpack.c.0.s8 %v2354
        %v2356 = vlaneseq
        %v2357 = vshrl.u32 %v2356, 7
        %v2358 = vsub.s32 %v2355, %v2357
        %v2359 = vrot.slane %v2288, %v2358
        %v2361 = vunpack.c.l.s4 1983009808
        %v2362 = vunpack.c.0.s8 %v2361
        %v2363 = vlaneseq
        %v2364 = vshrl.u32 %v2363, 7
        %v2365 = vsub.s32 %v2362, %v2364
        %v2366 = vrot.slane %v2352, %v2365
        %v2367 = vcombine.high %v2359, %v2359
        %v2368 = vcombine.high %v2366, %v2366
        %v2369 = vcombine.high %v2289, %v2289
        %v2371 = vunpack.c.l.s4 1983009808
        %v2372 = vunpack.c.0.s8 %v2371
        %v2373 = vlaneseq
        %v2374 = vshrl.u32 %v2373, 7
        %v2375 = vsub.s32 %v2372, %v2374
        %v2376 = vrot.slane %v2289, %v2375
        %v2378 = vunpack.c.l.s4 1983009808
        %v2379 = vunpack.c.0.s8 %v2378
        %v2380 = vlaneseq
        %v2381 = vshrl.u32 %v2380, 7
        %v2382 = vsub.s32 %v2379, %v2381
        %v2383 = vrot.slane %v2369, %v2382
        %v2384 = vcombine.high %v2376, %v2376
        %v2385 = vcombine.high %v2383, %v2383
        %v2386 = vcombine.high %v2290, %v2290
        %v2388 = vunpack.c.l.s4 1983009808
        %v2389 = vunpack.c.0.s8 %v2388
        %v2390 = vlaneseq
        %v2391 = vshrl.u32 %v2390, 7
        %v2392 = vsub.s32 %v2389, %v2391
        %v2393 = vrot.slane %v2290, %v2392
        %v2395 = vunpack.c.l.s4 1983009808
        %v2396 = vunpack.c.0.s8 %v2395
        %v2397 = vlaneseq
        %v2398 = vshrl.u32 %v2397, 7
        %v2399 = vsub.s32 %v2396, %v2398
        %v2400 = vrot.slane %v2386, %v2399
        %v2401 = vcombine.high %v2393, %v2393
        %v2402 = vcombine.high %v2400, %v2400
        %v2403 = vcombine.high %v2291, %v2291
        %v2405 = vunpack.c.l.s4 1983009808
        %v2406 = vunpack.c.0.s8 %v2405
        %v2407 = vlaneseq
        %v2408 = vshrl.u32 %v2407, 7
        %v2409 = vsub.s32 %v2406, %v2408
        %v2410 = vrot.slane %v2291, %v2409
        %v2412 = vunpack.c.l.s4 1983009808
        %v2413 = vunpack.c.0.s8 %v2412
        %v2414 = vlaneseq
        %v2415 = vshrl.u32 %v2414, 7
        %v2416 = vsub.s32 %v2413, %v2415
        %v2417 = vrot.slane %v2403, %v2416
        %v2418 = vcombine.high %v2410, %v2410
        %v2419 = vcombine.high %v2417, %v2417
        %v2420 = vcombine.high %v2292, %v2292
        %v2422 = vunpack.c.l.s4 1983009808
        %v2423 = vunpack.c.0.s8 %v2422
        %v2424 = vlaneseq
        %v2425 = vshrl.u32 %v2424, 7
        %v2426 = vsub.s32 %v2423, %v2425
        %v2427 = vrot.slane %v2292, %v2426
        %v2429 = vunpack.c.l.s4 1983009808
        %v2430 = vunpack.c.0.s8 %v2429
        %v2431 = vlaneseq
        %v2432 = vshrl.u32 %v2431, 7
        %v2433 = vsub.s32 %v2430, %v2432
        %v2434 = vrot.slane %v2420, %v2433
        %v2435 = vcombine.high %v2427, %v2427
        %v2436 = vcombine.high %v2434, %v2434
        %v2437 = vcombine.high %v2293, %v2293
        %v2439 = vunpack.c.l.s4 1983009808
        %v2440 = vunpack.c.0.s8 %v2439
        %v2441 = vlaneseq
        %v2442 = vshrl.u32 %v2441, 7
        %v2443 = vsub.s32 %v2440, %v2442
        %v2444 = vrot.slane %v2293, %v2443
        %v2446 = vunpack.c.l.s4 1983009808
        %v2447 = vunpack.c.0.s8 %v2446
        %v2448 = vlaneseq
        %v2449 = vshrl.u32 %v2448, 7
        %v2450 = vsub.s32 %v2447, %v2449
        %v2451 = vrot.slane %v2437, %v2450
        %v2452 = vcombine.high %v2444, %v2444
        %v2453 = vcombine.high %v2451, %v2451
        %v2454 = vcombine.high %v2294, %v2294
        %v2456 = vunpack.c.l.s4 1983009808
        %v2457 = vunpack.c.0.s8 %v2456
        %v2458 = vlaneseq
        %v2459 = vshrl.u32 %v2458, 7
        %v2460 = vsub.s32 %v2457, %v2459
        %v2461 = vrot.slane %v2294, %v2460
        %v2463 = vunpack.c.l.s4 1983009808
        %v2464 = vunpack.c.0.s8 %v2463
        %v2465 = vlaneseq
        %v2466 = vshrl.u32 %v2465, 7
        %v2467 = vsub.s32 %v2464, %v2466
        %v2468 = vrot.slane %v2454, %v2467
        %v2469 = vcombine.high %v2461, %v2461
        %v2470 = vcombine.high %v2468, %v2468
        %v2471 = vcombine.high %v2295, %v2295
        %v2473 = vunpack.c.l.s4 1983009808
        %v2474 = vunpack.c.0.s8 %v2473
        %v2475 = vlaneseq
        %v2476 = vshrl.u32 %v2475, 7
        %v2477 = vsub.s32 %v2474, %v2476
        %v2478 = vrot.slane %v2295, %v2477
        %v2480 = vunpack.c.l.s4 1983009808
        %v2481 = vunpack.c.0.s8 %v2480
        %v2482 = vlaneseq
        %v2483 = vshrl.u32 %v2482, 7
        %v2484 = vsub.s32 %v2481, %v2483
        %v2485 = vrot.slane %v2471, %v2484
        %v2486 = vcombine.high %v2478, %v2478
        %v2487 = vcombine.high %v2485, %v2485
        %v2488 = vcombine.high %v2296, %v2296
        %v2490 = vunpack.c.l.s4 1983009808
        %v2491 = vunpack.c.0.s8 %v2490
        %v2492 = vlaneseq
        %v2493 = vshrl.u32 %v2492, 7
        %v2494 = vsub.s32 %v2491, %v2493
        %v2495 = vrot.slane %v2296, %v2494
        %v2497 = vunpack.c.l.s4 1983009808
        %v2498 = vunpack.c.0.s8 %v2497
        %v2499 = vlaneseq
        %v2500 = vshrl.u32 %v2499, 7
        %v2501 = vsub.s32 %v2498, %v2500
        %v2502 = vrot.slane %v2488, %v2501
        %v2503 = vcombine.high %v2495, %v2495
        %v2504 = vcombine.high %v2502, %v2502
        %v2505 = vcombine.high %v2297, %v2297
        %v2507 = vunpack.c.l.s4 1983009808
        %v2508 = vunpack.c.0.s8 %v2507
        %v2509 = vlaneseq
        %v2510 = vshrl.u32 %v2509, 7
        %v2511 = vsub.s32 %v2508, %v2510
        %v2512 = vrot.slane %v2297, %v2511
        %v2514 = vunpack.c.l.s4 1983009808
        %v2515 = vunpack.c.0.s8 %v2514
        %v2516 = vlaneseq
        %v2517 = vshrl.u32 %v2516, 7
        %v2518 = vsub.s32 %v2515, %v2517
        %v2519 = vrot.slane %v2505, %v2518
        %v2520 = vcombine.high %v2512, %v2512
        %v2521 = vcombine.high %v2519, %v2519
        %v2522 = vcombine.high %v2298, %v2298
        %v2524 = vunpack.c.l.s4 1983009808
        %v2525 = vunpack.c.0.s8 %v2524
        %v2526 = vlaneseq
        %v2527 = vshrl.u32 %v2526, 7
        %v2528 = vsub.s32 %v2525, %v2527
        %v2529 = vrot.slane %v2298, %v2528
        %v2531 = vunpack.c.l.s4 1983009808
        %v2532 = vunpack.c.0.s8 %v2531
        %v2533 = vlaneseq
        %v2534 = vshrl.u32 %v2533, 7
        %v2535 = vsub.s32 %v2532, %v2534
        %v2536 = vrot.slane %v2522, %v2535
        %v2537 = vcombine.high %v2529, %v2529
        %v2538 = vcombine.high %v2536, %v2536
        %v2539 = vcombine.high %v2299, %v2299
        %v2541 = vunpack.c.l.s4 1983009808
        %v2542 = vunpack.c.0.s8 %v2541
        %v2543 = vlaneseq
        %v2544 = vshrl.u32 %v2543, 7
        %v2545 = vsub.s32 %v2542, %v2544
        %v2546 = vrot.slane %v2299, %v2545
        %v2548 = vunpack.c.l.s4 1983009808
        %v2549 = vunpack.c.0.s8 %v2548
        %v2550 = vlaneseq
        %v2551 = vshrl.u32 %v2550, 7
        %v2552 = vsub.s32 %v2549, %v2551
        %v2553 = vrot.slane %v2539, %v2552
        %v2554 = vcombine.high %v2546, %v2546
        %v2555 = vcombine.high %v2553, %v2553
        %v2556 = vcombine.high %v2300, %v2300
        %v2558 = vunpack.c.l.s4 1983009808
        %v2559 = vunpack.c.0.s8 %v2558
        %v2560 = vlaneseq
        %v2561 = vshrl.u32 %v2560, 7
        %v2562 = vsub.s32 %v2559, %v2561
        %v2563 = vrot.slane %v2300, %v2562
        %v2565 = vunpack.c.l.s4 1983009808
        %v2566 = vunpack.c.0.s8 %v2565
        %v2567 = vlaneseq
        %v2568 = vshrl.u32 %v2567, 7
        %v2569 = vsub.s32 %v2566, %v2568
        %v2570 = vrot.slane %v2556, %v2569
        %v2571 = vcombine.high %v2563, %v2563
        %v2572 = vcombine.high %v2570, %v2570
        %v2573 = vcombine.high %v2301, %v2301
        %v2575 = vunpack.c.l.s4 1983009808
        %v2576 = vunpack.c.0.s8 %v2575
        %v2577 = vlaneseq
        %v2578 = vshrl.u32 %v2577, 7
        %v2579 = vsub.s32 %v2576, %v2578
        %v2580 = vrot.slane %v2301, %v2579
        %v2582 = vunpack.c.l.s4 1983009808
        %v2583 = vunpack.c.0.s8 %v2582
        %v2584 = vlaneseq
        %v2585 = vshrl.u32 %v2584, 7
        %v2586 = vsub.s32 %v2583, %v2585
        %v2587 = vrot.slane %v2573, %v2586
        %v2588 = vcombine.high %v2580, %v2580
        %v2589 = vcombine.high %v2587, %v2587
        %v2590 = vcombine.high %v2302, %v2302
        %v2592 = vunpack.c.l.s4 1983009808
        %v2593 = vunpack.c.0.s8 %v2592
        %v2594 = vlaneseq
        %v2595 = vshrl.u32 %v2594, 7
        %v2596 = vsub.s32 %v2593, %v2595
        %v2597 = vrot.slane %v2302, %v2596
        %v2599 = vunpack.c.l.s4 1983009808
        %v2600 = vunpack.c.0.s8 %v2599
        %v2601 = vlaneseq
        %v2602 = vshrl.u32 %v2601, 7
        %v2603 = vsub.s32 %v2600, %v2602
        %v2604 = vrot.slane %v2590, %v2603
        %v2605 = vcombine.high %v2597, %v2597
        %v2606 = vcombine.high %v2604, %v2604
        %v2607 = vcombine.high %v2303, %v2303
        %v2609 = vunpack.c.l.s4 1983009808
        %v2610 = vunpack.c.0.s8 %v2609
        %v2611 = vlaneseq
        %v2612 = vshrl.u32 %v2611, 7
        %v2613 = vsub.s32 %v2610, %v2612
        %v2614 = vrot.slane %v2303, %v2613
        %v2616 = vunpack.c.l.s4 1983009808
        %v2617 = vunpack.c.0.s8 %v2616
        %v2618 = vlaneseq
        %v2619 = vshrl.u32 %v2618, 7
        %v2620 = vsub.s32 %v2617, %v2619
        %v2621 = vrot.slane %v2607, %v2620
        %v2622 = vcombine.high %v2614, %v2614
        %v2623 = vcombine.high %v2621, %v2621
        %v2624 = vcombine.high %v2304, %v2304
        %v2626 = vunpack.c.l.s4 1983009808
        %v2627 = vunpack.c.0.s8 %v2626
        %v2628 = vlaneseq
        %v2629 = vshrl.u32 %v2628, 7
        %v2630 = vsub.s32 %v2627, %v2629
        %v2631 = vrot.slane %v2304, %v2630
        %v2633 = vunpack.c.l.s4 1983009808
        %v2634 = vunpack.c.0.s8 %v2633
        %v2635 = vlaneseq
        %v2636 = vshrl.u32 %v2635, 7
        %v2637 = vsub.s32 %v2634, %v2636
        %v2638 = vrot.slane %v2624, %v2637
        %v2639 = vcombine.high %v2631, %v2631
        %v2640 = vcombine.high %v2638, %v2638
        %v2641 = vcombine.high %v2305, %v2305
        %v2643 = vunpack.c.l.s4 1983009808
        %v2644 = vunpack.c.0.s8 %v2643
        %v2645 = vlaneseq
        %v2646 = vshrl.u32 %v2645, 7
        %v2647 = vsub.s32 %v2644, %v2646
        %v2648 = vrot.slane %v2305, %v2647
        %v2650 = vunpack.c.l.s4 1983009808
        %v2651 = vunpack.c.0.s8 %v2650
        %v2652 = vlaneseq
        %v2653 = vshrl.u32 %v2652, 7
        %v2654 = vsub.s32 %v2651, %v2653
        %v2655 = vrot.slane %v2641, %v2654
        %v2656 = vcombine.high %v2648, %v2648
        %v2657 = vcombine.high %v2655, %v2655
        %v2658 = vcombine.high %v2306, %v2306
        %v2660 = vunpack.c.l.s4 1983009808
        %v2661 = vunpack.c.0.s8 %v2660
        %v2662 = vlaneseq
        %v2663 = vshrl.u32 %v2662, 7
        %v2664 = vsub.s32 %v2661, %v2663
        %v2665 = vrot.slane %v2306, %v2664
        %v2667 = vunpack.c.l.s4 1983009808
        %v2668 = vunpack.c.0.s8 %v2667
        %v2669 = vlaneseq
        %v2670 = vshrl.u32 %v2669, 7
        %v2671 = vsub.s32 %v2668, %v2670
        %v2672 = vrot.slane %v2658, %v2671
        %v2673 = vcombine.high %v2665, %v2665
        %v2674 = vcombine.high %v2672, %v2672
        %v2675 = vcombine.high %v2307, %v2307
        %v2677 = vunpack.c.l.s4 1983009808
        %v2678 = vunpack.c.0.s8 %v2677
        %v2679 = vlaneseq
        %v2680 = vshrl.u32 %v2679, 7
        %v2681 = vsub.s32 %v2678, %v2680
        %v2682 = vrot.slane %v2307, %v2681
        %v2684 = vunpack.c.l.s4 1983009808
        %v2685 = vunpack.c.0.s8 %v2684
        %v2686 = vlaneseq
        %v2687 = vshrl.u32 %v2686, 7
        %v2688 = vsub.s32 %v2685, %v2687
        %v2689 = vrot.slane %v2675, %v2688
        %v2690 = vcombine.high %v2682, %v2682
        %v2691 = vcombine.high %v2689, %v2689
        %v2692 = vcombine.high %v2308, %v2308
        %v2694 = vunpack.c.l.s4 1983009808
        %v2695 = vunpack.c.0.s8 %v2694
        %v2696 = vlaneseq
        %v2697 = vshrl.u32 %v2696, 7
        %v2698 = vsub.s32 %v2695, %v2697
        %v2699 = vrot.slane %v2308, %v2698
        %v2701 = vunpack.c.l.s4 1983009808
        %v2702 = vunpack.c.0.s8 %v2701
        %v2703 = vlaneseq
        %v2704 = vshrl.u32 %v2703, 7
        %v2705 = vsub.s32 %v2702, %v2704
        %v2706 = vrot.slane %v2692, %v2705
        %v2707 = vcombine.high %v2699, %v2699
        %v2708 = vcombine.high %v2706, %v2706
        %v2709 = vcombine.high %v2309, %v2309
        %v2711 = vunpack.c.l.s4 1983009808
        %v2712 = vunpack.c.0.s8 %v2711
        %v2713 = vlaneseq
        %v2714 = vshrl.u32 %v2713, 7
        %v2715 = vsub.s32 %v2712, %v2714
        %v2716 = vrot.slane %v2309, %v2715
        %v2718 = vunpack.c.l.s4 1983009808
        %v2719 = vunpack.c.0.s8 %v2718
        %v2720 = vlaneseq
        %v2721 = vshrl.u32 %v2720, 7
        %v2722 = vsub.s32 %v2719, %v2721
        %v2723 = vrot.slane %v2709, %v2722
        %v2724 = vcombine.high %v2716, %v2716
        %v2725 = vcombine.high %v2723, %v2723
        %v2726 = vcombine.high %v2310, %v2310
        %v2728 = vunpack.c.l.s4 1983009808
        %v2729 = vunpack.c.0.s8 %v2728
        %v2730 = vlaneseq
        %v2731 = vshrl.u32 %v2730, 7
        %v2732 = vsub.s32 %v2729, %v2731
        %v2733 = vrot.slane %v2310, %v2732
        %v2735 = vunpack.c.l.s4 1983009808
        %v2736 = vunpack.c.0.s8 %v2735
        %v2737 = vlaneseq
        %v2738 = vshrl.u32 %v2737, 7
        %v2739 = vsub.s32 %v2736, %v2738
        %v2740 = vrot.slane %v2726, %v2739
        %v2741 = vcombine.high %v2733, %v2733
        %v2742 = vcombine.high %v2740, %v2740
        %v2743 = vcombine.high %v2311, %v2311
        %v2745 = vunpack.c.l.s4 1983009808
        %v2746 = vunpack.c.0.s8 %v2745
        %v2747 = vlaneseq
        %v2748 = vshrl.u32 %v2747, 7
        %v2749 = vsub.s32 %v2746, %v2748
        %v2750 = vrot.slane %v2311, %v2749
        %v2752 = vunpack.c.l.s4 1983009808
        %v2753 = vunpack.c.0.s8 %v2752
        %v2754 = vlaneseq
        %v2755 = vshrl.u32 %v2754, 7
        %v2756 = vsub.s32 %v2753, %v2755
        %v2757 = vrot.slane %v2743, %v2756
        %v2758 = vcombine.high %v2750, %v2750
        %v2759 = vcombine.high %v2757, %v2757
        %v2760 = vcombine.high %v2312, %v2312
        %v2762 = vunpack.c.l.s4 1983009808
        %v2763 = vunpack.c.0.s8 %v2762
        %v2764 = vlaneseq
        %v2765 = vshrl.u32 %v2764, 7
        %v2766 = vsub.s32 %v2763, %v2765
        %v2767 = vrot.slane %v2312, %v2766
        %v2769 = vunpack.c.l.s4 1983009808
        %v2770 = vunpack.c.0.s8 %v2769
        %v2771 = vlaneseq
        %v2772 = vshrl.u32 %v2771, 7
        %v2773 = vsub.s32 %v2770, %v2772
        %v2774 = vrot.slane %v2760, %v2773
        %v2775 = vcombine.high %v2767, %v2767
        %v2776 = vcombine.high %v2774, %v2774
        %v2777 = vcombine.high %v2313, %v2313
        %v2779 = vunpack.c.l.s4 1983009808
        %v2780 = vunpack.c.0.s8 %v2779
        %v2781 = vlaneseq
        %v2782 = vshrl.u32 %v2781, 7
        %v2783 = vsub.s32 %v2780, %v2782
        %v2784 = vrot.slane %v2313, %v2783
        %v2786 = vunpack.c.l.s4 1983009808
        %v2787 = vunpack.c.0.s8 %v2786
        %v2788 = vlaneseq
        %v2789 = vshrl.u32 %v2788, 7
        %v2790 = vsub.s32 %v2787, %v2789
        %v2791 = vrot.slane %v2777, %v2790
        %v2792 = vcombine.high %v2784, %v2784
        %v2793 = vcombine.high %v2791, %v2791
        %v2794 = vcombine.high %v2314, %v2314
        %v2796 = vunpack.c.l.s4 1983009808
        %v2797 = vunpack.c.0.s8 %v2796
        %v2798 = vlaneseq
        %v2799 = vshrl.u32 %v2798, 7
        %v2800 = vsub.s32 %v2797, %v2799
        %v2801 = vrot.slane %v2314, %v2800
        %v2803 = vunpack.c.l.s4 1983009808
        %v2804 = vunpack.c.0.s8 %v2803
        %v2805 = vlaneseq
        %v2806 = vshrl.u32 %v2805, 7
        %v2807 = vsub.s32 %v2804, %v2806
        %v2808 = vrot.slane %v2794, %v2807
        %v2809 = vcombine.high %v2801, %v2801
        %v2810 = vcombine.high %v2808, %v2808
        %v2811 = vcombine.high %v2315, %v2315
        %v2813 = vunpack.c.l.s4 1983009808
        %v2814 = vunpack.c.0.s8 %v2813
        %v2815 = vlaneseq
        %v2816 = vshrl.u32 %v2815, 7
        %v2817 = vsub.s32 %v2814, %v2816
        %v2818 = vrot.slane %v2315, %v2817
        %v2820 = vunpack.c.l.s4 1983009808
        %v2821 = vunpack.c.0.s8 %v2820
        %v2822 = vlaneseq
        %v2823 = vshrl.u32 %v2822, 7
        %v2824 = vsub.s32 %v2821, %v2823
        %v2825 = vrot.slane %v2811, %v2824
        %v2826 = vcombine.high %v2818, %v2818
        %v2827 = vcombine.high %v2825, %v2825
        %v2828 = vcombine.high %v2316, %v2316
        %v2830 = vunpack.c.l.s4 1983009808
        %v2831 = vunpack.c.0.s8 %v2830
        %v2832 = vlaneseq
        %v2833 = vshrl.u32 %v2832, 7
        %v2834 = vsub.s32 %v2831, %v2833
        %v2835 = vrot.slane %v2316, %v2834
        %v2837 = vunpack.c.l.s4 1983009808
        %v2838 = vunpack.c.0.s8 %v2837
        %v2839 = vlaneseq
        %v2840 = vshrl.u32 %v2839, 7
        %v2841 = vsub.s32 %v2838, %v2840
        %v2842 = vrot.slane %v2828, %v2841
        %v2843 = vcombine.high %v2835, %v2835
        %v2844 = vcombine.high %v2842, %v2842
        %v2845 = vcombine.high %v2317, %v2317
        %v2847 = vunpack.c.l.s4 1983009808
        %v2848 = vunpack.c.0.s8 %v2847
        %v2849 = vlaneseq
        %v2850 = vshrl.u32 %v2849, 7
        %v2851 = vsub.s32 %v2848, %v2850
        %v2852 = vrot.slane %v2317, %v2851
        %v2854 = vunpack.c.l.s4 1983009808
        %v2855 = vunpack.c.0.s8 %v2854
        %v2856 = vlaneseq
        %v2857 = vshrl.u32 %v2856, 7
        %v2858 = vsub.s32 %v2855, %v2857
        %v2859 = vrot.slane %v2845, %v2858
        %v2860 = vcombine.high %v2852, %v2852
        %v2861 = vcombine.high %v2859, %v2859
        %v2862 = vcombine.high %v2318, %v2318
        %v2864 = vunpack.c.l.s4 1983009808
        %v2865 = vunpack.c.0.s8 %v2864
        %v2866 = vlaneseq
        %v2867 = vshrl.u32 %v2866, 7
        %v2868 = vsub.s32 %v2865, %v2867
        %v2869 = vrot.slane %v2318, %v2868
        %v2871 = vunpack.c.l.s4 1983009808
        %v2872 = vunpack.c.0.s8 %v2871
        %v2873 = vlaneseq
        %v2874 = vshrl.u32 %v2873, 7
        %v2875 = vsub.s32 %v2872, %v2874
        %v2876 = vrot.slane %v2862, %v2875
        %v2877 = vcombine.high %v2869, %v2869
        %v2878 = vcombine.high %v2876, %v2876
        %v2879 = vcombine.high %v2319, %v2319
        %v2881 = vunpack.c.l.s4 1983009808
        %v2882 = vunpack.c.0.s8 %v2881
        %v2883 = vlaneseq
        %v2884 = vshrl.u32 %v2883, 7
        %v2885 = vsub.s32 %v2882, %v2884
        %v2886 = vrot.slane %v2319, %v2885
        %v2888 = vunpack.c.l.s4 1983009808
        %v2889 = vunpack.c.0.s8 %v2888
        %v2890 = vlaneseq
        %v2891 = vshrl.u32 %v2890, 7
        %v2892 = vsub.s32 %v2889, %v2891
        %v2893 = vrot.slane %v2879, %v2892
        %v2894 = vcombine.high %v2886, %v2886
        %v2895 = vcombine.high %v2893, %v2893
        %v3024 = vrot.slane %v2359, 7
        %v3025 = vrot.slane %v3024, 2
        %v3026 = vrot.slane %v2367, 7
        %v3027 = vrot.slane %v3026, 2
        %v3028 = vrot.slane %v2366, 7
        %v3029 = vrot.slane %v3028, 2
        %v3030 = vrot.slane %v2368, 7
        %v3031 = vrot.slane %v3030, 2
        %v3032 = vrot.slane %v2376, 7
        %v3033 = vrot.slane %v3032, 2
        %v3034 = vrot.slane %v2384, 7
        %v3035 = vrot.slane %v3034, 2
        %v3036 = vrot.slane %v2383, 7
        %v3037 = vrot.slane %v3036, 2
        %v3038 = vrot.slane %v2385, 7
        %v3039 = vrot.slane %v3038, 2
        %v3040 = vrot.slane %v2393, 7
        %v3041 = vrot.slane %v3040, 2
        %v3042 = vrot.slane %v2401, 7
        %v3043 = vrot.slane %v3042, 2
        %v3044 = vrot.slane %v2400, 7
        %v3045 = vrot.slane %v3044, 2
        %v3046 = vrot.slane %v2402, 7
        %v3047 = vrot.slane %v3046, 2
        %v3048 = vrot.slane %v2410, 7
        %v3049 = vrot.slane %v3048, 2
        %v3050 = vrot.slane %v2418, 7
        %v3051 = vrot.slane %v3050, 2
        %v3052 = vrot.slane %v2417, 7
        %v3053 = vrot.slane %v3052, 2
        %v3054 = vrot.slane %v2419, 7
        %v3055 = vrot.slane %v3054, 2
        %v3056 = vrot.slane %v2427, 7
        %v3057 = vrot.slane %v3056, 2
        %v3058 = vrot.slane %v2435, 7
        %v3059 = vrot.slane %v3058, 2
        %v3060 = vrot.slane %v2434, 7
        %v3061 = vrot.slane %v3060, 2
        %v3062 = vrot.slane %v2436, 7
        %v3063 = vrot.slane %v3062, 2
        %v3064 = vrot.slane %v2444, 7
        %v3065 = vrot.slane %v3064, 2
        %v3066 = vrot.slane %v2452, 7
        %v3067 = vrot.slane %v3066, 2
        %v3068 = vrot.slane %v2451, 7
        %v3069 = vrot.slane %v3068, 2
        %v3070 = vrot.slane %v2453, 7
        %v3071 = vrot.slane %v3070, 2
        %v3072 = vrot.slane %v2461, 7
        %v3073 = vrot.slane %v3072, 2
        %v3074 = vrot.slane %v2469, 7
        %v3075 = vrot.slane %v3074, 2
        %v3076 = vrot.slane %v2468, 7
        %v3077 = vrot.slane %v3076, 2
        %v3078 = vrot.slane %v2470, 7
        %v3079 = vrot.slane %v3078, 2
        %v3080 = vrot.slane %v2478, 7
        %v3081 = vrot.slane %v3080, 2
        %v3082 = vrot.slane %v2486, 7
        %v3083 = vrot.slane %v3082, 2
        %v3084 = vrot.slane %v2485, 7
        %v3085 = vrot.slane %v3084, 2
        %v3086 = vrot.slane %v2487, 7
        %v3087 = vrot.slane %v3086, 2
        %v3088 = vrot.slane %v2495, 7
        %v3089 = vrot.slane %v3088, 2
        %v3090 = vrot.slane %v2503, 7
        %v3091 = vrot.slane %v3090, 2
        %v3092 = vrot.slane %v2502, 7
        %v3093 = vrot.slane %v3092, 2
        %v3094 = vrot.slane %v2504, 7
        %v3095 = vrot.slane %v3094, 2
        %v3096 = vrot.slane %v2512, 7
        %v3097 = vrot.slane %v3096, 2
        %v3098 = vrot.slane %v2520, 7
        %v3099 = vrot.slane %v3098, 2
        %v3100 = vrot.slane %v2519, 7
        %v3101 = vrot.slane %v3100, 2
        %v3102 = vrot.slane %v2521, 7
        %v3103 = vrot.slane %v3102, 2
        %v3104 = vrot.slane %v2529, 7
        %v3105 = vrot.slane %v3104, 2
        %v3106 = vrot.slane %v2537, 7
        %v3107 = vrot.slane %v3106, 2
        %v3108 = vrot.slane %v2536, 7
        %v3109 = vrot.slane %v3108, 2
        %v3110 = vrot.slane %v2538, 7
        %v3111 = vrot.slane %v3110, 2
        %v3112 = vrot.slane %v2546, 7
        %v3113 = vrot.slane %v3112, 2
        %v3114 = vrot.slane %v2554, 7
        %v3115 = vrot.slane %v3114, 2
        %v3116 = vrot.slane %v2553, 7
        %v3117 = vrot.slane %v3116, 2
        %v3118 = vrot.slane %v2555, 7
        %v3119 = vrot.slane %v3118, 2
        %v3120 = vrot.slane %v2563, 7
        %v3121 = vrot.slane %v3120, 2
        %v3122 = vrot.slane %v2571, 7
        %v3123 = vrot.slane %v3122, 2
        %v3124 = vrot.slane %v2570, 7
        %v3125 = vrot.slane %v3124, 2
        %v3126 = vrot.slane %v2572, 7
        %v3127 = vrot.slane %v3126, 2
        %v3128 = vrot.slane %v2580, 7
        %v3129 = vrot.slane %v3128, 2
        %v3130 = vrot.slane %v2588, 7
        %v3131 = vrot.slane %v3130, 2
        %v3132 = vrot.slane %v2587, 7
        %v3133 = vrot.slane %v3132, 2
        %v3134 = vrot.slane %v2589, 7
        %v3135 = vrot.slane %v3134, 2
        %v3136 = vrot.slane %v2597, 7
        %v3137 = vrot.slane %v3136, 2
        %v3138 = vrot.slane %v2605, 7
        %v3139 = vrot.slane %v3138, 2
        %v3140 = vrot.slane %v2604, 7
        %v3141 = vrot.slane %v3140, 2
        %v3142 = vrot.slane %v2606, 7
        %v3143 = vrot.slane %v3142, 2
        %v3144 = vrot.slane %v2614, 7
        %v3145 = vrot.slane %v3144, 2
        %v3146 = vrot.slane %v2622, 7
        %v3147 = vrot.slane %v3146, 2
        %v3148 = vrot.slane %v2621, 7
        %v3149 = vrot.slane %v3148, 2
        %v3150 = vrot.slane %v2623, 7
        %v3151 = vrot.slane %v3150, 2
        %v3152 = vrot.slane %v2631, 7
        %v3153 = vrot.slane %v3152, 2
        %v3154 = vrot.slane %v2639, 7
        %v3155 = vrot.slane %v3154, 2
        %v3156 = vrot.slane %v2638, 7
        %v3157 = vrot.slane %v3156, 2
        %v3158 = vrot.slane %v2640, 7
        %v3159 = vrot.slane %v3158, 2
        %v3160 = vrot.slane %v2648, 7
        %v3161 = vrot.slane %v3160, 2
        %v3162 = vrot.slane %v2656, 7
        %v3163 = vrot.slane %v3162, 2
        %v3164 = vrot.slane %v2655, 7
        %v3165 = vrot.slane %v3164, 2
        %v3166 = vrot.slane %v2657, 7
        %v3167 = vrot.slane %v3166, 2
        %v3168 = vrot.slane %v2665, 7
        %v3169 = vrot.slane %v3168, 2
        %v3170 = vrot.slane %v2673, 7
        %v3171 = vrot.slane %v3170, 2
        %v3172 = vrot.slane %v2672, 7
        %v3173 = vrot.slane %v3172, 2
        %v3174 = vrot.slane %v2674, 7
        %v3175 = vrot.slane %v3174, 2
        %v3176 = vrot.slane %v2682, 7
        %v3177 = vrot.slane %v3176, 2
        %v3178 = vrot.slane %v2690, 7
        %v3179 = vrot.slane %v3178, 2
        %v3180 = vrot.slane %v2689, 7
        %v3181 = vrot.slane %v3180, 2
        %v3182 = vrot.slane %v2691, 7
        %v3183 = vrot.slane %v3182, 2
        %v3184 = vrot.slane %v2699, 7
        %v3185 = vrot.slane %v3184, 2
        %v3186 = vrot.slane %v2707, 7
        %v3187 = vrot.slane %v3186, 2
        %v3188 = vrot.slane %v2706, 7
        %v3189 = vrot.slane %v3188, 2
        %v3190 = vrot.slane %v2708, 7
        %v3191 = vrot.slane %v3190, 2
        %v3192 = vrot.slane %v2716, 7
        %v3193 = vrot.slane %v3192, 2
        %v3194 = vrot.slane %v2724, 7
        %v3195 = vrot.slane %v3194, 2
        %v3196 = vrot.slane %v2723, 7
        %v3197 = vrot.slane %v3196, 2
        %v3198 = vrot.slane %v2725, 7
        %v3199 = vrot.slane %v3198, 2
        %v3200 = vrot.slane %v2733, 7
        %v3201 = vrot.slane %v3200, 2
        %v3202 = vrot.slane %v2741, 7
        %v3203 = vrot.slane %v3202, 2
        %v3204 = vrot.slane %v2740, 7
        %v3205 = vrot.slane %v3204, 2
        %v3206 = vrot.slane %v2742, 7
        %v3207 = vrot.slane %v3206, 2
        %v3208 = vrot.slane %v2750, 7
        %v3209 = vrot.slane %v3208, 2
        %v3210 = vrot.slane %v2758, 7
        %v3211 = vrot.slane %v3210, 2
        %v3212 = vrot.slane %v2757, 7
        %v3213 = vrot.slane %v3212, 2
        %v3214 = vrot.slane %v2759, 7
        %v3215 = vrot.slane %v3214, 2
        %v3216 = vrot.slane %v2767, 7
        %v3217 = vrot.slane %v3216, 2
        %v3218 = vrot.slane %v2775, 7
        %v3219 = vrot.slane %v3218, 2
        %v3220 = vrot.slane %v2774, 7
        %v3221 = vrot.slane %v3220, 2
        %v3222 = vrot.slane %v2776, 7
        %v3223 = vrot.slane %v3222, 2
        %v3224 = vrot.slane %v2784, 7
        %v3225 = vrot.slane %v3224, 2
        %v3226 = vrot.slane %v2792, 7
        %v3227 = vrot.slane %v3226, 2
        %v3228 = vrot.slane %v2791, 7
        %v3229 = vrot.slane %v3228, 2
        %v3230 = vrot.slane %v2793, 7
        %v3231 = vrot.slane %v3230, 2
        %v3232 = vrot.slane %v2801, 7
        %v3233 = vrot.slane %v3232, 2
        %v3234 = vrot.slane %v2809, 7
        %v3235 = vrot.slane %v3234, 2
        %v3236 = vrot.slane %v2808, 7
        %v3237 = vrot.slane %v3236, 2
        %v3238 = vrot.slane %v2810, 7
        %v3239 = vrot.slane %v3238, 2
        %v3240 = vrot.slane %v2818, 7
        %v3241 = vrot.slane %v3240, 2
        %v3242 = vrot.slane %v2826, 7
        %v3243 = vrot.slane %v3242, 2
        %v3244 = vrot.slane %v2825, 7
        %v3245 = vrot.slane %v3244, 2
        %v3246 = vrot.slane %v2827, 7
        %v3247 = vrot.slane %v3246, 2
        %v3248 = vrot.slane %v2835, 7
        %v3249 = vrot.slane %v3248, 2
        %v3250 = vrot.slane %v2843, 7
        %v3251 = vrot.slane %v3250, 2
        %v3252 = vrot.slane %v2842, 7
        %v3253 = vrot.slane %v3252, 2
        %v3254 = vrot.slane %v2844, 7
        %v3255 = vrot.slane %v3254, 2
        %v3256 = vrot.slane %v2852, 7
        %v3257 = vrot.slane %v3256, 2
        %v3258 = vrot.slane %v2860, 7
        %v3259 = vrot.slane %v3258, 2
        %v3260 = vrot.slane %v2859, 7
        %v3261 = vrot.slane %v3260, 2
        %v3262 = vrot.slane %v2861, 7
        %v3263 = vrot.slane %v3262, 2
        %v3264 = vrot.slane %v2869, 7
        %v3265 = vrot.slane %v3264, 2
        %v3266 = vrot.slane %v2877, 7
        %v3267 = vrot.slane %v3266, 2
        %v3268 = vrot.slane %v2876, 7
        %v3269 = vrot.slane %v3268, 2
        %v3270 = vrot.slane %v2878, 7
        %v3271 = vrot.slane %v3270, 2
        %v3272 = vrot.slane %v2886, 7
        %v3273 = vrot.slane %v3272, 2
        %v3274 = vrot.slane %v2894, 7
        %v3275 = vrot.slane %v3274, 2
        %v3276 = vrot.slane %v2893, 7
        %v3277 = vrot.slane %v3276, 2
        %v3278 = vrot.slane %v2895, 7
        %v3279 = vrot.slane %v3278, 2
        %v3408 = vadd.f32 %v2359, %v3025
        %v3409 = vadd.f32 %v2367, %v3027
        %v3410 = vadd.f32 %v2366, %v3029
        %v3411 = vadd.f32 %v2368, %v3031
        %v3412 = vadd.f32 %v2376, %v3033
        %v3413 = vadd.f32 %v2384, %v3035
        %v3414 = vadd.f32 %v2383, %v3037
        %v3415 = vadd.f32 %v2385, %v3039
        %v3416 = vadd.f32 %v2393, %v3041
        %v3417 = vadd.f32 %v2401, %v3043
        %v3418 = vadd.f32 %v2400, %v3045
        %v3419 = vadd.f32 %v2402, %v3047
        %v3420 = vadd.f32 %v2410, %v3049
        %v3421 = vadd.f32 %v2418, %v3051
        %v3422 = vadd.f32 %v2417, %v3053
        %v3423 = vadd.f32 %v2419, %v3055
        %v3424 = vadd.f32 %v2427, %v3057
        %v3425 = vadd.f32 %v2435, %v3059
        %v3426 = vadd.f32 %v2434, %v3061
        %v3427 = vadd.f32 %v2436, %v3063
        %v3428 = vadd.f32 %v2444, %v3065
        %v3429 = vadd.f32 %v2452, %v3067
        %v3430 = vadd.f32 %v2451, %v3069
        %v3431 = vadd.f32 %v2453, %v3071
        %v3432 = vadd.f32 %v2461, %v3073
        %v3433 = vadd.f32 %v2469, %v3075
        %v3434 = vadd.f32 %v2468, %v3077
        %v3435 = vadd.f32 %v2470, %v3079
        %v3436 = vadd.f32 %v2478, %v3081
        %v3437 = vadd.f32 %v2486, %v3083
        %v3438 = vadd.f32 %v2485, %v3085
        %v3439 = vadd.f32 %v2487, %v3087
        %v3440 = vadd.f32 %v2495, %v3089
        %v3441 = vadd.f32 %v2503, %v3091
        %v3442 = vadd.f32 %v2502, %v3093
        %v3443 = vadd.f32 %v2504, %v3095
        %v3444 = vadd.f32 %v2512, %v3097
        %v3445 = vadd.f32 %v2520, %v3099
        %v3446 = vadd.f32 %v2519, %v3101
        %v3447 = vadd.f32 %v2521, %v3103
        %v3448 = vadd.f32 %v2529, %v3105
        %v3449 = vadd.f32 %v2537, %v3107
        %v3450 = vadd.f32 %v2536, %v3109
        %v3451 = vadd.f32 %v2538, %v3111
        %v3452 = vadd.f32 %v2546, %v3113
        %v3453 = vadd.f32 %v2554, %v3115
        %v3454 = vadd.f32 %v2553, %v3117
        %v3455 = vadd.f32 %v2555, %v3119
        %v3456 = vadd.f32 %v2563, %v3121
        %v3457 = vadd.f32 %v2571, %v3123
        %v3458 = vadd.f32 %v2570, %v3125
        %v3459 = vadd.f32 %v2572, %v3127
        %v3460 = vadd.f32 %v2580, %v3129
        %v3461 = vadd.f32 %v2588, %v3131
        %v3462 = vadd.f32 %v2587, %v3133
        %v3463 = vadd.f32 %v2589, %v3135
        %v3464 = vadd.f32 %v2597, %v3137
        %v3465 = vadd.f32 %v2605, %v3139
        %v3466 = vadd.f32 %v2604, %v3141
        %v3467 = vadd.f32 %v2606, %v3143
        %v3468 = vadd.f32 %v2614, %v3145
        %v3469 = vadd.f32 %v2622, %v3147
        %v3470 = vadd.f32 %v2621, %v3149
        %v3471 = vadd.f32 %v2623, %v3151
        %v3472 = vadd.f32 %v2631, %v3153
        %v3473 = vadd.f32 %v2639, %v3155
        %v3474 = vadd.f32 %v2638, %v3157
        %v3475 = vadd.f32 %v2640, %v3159
        %v3476 = vadd.f32 %v2648, %v3161
        %v3477 = vadd.f32 %v2656, %v3163
        %v3478 = vadd.f32 %v2655, %v3165
        %v3479 = vadd.f32 %v2657, %v3167
        %v3480 = vadd.f32 %v2665, %v3169
        %v3481 = vadd.f32 %v2673, %v3171
        %v3482 = vadd.f32 %v2672, %v3173
        %v3483 = vadd.f32 %v2674, %v3175
        %v3484 = vadd.f32 %v2682, %v3177
        %v3485 = vadd.f32 %v2690, %v3179
        %v3486 = vadd.f32 %v2689, %v3181
        %v3487 = vadd.f32 %v2691, %v3183
        %v3488 = vadd.f32 %v2699, %v3185
        %v3489 = vadd.f32 %v2707, %v3187
        %v3490 = vadd.f32 %v2706, %v3189
        %v3491 = vadd.f32 %v2708, %v3191
        %v3492 = vadd.f32 %v2716, %v3193
        %v3493 = vadd.f32 %v2724, %v3195
        %v3494 = vadd.f32 %v2723, %v3197
        %v3495 = vadd.f32 %v2725, %v3199
        %v3496 = vadd.f32 %v2733, %v3201
        %v3497 = vadd.f32 %v2741, %v3203
        %v3498 = vadd.f32 %v2740, %v3205
        %v3499 = vadd.f32 %v2742, %v3207
        %v3500 = vadd.f32 %v2750, %v3209
        %v3501 = vadd.f32 %v2758, %v3211
        %v3502 = vadd.f32 %v2757, %v3213
        %v3503 = vadd.f32 %v2759, %v3215
        %v3504 = vadd.f32 %v2767, %v3217
        %v3505 = vadd.f32 %v2775, %v3219
        %v3506 = vadd.f32 %v2774, %v3221
        %v3507 = vadd.f32 %v2776, %v3223
        %v3508 = vadd.f32 %v2784, %v3225
        %v3509 = vadd.f32 %v2792, %v3227
        %v3510 = vadd.f32 %v2791, %v3229
        %v3511 = vadd.f32 %v2793, %v3231
        %v3512 = vadd.f32 %v2801, %v3233
        %v3513 = vadd.f32 %v2809, %v3235
        %v3514 = vadd.f32 %v2808, %v3237
        %v3515 = vadd.f32 %v2810, %v3239
        %v3516 = vadd.f32 %v2818, %v3241
        %v3517 = vadd.f32 %v2826, %v3243
        %v3518 = vadd.f32 %v2825, %v3245
        %v3519 = vadd.f32 %v2827, %v3247
        %v3520 = vadd.f32 %v2835, %v3249
        %v3521 = vadd.f32 %v2843, %v3251
        %v3522 = vadd.f32 %v2842, %v3253
        %v3523 = vadd.f32 %v2844, %v3255
        %v3524 = vadd.f32 %v2852, %v3257
        %v3525 = vadd.f32 %v2860, %v3259
        %v3526 = vadd.f32 %v2859, %v3261
        %v3527 = vadd.f32 %v2861, %v3263
        %v3528 = vadd.f32 %v2869, %v3265
        %v3529 = vadd.f32 %v2877, %v3267
        %v3530 = vadd.f32 %v2876, %v3269
        %v3531 = vadd.f32 %v2878, %v3271
        %v3532 = vadd.f32 %v2886, %v3273
        %v3533 = vadd.f32 %v2894, %v3275
        %v3534 = vadd.f32 %v2893, %v3277
        %v3535 = vadd.f32 %v2895, %v3279
        %v3536 = vadd.f32 %v3408, %v3416
        %v3537 = vadd.f32 %v3409, %v3417
        %v3538 = vadd.f32 %v3410, %v3418
        %v3539 = vadd.f32 %v3411, %v3419
        %v3540 = vadd.f32 %v3412, %v3420
        %v3541 = vadd.f32 %v3413, %v3421
        %v3542 = vadd.f32 %v3414, %v3422
        %v3543 = vadd.f32 %v3415, %v3423
        %v3544 = vadd.f32 %v3424, %v3432
        %v3545 = vadd.f32 %v3425, %v3433
        %v3546 = vadd.f32 %v3426, %v3434
        %v3547 = vadd.f32 %v3427, %v3435
        %v3548 = vadd.f32 %v3428, %v3436
        %v3549 = vadd.f32 %v3429, %v3437
        %v3550 = vadd.f32 %v3430, %v3438
        %v3551 = vadd.f32 %v3431, %v3439
        %v3552 = vadd.f32 %v3440, %v3448
        %v3553 = vadd.f32 %v3441, %v3449
        %v3554 = vadd.f32 %v3442, %v3450
        %v3555 = vadd.f32 %v3443, %v3451
        %v3556 = vadd.f32 %v3444, %v3452
        %v3557 = vadd.f32 %v3445, %v3453
        %v3558 = vadd.f32 %v3446, %v3454
        %v3559 = vadd.f32 %v3447, %v3455
        %v3560 = vadd.f32 %v3456, %v3464
        %v3561 = vadd.f32 %v3457, %v3465
        %v3562 = vadd.f32 %v3458, %v3466
        %v3563 = vadd.f32 %v3459, %v3467
        %v3564 = vadd.f32 %v3460, %v3468
        %v3565 = vadd.f32 %v3461, %v3469
        %v3566 = vadd.f32 %v3462, %v3470
        %v3567 = vadd.f32 %v3463, %v3471
        %v3568 = vadd.f32 %v3472, %v3480
        %v3569 = vadd.f32 %v3473, %v3481
        %v3570 = vadd.f32 %v3474, %v3482
        %v3571 = vadd.f32 %v3475, %v3483
        %v3572 = vadd.f32 %v3476, %v3484
        %v3573 = vadd.f32 %v3477, %v3485
        %v3574 = vadd.f32 %v3478, %v3486
        %v3575 = vadd.f32 %v3479, %v3487
        %v3576 = vadd.f32 %v3488, %v3496
        %v3577 = vadd.f32 %v3489, %v3497
        %v3578 = vadd.f32 %v3490, %v3498
        %v3579 = vadd.f32 %v3491, %v3499
        %v3580 = vadd.f32 %v3492, %v3500
        %v3581 = vadd.f32 %v3493, %v3501
        %v3582 = vadd.f32 %v3494, %v3502
        %v3583 = vadd.f32 %v3495, %v3503
        %v3584 = vadd.f32 %v3504, %v3512
        %v3585 = vadd.f32 %v3505, %v3513
        %v3586 = vadd.f32 %v3506, %v3514
        %v3587 = vadd.f32 %v3507, %v3515
        %v3588 = vadd.f32 %v3508, %v3516
        %v3589 = vadd.f32 %v3509, %v3517
        %v3590 = vadd.f32 %v3510, %v3518
        %v3591 = vadd.f32 %v3511, %v3519
        %v3592 = vadd.f32 %v3520, %v3528
        %v3593 = vadd.f32 %v3521, %v3529
        %v3594 = vadd.f32 %v3522, %v3530
        %v3595 = vadd.f32 %v3523, %v3531
        %v3596 = vadd.f32 %v3524, %v3532
        %v3597 = vadd.f32 %v3525, %v3533
        %v3598 = vadd.f32 %v3526, %v3534
        %v3599 = vadd.f32 %v3527, %v3535
        %v3664 = vlaneseq
        %v3665 = vshrl.u32 %v3664, 7
        %v3666 = vsub.s32 0, %v3665
        %v3667 = vrot.slane %v3536, %v3666
        %v3668 = vlaneseq
        %v3669 = vshrl.u32 %v3668, 7
        %v3670 = vsub.s32 0, %v3669
        %v3671 = vrot.slane %v3537, %v3670
        %v3672 = vlaneseq
        %v3673 = vshrl.u32 %v3672, 7
        %v3674 = vsub.s32 0, %v3673
        %v3675 = vrot.slane %v3538, %v3674
        %v3676 = vlaneseq
        %v3677 = vshrl.u32 %v3676, 7
        %v3678 = vsub.s32 0, %v3677
        %v3679 = vrot.slane %v3539, %v3678
        %v3680 = vlaneseq
        %v3681 = vshrl.u32 %v3680, 7
        %v3682 = vsub.s32 0, %v3681
        %v3683 = vrot.slane %v3540, %v3682
        %v3684 = vlaneseq
        %v3685 = vshrl.u32 %v3684, 7
        %v3686 = vsub.s32 0, %v3685
        %v3687 = vrot.slane %v3541, %v3686
        %v3688 = vlaneseq
        %v3689 = vshrl.u32 %v3688, 7
        %v3690 = vsub.s32 0, %v3689
        %v3691 = vrot.slane %v3542, %v3690
        %v3692 = vlaneseq
        %v3693 = vshrl.u32 %v3692, 7
        %v3694 = vsub.s32 0, %v3693
        %v3695 = vrot.slane %v3543, %v3694
        %v3696 = vlaneseq
        %v3697 = vshrl.u32 %v3696, 7
        %v3698 = vsub.s32 0, %v3697
        %v3699 = vrot.slane %v3544, %v3698
        %v3700 = vlaneseq
        %v3701 = vshrl.u32 %v3700, 7
        %v3702 = vsub.s32 0, %v3701
        %v3703 = vrot.slane %v3545, %v3702
        %v3704 = vlaneseq
        %v3705 = vshrl.u32 %v3704, 7
        %v3706 = vsub.s32 0, %v3705
        %v3707 = vrot.slane %v3546, %v3706
        %v3708 = vlaneseq
        %v3709 = vshrl.u32 %v3708, 7
        %v3710 = vsub.s32 0, %v3709
        %v3711 = vrot.slane %v3547, %v3710
        %v3712 = vlaneseq
        %v3713 = vshrl.u32 %v3712, 7
        %v3714 = vsub.s32 0, %v3713
        %v3715 = vrot.slane %v3548, %v3714
        %v3716 = vlaneseq
        %v3717 = vshrl.u32 %v3716, 7
        %v3718 = vsub.s32 0, %v3717
        %v3719 = vrot.slane %v3549, %v3718
        %v3720 = vlaneseq
        %v3721 = vshrl.u32 %v3720, 7
        %v3722 = vsub.s32 0, %v3721
        %v3723 = vrot.slane %v3550, %v3722
        %v3724 = vlaneseq
        %v3725 = vshrl.u32 %v3724, 7
        %v3726 = vsub.s32 0, %v3725
        %v3727 = vrot.slane %v3551, %v3726
        %v3728 = vlaneseq
        %v3729 = vshrl.u32 %v3728, 7
        %v3730 = vsub.s32 0, %v3729
        %v3731 = vrot.slane %v3552, %v3730
        %v3732 = vlaneseq
        %v3733 = vshrl.u32 %v3732, 7
        %v3734 = vsub.s32 0, %v3733
        %v3735 = vrot.slane %v3553, %v3734
        %v3736 = vlaneseq
        %v3737 = vshrl.u32 %v3736, 7
        %v3738 = vsub.s32 0, %v3737
        %v3739 = vrot.slane %v3554, %v3738
        %v3740 = vlaneseq
        %v3741 = vshrl.u32 %v3740, 7
        %v3742 = vsub.s32 0, %v3741
        %v3743 = vrot.slane %v3555, %v3742
        %v3744 = vlaneseq
        %v3745 = vshrl.u32 %v3744, 7
        %v3746 = vsub.s32 0, %v3745
        %v3747 = vrot.slane %v3556, %v3746
        %v3748 = vlaneseq
        %v3749 = vshrl.u32 %v3748, 7
        %v3750 = vsub.s32 0, %v3749
        %v3751 = vrot.slane %v3557, %v3750
        %v3752 = vlaneseq
        %v3753 = vshrl.u32 %v3752, 7
        %v3754 = vsub.s32 0, %v3753
        %v3755 = vrot.slane %v3558, %v3754
        %v3756 = vlaneseq
        %v3757 = vshrl.u32 %v3756, 7
        %v3758 = vsub.s32 0, %v3757
        %v3759 = vrot.slane %v3559, %v3758
        %v3760 = vlaneseq
        %v3761 = vshrl.u32 %v3760, 7
        %v3762 = vsub.s32 0, %v3761
        %v3763 = vrot.slane %v3560, %v3762
        %v3764 = vlaneseq
        %v3765 = vshrl.u32 %v3764, 7
        %v3766 = vsub.s32 0, %v3765
        %v3767 = vrot.slane %v3561, %v3766
        %v3768 = vlaneseq
        %v3769 = vshrl.u32 %v3768, 7
        %v3770 = vsub.s32 0, %v3769
        %v3771 = vrot.slane %v3562, %v3770
        %v3772 = vlaneseq
        %v3773 = vshrl.u32 %v3772, 7
        %v3774 = vsub.s32 0, %v3773
        %v3775 = vrot.slane %v3563, %v3774
        %v3776 = vlaneseq
        %v3777 = vshrl.u32 %v3776, 7
        %v3778 = vsub.s32 0, %v3777
        %v3779 = vrot.slane %v3564, %v3778
        %v3780 = vlaneseq
        %v3781 = vshrl.u32 %v3780, 7
        %v3782 = vsub.s32 0, %v3781
        %v3783 = vrot.slane %v3565, %v3782
        %v3784 = vlaneseq
        %v3785 = vshrl.u32 %v3784, 7
        %v3786 = vsub.s32 0, %v3785
        %v3787 = vrot.slane %v3566, %v3786
        %v3788 = vlaneseq
        %v3789 = vshrl.u32 %v3788, 7
        %v3790 = vsub.s32 0, %v3789
        %v3791 = vrot.slane %v3567, %v3790
        %v3792 = vlaneseq
        %v3793 = vshrl.u32 %v3792, 7
        %v3794 = vsub.s32 0, %v3793
        %v3795 = vrot.slane %v3568, %v3794
        %v3796 = vlaneseq
        %v3797 = vshrl.u32 %v3796, 7
        %v3798 = vsub.s32 0, %v3797
        %v3799 = vrot.slane %v3569, %v3798
        %v3800 = vlaneseq
        %v3801 = vshrl.u32 %v3800, 7
        %v3802 = vsub.s32 0, %v3801
        %v3803 = vrot.slane %v3570, %v3802
        %v3804 = vlaneseq
        %v3805 = vshrl.u32 %v3804, 7
        %v3806 = vsub.s32 0, %v3805
        %v3807 = vrot.slane %v3571, %v3806
        %v3808 = vlaneseq
        %v3809 = vshrl.u32 %v3808, 7
        %v3810 = vsub.s32 0, %v3809
        %v3811 = vrot.slane %v3572, %v3810
        %v3812 = vlaneseq
        %v3813 = vshrl.u32 %v3812, 7
        %v3814 = vsub.s32 0, %v3813
        %v3815 = vrot.slane %v3573, %v3814
        %v3816 = vlaneseq
        %v3817 = vshrl.u32 %v3816, 7
        %v3818 = vsub.s32 0, %v3817
        %v3819 = vrot.slane %v3574, %v3818
        %v3820 = vlaneseq
        %v3821 = vshrl.u32 %v3820, 7
        %v3822 = vsub.s32 0, %v3821
        %v3823 = vrot.slane %v3575, %v3822
        %v3824 = vlaneseq
        %v3825 = vshrl.u32 %v3824, 7
        %v3826 = vsub.s32 0, %v3825
        %v3827 = vrot.slane %v3576, %v3826
        %v3828 = vlaneseq
        %v3829 = vshrl.u32 %v3828, 7
        %v3830 = vsub.s32 0, %v3829
        %v3831 = vrot.slane %v3577, %v3830
        %v3832 = vlaneseq
        %v3833 = vshrl.u32 %v3832, 7
        %v3834 = vsub.s32 0, %v3833
        %v3835 = vrot.slane %v3578, %v3834
        %v3836 = vlaneseq
        %v3837 = vshrl.u32 %v3836, 7
        %v3838 = vsub.s32 0, %v3837
        %v3839 = vrot.slane %v3579, %v3838
        %v3840 = vlaneseq
        %v3841 = vshrl.u32 %v3840, 7
        %v3842 = vsub.s32 0, %v3841
        %v3843 = vrot.slane %v3580, %v3842
        %v3844 = vlaneseq
        %v3845 = vshrl.u32 %v3844, 7
        %v3846 = vsub.s32 0, %v3845
        %v3847 = vrot.slane %v3581, %v3846
        %v3848 = vlaneseq
        %v3849 = vshrl.u32 %v3848, 7
        %v3850 = vsub.s32 0, %v3849
        %v3851 = vrot.slane %v3582, %v3850
        %v3852 = vlaneseq
        %v3853 = vshrl.u32 %v3852, 7
        %v3854 = vsub.s32 0, %v3853
        %v3855 = vrot.slane %v3583, %v3854
        %v3856 = vlaneseq
        %v3857 = vshrl.u32 %v3856, 7
        %v3858 = vsub.s32 0, %v3857
        %v3859 = vrot.slane %v3584, %v3858
        %v3860 = vlaneseq
        %v3861 = vshrl.u32 %v3860, 7
        %v3862 = vsub.s32 0, %v3861
        %v3863 = vrot.slane %v3585, %v3862
        %v3864 = vlaneseq
        %v3865 = vshrl.u32 %v3864, 7
        %v3866 = vsub.s32 0, %v3865
        %v3867 = vrot.slane %v3586, %v3866
        %v3868 = vlaneseq
        %v3869 = vshrl.u32 %v3868, 7
        %v3870 = vsub.s32 0, %v3869
        %v3871 = vrot.slane %v3587, %v3870
        %v3872 = vlaneseq
        %v3873 = vshrl.u32 %v3872, 7
        %v3874 = vsub.s32 0, %v3873
        %v3875 = vrot.slane %v3588, %v3874
        %v3876 = vlaneseq
        %v3877 = vshrl.u32 %v3876, 7
        %v3878 = vsub.s32 0, %v3877
        %v3879 = vrot.slane %v3589, %v3878
        %v3880 = vlaneseq
        %v3881 = vshrl.u32 %v3880, 7
        %v3882 = vsub.s32 0, %v3881
        %v3883 = vrot.slane %v3590, %v3882
        %v3884 = vlaneseq
        %v3885 = vshrl.u32 %v3884, 7
        %v3886 = vsub.s32 0, %v3885
        %v3887 = vrot.slane %v3591, %v3886
        %v3888 = vlaneseq
        %v3889 = vshrl.u32 %v3888, 7
        %v3890 = vsub.s32 0, %v3889
        %v3891 = vrot.slane %v3592, %v3890
        %v3892 = vlaneseq
        %v3893 = vshrl.u32 %v3892, 7
        %v3894 = vsub.s32 0, %v3893
        %v3895 = vrot.slane %v3593, %v3894
        %v3896 = vlaneseq
        %v3897 = vshrl.u32 %v3896, 7
        %v3898 = vsub.s32 0, %v3897
        %v3899 = vrot.slane %v3594, %v3898
        %v3900 = vlaneseq
        %v3901 = vshrl.u32 %v3900, 7
        %v3902 = vsub.s32 0, %v3901
        %v3903 = vrot.slane %v3595, %v3902
        %v3904 = vlaneseq
        %v3905 = vshrl.u32 %v3904, 7
        %v3906 = vsub.s32 0, %v3905
        %v3907 = vrot.slane %v3596, %v3906
        %v3908 = vlaneseq
        %v3909 = vshrl.u32 %v3908, 7
        %v3910 = vsub.s32 0, %v3909
        %v3911 = vrot.slane %v3597, %v3910
        %v3912 = vlaneseq
        %v3913 = vshrl.u32 %v3912, 7
        %v3914 = vsub.s32 0, %v3913
        %v3915 = vrot.slane %v3598, %v3914
        %v3916 = vlaneseq
        %v3917 = vshrl.u32 %v3916, 7
        %v3918 = vsub.s32 0, %v3917
        %v3919 = vrot.slane %v3599, %v3918
        %vm3920 = vcmask 1041409
        %v3921 = vsel %vm3920, %v3671, %v3667
        %vm3922 = vcmask 1042434
        %v3923 = vsel %vm3922, %v3675, %v3921
        %vm3924 = vcmask 1043459
        %v3925 = vsel %vm3924, %v3679, %v3923
        %vm3926 = vcmask 1044484
        %v3927 = vsel %vm3926, %v3683, %v3925
        %vm3928 = vcmask 1045509
        %v3929 = vsel %vm3928, %v3687, %v3927
        %vm3930 = vcmask 1046534
        %v3931 = vsel %vm3930, %v3691, %v3929
        %vm3932 = vcmask 1047559
        %v3933 = vsel %vm3932, %v3695, %v3931
        %v3934 = vsel %vm3920, %v3703, %v3699
        %v3935 = vsel %vm3922, %v3707, %v3934
        %v3936 = vsel %vm3924, %v3711, %v3935
        %v3937 = vsel %vm3926, %v3715, %v3936
        %v3938 = vsel %vm3928, %v3719, %v3937
        %v3939 = vsel %vm3930, %v3723, %v3938
        %v3940 = vsel %vm3932, %v3727, %v3939
        %v3941 = vsel %vm3920, %v3735, %v3731
        %v3942 = vsel %vm3922, %v3739, %v3941
        %v3943 = vsel %vm3924, %v3743, %v3942
        %v3944 = vsel %vm3926, %v3747, %v3943
        %v3945 = vsel %vm3928, %v3751, %v3944
        %v3946 = vsel %vm3930, %v3755, %v3945
        %v3947 = vsel %vm3932, %v3759, %v3946
        %v3948 = vsel %vm3920, %v3767, %v3763
        %v3949 = vsel %vm3922, %v3771, %v3948
        %v3950 = vsel %vm3924, %v3775, %v3949
        %v3951 = vsel %vm3926, %v3779, %v3950
        %v3952 = vsel %vm3928, %v3783, %v3951
        %v3953 = vsel %vm3930, %v3787, %v3952
        %v3954 = vsel %vm3932, %v3791, %v3953
        %v3955 = vsel %vm3920, %v3799, %v3795
        %v3956 = vsel %vm3922, %v3803, %v3955
        %v3957 = vsel %vm3924, %v3807, %v3956
        %v3958 = vsel %vm3926, %v3811, %v3957
        %v3959 = vsel %vm3928, %v3815, %v3958
        %v3960 = vsel %vm3930, %v3819, %v3959
        %v3961 = vsel %vm3932, %v3823, %v3960
        %v3962 = vsel %vm3920, %v3831, %v3827
        %v3963 = vsel %vm3922, %v3835, %v3962
        %v3964 = vsel %vm3924, %v3839, %v3963
        %v3965 = vsel %vm3926, %v3843, %v3964
        %v3966 = vsel %vm3928, %v3847, %v3965
        %v3967 = vsel %vm3930, %v3851, %v3966
        %v3968 = vsel %vm3932, %v3855, %v3967
        %v3969 = vsel %vm3920, %v3863, %v3859
        %v3970 = vsel %vm3922, %v3867, %v3969
        %v3971 = vsel %vm3924, %v3871, %v3970
        %v3972 = vsel %vm3926, %v3875, %v3971
        %v3973 = vsel %vm3928, %v3879, %v3972
        %v3974 = vsel %vm3930, %v3883, %v3973
        %v3975 = vsel %vm3932, %v3887, %v3974
        %v3976 = vsel %vm3920, %v3895, %v3891
        %v3977 = vsel %vm3922, %v3899, %v3976
        %v3978 = vsel %vm3924, %v3903, %v3977
        %v3979 = vsel %vm3926, %v3907, %v3978
        %v3980 = vsel %vm3928, %v3911, %v3979
        %v3981 = vsel %vm3930, %v3915, %v3980
        %v3982 = vsel %vm3932, %v3919, %v3981
        %3991 = vst [vmem:[%s190] sm:$0xff] %v3933
        %3992 = vst [vmem:[%s190 + $0x8] sm:$0xff] %v3940
        %3993 = vst [vmem:[%s190 + $0x10] sm:$0xff] %v3947
        %3994 = vst [vmem:[%s190 + $0x18] sm:$0xff] %v3954
        %3995 = vst [vmem:[%s190 + $0x20] sm:$0xff] %v3961
        %3996 = vst [vmem:[%s190 + $0x28] sm:$0xff] %v3968
        %3997 = vst [vmem:[%s190 + $0x30] sm:$0xff] %v3975
        %3998 = vst [vmem:[%s190 + $0x38] sm:$0xff] %v3982
        %s3999 = sand.u32 %s115, 1
        %s4000 = scalar_lea.sflag [#allocation4], %s3999
        %s4001 = sand.u32 %s115, 1
        %s4002 = smul.addr %s4001, 64
        %s4003 = scalar_lea.vmem [#allocation3], %s4002
        // Predicated region
        $region37: #{conavg_pallas.1} parent=35 // pred_check
          %p4004 = pneg %p125
        $region38: #{conavg_pallas.1} parent=35 // pred_check_branch
          %4006 = sbr.rel (%p4004) target = $region40
        $region39: #{conavg_pallas.1} parent=35 // pred_region
          %s4008 = ssub.s32 1024, 1024
          %4009 = vsyncadd %s4000, %s4008
          %s4010 = smul.addr %s18, 8
          %s4011 = smul.addr %s4010, 128
          %s4012 = scalar_lea.hbm %s4, %s4011
          %s4013 = sshll.u32 %s4003, 4
          %s4014 = int_to_ptr.vmem [resolvable:$true] %s4013
          %4019 = dma.vmem_to_hbm [thread:$0]  %s4014, 1024, %s4012, %s4000, 128, 128, 8
        $region40: #{conavg_pallas.1} parent=35 // pred_fallthru
          _
      $region36: #{conavg_pallas.1} parent=5 // pred_fallthru
        _
      %p4020 = scmp.le.s32.totalorder 2, %s13
      // Predicated region
      $region41: #{conavg_pallas.1} parent=5 // pred_check
        %p4021 = pneg %p4020
      $region42: #{conavg_pallas.1} parent=5 // pred_check_branch
        %4023 = sbr.rel (%p4021) target = $region44
      $region43: #{conavg_pallas.1} parent=5 // pred_region
        %s4024 = ssub.s32 %s13, 2
        // Predicated region
        $region45: #{conavg_pallas.1} parent=43 // pred_check
          %p4025 = pneg %p131
        $region46: #{conavg_pallas.1} parent=43 // pred_check_branch
          %4027 = sbr.rel (%p4025) target = $region48
        $region47: #{conavg_pallas.1} parent=43 // pred_region
          %s4028 = sand.u32 %s116, 1
          %s4029 = scalar_lea.sflag [#allocation4], %s4028
          %s4030 = sand.u32 %s116, 1
          %s4031 = smul.addr %s4030, 64
          %s4032 = scalar_lea.vmem [#allocation3], %s4031
          %4033 = dma.done %s4029, 1024
        $region48: #{conavg_pallas.1} parent=43 // pred_fallthru
          _
      $region44: #{conavg_pallas.1} parent=5 // pred_fallthru
        _
    $region6: #{conavg_pallas.1} parent=1 // loop_footer
      %s17 = sadd.s32 1, %s13
    $region7: #{conavg_pallas.1} parent=1 // loop_footer_branch
      %12 = sbr.rel target = $region3
    $region8: #{conavg_pallas.1} parent=1 // loop_exit
      _
    %4034 = vsyncpa [#allocation4], 1
    %s4035 = scalar_lea.sflag [#allocation4], 1
    %4036 = vsyncpa %s4035, 1

</llo_original>
